<compile_context>
chip_gen: v7x
topology: tpu7x:2x2x1
jax: 0.10.0
libtpu: 0.0.40
codegen_flags: <defaults>
</compile_context>

<pallas_src>
import functools

import jax
import jax.numpy as jnp
from jax.experimental import pallas as pl
from jax.experimental.pallas import tpu as pltpu


# Left zero-pad width (sublane columns) of the in-VMEM padded conv2 input.
# The scratch is bf16 (packed (16,128) sublane tile), so a left pad of 16
# keeps the conv1 -> scratch interior store sublane-aligned (unmasked);
# the 3x3 window simply starts at column _PADL - 1.
_PADL = 16


# ---------------------------------------------------------------------------
# Fused Pallas kernel (Bt images per grid step)
# ---------------------------------------------------------------------------

def _bottleneck_kernel(x_ref, w1_ref, s1_ref, b1_ref,
                       w2_ref, s2_ref, b2_ref,
                       w3_ref, s3_ref, b3_ref,
                       *rest, stride, bt, h, w, h_out, w_out, has_proj):
    """conv1+bn1+relu -> conv2(3x3 im2col)+bn2+relu -> conv3+bn3+shortcut -> relu.

    All intermediates stay in VMEM/vregs; matmuls take bf16 inputs and
    accumulate in fp32; BN scale/shift epilogues run in fp32.
    """
    if has_proj:
        wsc_ref, ssc_ref, bsc_ref, o_ref, xp_ref = rest
    else:
        o_ref, xp_ref = rest

    bf16 = jnp.bfloat16
    cin = x_ref.shape[-1]
    planes = w1_ref.shape[-1]
    cout = w3_ref.shape[-1]
    m_in = bt * h * w
    m_out = bt * h_out * w_out

    # ---- zero ONLY the halo cells the 3x3 window reads --------------------
    # Invariant: the interior (rows 1..h, cols _PADL.._PADL+w-1) is fully
    # overwritten below every grid step, and the halo strips are never
    # written anywhere else.  Keep it that way.
    row0 = jnp.zeros((bt, 1, w + 2, planes), bf16)
    xp_ref[:, 0:1, _PADL - 1:_PADL + w + 1, :] = row0
    xp_ref[:, h + 1:h + 2, _PADL - 1:_PADL + w + 1, :] = row0
    col0 = jnp.zeros((bt, h, 1, planes), bf16)
    xp_ref[:, 1:h + 1, _PADL - 1:_PADL, :] = col0
    xp_ref[:, 1:h + 1, _PADL + w:_PADL + w + 1, :] = col0

    x = x_ref[...]                                      # (bt, h, w, cin) bf16

    # ---- conv1 (1x1 = matmul over channels) + bn1 + relu ------------------
    a1 = jnp.dot(x.reshape(m_in, cin), w1_ref[...],
                 preferred_element_type=jnp.float32)
    out1 = jnp.maximum(a1 * s1_ref[...] + b1_ref[...], 0.0)   # (m_in, planes) f32
    # Single fp32->bf16 cast; the bf16 scratch feeds the MXU directly.
    xp_ref[:, 1:h + 1, _PADL:_PADL + w, :] = (
        out1.reshape(bt, h, w, planes).astype(bf16))

    # ---- conv2 (3x3, stride, pad=1) as ONE im2col matmul (K = 9*planes) ---
    taps = []
    for dy in range(3):
        for dx in range(3):
            c0 = _PADL - 1 + dx
            if stride == 1:
                t = xp_ref[:, dy:dy + h_out, c0:c0 + w_out, :]
            else:
                # TODO(synk): use strided pl.ds ref loads instead of a value
                # subsample if stride>1 ever becomes a perf target.
                t = xp_ref[:, dy:dy + (h_out - 1) * stride + 1,
                           c0:c0 + (w_out - 1) * stride + 1, :]
                t = t[:, ::stride, ::stride, :]
            taps.append(t)
    patch = jnp.concatenate(taps, axis=-1).reshape(m_out, 9 * planes)  # bf16
    a2 = jnp.dot(patch, w2_ref[...], preferred_element_type=jnp.float32)
    out2 = jnp.maximum(a2 * s2_ref[...] + b2_ref[...], 0.0).astype(bf16)

    # ---- shortcut (identity or strided 1x1 conv + bn), all in VMEM --------
    if stride == 1:
        xs = x.reshape(m_out, cin)
    else:
        # PyTorch's Bottleneck always uses the projection when stride>1;
        # the identity+stride>1 path is kept only for completeness.
        xs = x[:, ::stride, ::stride, :].reshape(m_out, cin)
    if has_proj:
        sc = jnp.dot(xs, wsc_ref[...], preferred_element_type=jnp.float32)
        sc = sc * ssc_ref[...] + bsc_ref[...]
    else:
        sc = xs.astype(jnp.float32)

    # ---- conv3 (1x1) + bn3 + residual add + relu (fused epilogue) ---------
    a3 = jnp.dot(out2, w3_ref[...], preferred_element_type=jnp.float32)
    out = jnp.maximum(a3 * s3_ref[...] + b3_ref[...] + sc, 0.0)
    o_ref[...] = out.reshape(bt, h_out, w_out, cout).astype(o_ref.dtype)


# ---------------------------------------------------------------------------
# Batch-tile selection (VMEM-budget based, keeps >=2 grid steps for v7x)
# ---------------------------------------------------------------------------

def _pick_bt(n, h, w, cin, planes, cout, h_out, w_out):
    lane = lambda c: -(-c // 128) * 128            # lanes pad to 128
    per_img = (
        2 * 2 * h * w * lane(cin)                            # x block, 2x buffered, bf16
        + 2 * (h + 2) * (w + _PADL + 1) * lane(planes)       # padded scratch, bf16
        + 2 * 2 * h_out * w_out * lane(cout)                 # out block, 2x buffered, bf16
        + 2 * h_out * w_out * lane(9 * planes)               # im2col patch, bf16
        + 4 * h * w * lane(planes)                           # conv1 fp32 temp
        + 4 * h_out * w_out * (lane(planes) + 2 * lane(cout))  # fp32 epilogue temps
    )
    budget = 20 * 1024 * 1024      # conservative; leaves headroom even on v7x
    bt = max(1, min(n, budget // per_img))
    if n >= 2:                     # keep >=2 grid steps so both v7x TCs get work
        bt = min(bt, n // 2)
    bt = max(1, bt)
    while n % bt:
        bt -= 1
    return bt


# ---------------------------------------------------------------------------
# Wrappers
# ---------------------------------------------------------------------------

@functools.partial(jax.jit, static_argnames=("stride",))
def bottleneck_forward_nhwc(x_nhwc, p, *, stride):
    """NHWC-native Bottleneck forward (use this when stacking blocks so
    activations stay NHWC bf16 between blocks).  Returns NHWC bf16."""
    bf16 = jnp.bfloat16
    x = x_nhwc.astype(bf16)
    n, h, w, cin = x.shape
    planes = p["w1"].shape[1]
    cout = p["w3"].shape[1]
    h_out = (h + 2 - 3) // stride + 1
    w_out = (w + 2 - 3) // stride + 1
    has_proj = "wsc" in p
    bt = _pick_bt(n, h, w, cin, planes, cout, h_out, w_out)

    def rep(shape):  # whole-array block, identical for every grid step
        nd = len(shape)
        return pl.BlockSpec(shape, lambda b: (0,) * nd)

    in_specs = [
        pl.BlockSpec((bt, h, w, cin), lambda b: (b, 0, 0, 0)),
        rep((cin, planes)), rep((1, planes)), rep((1, planes)),
        rep((9 * planes, planes)), rep((1, planes)), rep((1, planes)),
        rep((planes, cout)), rep((1, cout)), rep((1, cout)),
    ]
    args = [x,
            p["w1"].astype(bf16), p["s1"], p["b1"],
            p["w2"].reshape(9 * planes, planes).astype(bf16), p["s2"], p["b2"],
            p["w3"].astype(bf16), p["s3"], p["b3"]]
    if has_proj:
        in_specs += [rep((cin, cout)), rep((1, cout)), rep((1, cout))]
        args += [p["wsc"].astype(bf16), p["ssc"], p["bsc"]]

    # Advisory cost estimate (lets XLA schedule the surrounding ops).
    m_out = h_out * w_out
    flops = 2 * n * (h * w * cin * planes
                     + m_out * 9 * planes * planes
                     + m_out * planes * cout
                     + (m_out * cin * cout if has_proj else 0))
    param_elems = (cin * planes + 9 * planes * planes + planes * cout
                   + (cin * cout if has_proj else 0))
    bytes_accessed = (2 * (n * h * w * cin + n * m_out * cout + param_elems)
                      + 4 * (4 * planes + (4 if has_proj else 2) * cout))

    kernel = functools.partial(_bottleneck_kernel, stride=stride, bt=bt,
                               h=h, w=w, h_out=h_out, w_out=w_out,
                               has_proj=has_proj)

    return pl.pallas_call(
        kernel,
        out_shape=jax.ShapeDtypeStruct((n, h_out, w_out, cout), bf16),
        grid=(n // bt,),
        in_specs=in_specs,
        out_specs=pl.BlockSpec((bt, h_out, w_out, cout),
                               lambda b: (b, 0, 0, 0)),
        scratch_shapes=[pltpu.VMEM((bt, h + 2, w + _PADL + 1, planes), bf16)],
        compiler_params=pltpu.CompilerParams(
            dimension_semantics=("parallel",),
            vmem_limit_bytes=48 * 1024 * 1024),   # < v7x's 64 MiB physical VMEM
        cost_estimate=pl.CostEstimate(flops=flops, transcendentals=0,
                                      bytes_accessed=bytes_accessed),
    )(*args)


@functools.partial(jax.jit, static_argnames=("stride",))
def bottleneck_forward(x_nchw, p, *, stride):
    """PyTorch-shaped interface: NCHW fp32 in, NCHW fp32 out."""
    x = jnp.transpose(x_nchw, (0, 2, 3, 1))                 # NHWC
    out = bottleneck_forward_nhwc(x, p, stride=stride)      # NHWC bf16
    return jnp.transpose(out, (0, 3, 1, 2)).astype(x_nchw.dtype)


# ---------------------------------------------------------------------------
# Deterministic parameter construction (synthetic weights, folded eval-mode BN)
# ---------------------------------------------------------------------------

def init_params(key, in_planes, planes, stride, eps=1e-5):
    expansion = 4
    ks = list(jax.random.split(key, 24))

    def nxt():
        return ks.pop()

    def bn_fold(c):
        gamma = jax.random.uniform(nxt(), (c,), jnp.float32, 0.5, 1.5)
        beta = jax.random.normal(nxt(), (c,)) * 0.1
        mean = jax.random.normal(nxt(), (c,)) * 0.1
        var = jax.random.uniform(nxt(), (c,), jnp.float32, 0.5, 1.5)
        s = gamma / jnp.sqrt(var + eps)
        b = beta - mean * s
        return s.reshape(1, c).astype(jnp.float32), b.reshape(1, c).astype(jnp.float32)

    p = {}
    # conv1: 1x1, (Cin, planes)
    p["w1"] = (jax.random.normal(nxt(), (in_planes, planes)) * 0.2).astype(jnp.float32)
    p["s1"], p["b1"] = bn_fold(planes)
    # conv2: 3x3 -> stored as (9, Cin, Cout), tap index = dy*3+dx
    p["w2"] = (jax.random.normal(nxt(), (9, planes, planes)) * 0.1).astype(jnp.float32)
    p["s2"], p["b2"] = bn_fold(planes)
    # conv3: 1x1, (planes, 4*planes)
    p["w3"] = (jax.random.normal(nxt(), (planes, expansion * planes)) * 0.2).astype(jnp.float32)
    p["s3"], p["b3"] = bn_fold(expansion * planes)
    if stride != 1 or in_planes != expansion * planes:
        p["wsc"] = (jax.random.normal(nxt(), (in_planes, expansion * planes)) * 0.2).astype(jnp.float32)
        p["ssc"], p["bsc"] = bn_fold(expansion * planes)
    return p


# ---------------------------------------------------------------------------
# Pure-JAX reference (fp32 math on bf16-quantized inputs/weights so the check
# is apples-to-apples with the mixed-precision kernel)
# ---------------------------------------------------------------------------

def ref_forward(x_nchw, p, *, stride):
    q = lambda t: t.astype(jnp.bfloat16).astype(jnp.float32)
    x = q(jnp.transpose(x_nchw, (0, 2, 3, 1)))

    def conv1x1(t, w):
        return jnp.einsum("nhwc,cd->nhwd", t, w)

    def bn(t, s, b):
        return t * s[0] + b[0]

    planes = p["w1"].shape[1]
    out = q(jax.nn.relu(bn(conv1x1(x, q(p["w1"])), p["s1"], p["b1"])))
    w2 = q(p["w2"]).reshape(3, 3, planes, planes)            # HWIO
    out = jax.lax.conv_general_dilated(
        out, w2, (stride, stride), [(1, 1), (1, 1)],
        dimension_numbers=("NHWC", "HWIO", "NHWC"))
    out = q(jax.nn.relu(bn(out, p["s2"], p["b2"])))
    out = bn(conv1x1(out, q(p["w3"])), p["s3"], p["b3"])
    if "wsc" in p:
        sc = bn(conv1x1(x[:, ::stride, ::stride, :], q(p["wsc"])), p["ssc"], p["bsc"])
    else:
        sc = x[:, ::stride, ::stride, :]
    out = jax.nn.relu(out + sc)
    return jnp.transpose(out, (0, 3, 1, 2))


# ---------------------------------------------------------------------------

if __name__ == "__main__":
    key = jax.random.PRNGKey(0)

    # (in_planes, planes, stride, N, H, W)
    #   config 0: projection shortcut (in_planes != 4*planes)
    #   config 1: identity shortcut   (in_planes == 4*planes)
    configs = [
        (4, 4, 1, 2, 16, 16),
        (16, 4, 1, 2, 16, 16),
    ]
    for idx, (in_planes, planes, stride, n, hh, ww) in enumerate(configs):
        k = jax.random.fold_in(key, idx)
        params = init_params(k, in_planes, planes, stride)
        x = jax.random.normal(jax.random.fold_in(k, 99),
                              (n, in_planes, hh, ww), jnp.float32)

        out = jax.block_until_ready(bottleneck_forward(x, params, stride=stride))
        assert out.shape == (n, 4 * planes, hh // stride, ww // stride), out.shape

        ref = ref_forward(x, params, stride=stride)
        err = float(jnp.max(jnp.abs(out - ref) / (1.0 + jnp.abs(ref))))
        if err > 3e-2:  # bf16 inputs / fp32-accumulation tolerance
            raise AssertionError(
                f"config {idx}: mismatch vs reference, max rel err = {err}")

    print("KERNEL_OK")
</pallas_src>

<mosaic_0001>
module attributes {stable_mosaic.version = 11 : i64} {
  func.func @_bottleneck_kernel(%arg0: i32, %arg1: memref<1x16x16x4xbf16, #tpu.memory_space<vmem>>, %arg2: memref<4x4xbf16, #tpu.memory_space<vmem>>, %arg3: memref<1x4xf32, #tpu.memory_space<vmem>>, %arg4: memref<1x4xf32, #tpu.memory_space<vmem>>, %arg5: memref<36x4xbf16, #tpu.memory_space<vmem>>, %arg6: memref<1x4xf32, #tpu.memory_space<vmem>>, %arg7: memref<1x4xf32, #tpu.memory_space<vmem>>, %arg8: memref<4x16xbf16, #tpu.memory_space<vmem>>, %arg9: memref<1x16xf32, #tpu.memory_space<vmem>>, %arg10: memref<1x16xf32, #tpu.memory_space<vmem>>, %arg11: memref<4x16xbf16, #tpu.memory_space<vmem>>, %arg12: memref<1x16xf32, #tpu.memory_space<vmem>>, %arg13: memref<1x16xf32, #tpu.memory_space<vmem>>, %arg14: memref<1x16x16x16xbf16, #tpu.memory_space<vmem>>, %arg15: memref<1x18x33x4xbf16, #tpu.memory_space<vmem>>) attributes {dimension_semantics = [#tpu.dimension_semantics<parallel>], iteration_bounds = array<i64: 2>, scalar_prefetch = 0 : i64, scratch_operands = 1 : i64, tpu.core_type = #tpu.core_type<tc>, window_params = [{transform_indices = @transform_0, window_bounds = array<i64: 1, 16, 16, 4>}, {pipeline_mode = #tpu.pipeline_mode<synchronous>, transform_indices = @transform_1, window_bounds = array<i64: 4, 4>}, {pipeline_mode = #tpu.pipeline_mode<synchronous>, transform_indices = @transform_2, window_bounds = array<i64: 1, 4>}, {pipeline_mode = #tpu.pipeline_mode<synchronous>, transform_indices = @transform_3, window_bounds = array<i64: 1, 4>}, {pipeline_mode = #tpu.pipeline_mode<synchronous>, transform_indices = @transform_4, window_bounds = array<i64: 36, 4>}, {pipeline_mode = #tpu.pipeline_mode<synchronous>, transform_indices = @transform_5, window_bounds = array<i64: 1, 4>}, {pipeline_mode = #tpu.pipeline_mode<synchronous>, transform_indices = @transform_6, window_bounds = array<i64: 1, 4>}, {pipeline_mode = #tpu.pipeline_mode<synchronous>, transform_indices = @transform_7, window_bounds = array<i64: 4, 16>}, {pipeline_mode = #tpu.pipeline_mode<synchronous>, transform_indices = @transform_8, window_bounds = array<i64: 1, 16>}, {pipeline_mode = #tpu.pipeline_mode<synchronous>, transform_indices = @transform_9, window_bounds = array<i64: 1, 16>}, {pipeline_mode = #tpu.pipeline_mode<synchronous>, transform_indices = @transform_10, window_bounds = array<i64: 4, 16>}, {pipeline_mode = #tpu.pipeline_mode<synchronous>, transform_indices = @transform_11, window_bounds = array<i64: 1, 16>}, {pipeline_mode = #tpu.pipeline_mode<synchronous>, transform_indices = @transform_12, window_bounds = array<i64: 1, 16>}, {transform_indices = @transform_13, window_bounds = array<i64: 1, 16, 16, 16>}]} {
    %cst = arith.constant 0.000000e+00 : bf16
    %0 = vector.broadcast %cst : bf16 to vector<1x1x18x4xbf16>
    %c0 = arith.constant 0 : index
    %c0_0 = arith.constant 0 : index
    %c15 = arith.constant 15 : index
    %c0_1 = arith.constant 0 : index
    %1 = vector.load %arg15[%c0, %c0_0, %c15, %c0_1] : memref<1x18x33x4xbf16, #tpu.memory_space<vmem>>, vector<1x1x18x4xbf16>
    tpu.vector_store %arg15[%c0, %c0_0, %c15, %c0_1], %0 {strides = array<i32>} : memref<1x18x33x4xbf16, #tpu.memory_space<vmem>>, vector<1x1x18x4xbf16>,
    %c0_2 = arith.constant 0 : index
    %c17 = arith.constant 17 : index
    %c15_3 = arith.constant 15 : index
    %c0_4 = arith.constant 0 : index
    %2 = vector.load %arg15[%c0_2, %c17, %c15_3, %c0_4] : memref<1x18x33x4xbf16, #tpu.memory_space<vmem>>, vector<1x1x18x4xbf16>
    tpu.vector_store %arg15[%c0_2, %c17, %c15_3, %c0_4], %0 {strides = array<i32>} : memref<1x18x33x4xbf16, #tpu.memory_space<vmem>>, vector<1x1x18x4xbf16>,
    %cst_5 = arith.constant 0.000000e+00 : bf16
    %3 = vector.broadcast %cst_5 : bf16 to vector<1x16x1x4xbf16>
    %c0_6 = arith.constant 0 : index
    %c1 = arith.constant 1 : index
    %c15_7 = arith.constant 15 : index
    %c0_8 = arith.constant 0 : index
    %4 = vector.load %arg15[%c0_6, %c1, %c15_7, %c0_8] : memref<1x18x33x4xbf16, #tpu.memory_space<vmem>>, vector<1x16x1x4xbf16>
    tpu.vector_store %arg15[%c0_6, %c1, %c15_7, %c0_8], %3 {strides = array<i32>} : memref<1x18x33x4xbf16, #tpu.memory_space<vmem>>, vector<1x16x1x4xbf16>,
    %c0_9 = arith.constant 0 : index
    %c1_10 = arith.constant 1 : index
    %c32 = arith.constant 32 : index
    %c0_11 = arith.constant 0 : index
    %5 = vector.load %arg15[%c0_9, %c1_10, %c32, %c0_11] : memref<1x18x33x4xbf16, #tpu.memory_space<vmem>>, vector<1x16x1x4xbf16>
    tpu.vector_store %arg15[%c0_9, %c1_10, %c32, %c0_11], %3 {strides = array<i32>} : memref<1x18x33x4xbf16, #tpu.memory_space<vmem>>, vector<1x16x1x4xbf16>,
    %c0_12 = arith.constant 0 : index
    %c0_13 = arith.constant 0 : index
    %c0_14 = arith.constant 0 : index
    %c0_15 = arith.constant 0 : index
    %6 = vector.load %arg1[%c0_12, %c0_13, %c0_14, %c0_15] : memref<1x16x16x4xbf16, #tpu.memory_space<vmem>>, vector<1x16x16x4xbf16>
    %7 = vector.shape_cast %6 : vector<1x16x16x4xbf16> to vector<256x4xbf16>
    %c0_16 = arith.constant 0 : index
    %c0_17 = arith.constant 0 : index
    %8 = vector.load %arg2[%c0_16, %c0_17] : memref<4x4xbf16, #tpu.memory_space<vmem>>, vector<4x4xbf16>
    %cst_18 = arith.constant dense<0.000000e+00> : vector<256x4xf32>
    %9 = tpu.matmul %7, %8, %cst_18 {dimension_numbers = #tpu.dot_dimension_numbers<[1], [0], [0], [1], [0, 0, 1, 1], [], []>} : vector<256x4xbf16>, vector<4x4xbf16>, vector<256x4xf32> -> vector<256x4xf32>
    %c0_19 = arith.constant 0 : index
    %c0_20 = arith.constant 0 : index
    %10 = vector.load %arg3[%c0_19, %c0_20] : memref<1x4xf32, #tpu.memory_space<vmem>>, vector<1x4xf32>
    %11 = vector.broadcast %10 : vector<1x4xf32> to vector<256x4xf32>
    %12 = arith.mulf %9, %11 : vector<256x4xf32>
    %c0_21 = arith.constant 0 : index
    %c0_22 = arith.constant 0 : index
    %13 = vector.load %arg4[%c0_21, %c0_22] : memref<1x4xf32, #tpu.memory_space<vmem>>, vector<1x4xf32>
    %14 = vector.broadcast %13 : vector<1x4xf32> to vector<256x4xf32>
    %15 = arith.addf %12, %14 : vector<256x4xf32>
    %cst_23 = arith.constant 0.000000e+00 : f32
    %16 = vector.broadcast %cst_23 : f32 to vector<256x4xf32>
    %17 = arith.maximumf %15, %16 : vector<256x4xf32>
    %18 = vector.shape_cast %17 : vector<256x4xf32> to vector<1x16x16x4xf32>
    %19 = arith.truncf %18 : vector<1x16x16x4xf32> to vector<1x16x16x4xbf16>
    %c0_24 = arith.constant 0 : index
    %c1_25 = arith.constant 1 : index
    %c16 = arith.constant 16 : index
    %c0_26 = arith.constant 0 : index
    %20 = vector.load %arg15[%c0_24, %c1_25, %c16, %c0_26] : memref<1x18x33x4xbf16, #tpu.memory_space<vmem>>, vector<1x16x16x4xbf16>
    tpu.vector_store %arg15[%c0_24, %c1_25, %c16, %c0_26], %19 {strides = array<i32>} : memref<1x18x33x4xbf16, #tpu.memory_space<vmem>>, vector<1x16x16x4xbf16>,
    %c0_27 = arith.constant 0 : index
    %c0_28 = arith.constant 0 : index
    %c15_29 = arith.constant 15 : index
    %c0_30 = arith.constant 0 : index
    %21 = vector.load %arg15[%c0_27, %c0_28, %c15_29, %c0_30] : memref<1x18x33x4xbf16, #tpu.memory_space<vmem>>, vector<1x16x16x4xbf16>
    %c0_31 = arith.constant 0 : index
    %c0_32 = arith.constant 0 : index
    %c16_33 = arith.constant 16 : index
    %c0_34 = arith.constant 0 : index
    %22 = vector.load %arg15[%c0_31, %c0_32, %c16_33, %c0_34] : memref<1x18x33x4xbf16, #tpu.memory_space<vmem>>, vector<1x16x16x4xbf16>
    %c0_35 = arith.constant 0 : index
    %c0_36 = arith.constant 0 : index
    %c17_37 = arith.constant 17 : index
    %c0_38 = arith.constant 0 : index
    %23 = vector.load %arg15[%c0_35, %c0_36, %c17_37, %c0_38] : memref<1x18x33x4xbf16, #tpu.memory_space<vmem>>, vector<1x16x16x4xbf16>
    %c0_39 = arith.constant 0 : index
    %c1_40 = arith.constant 1 : index
    %c15_41 = arith.constant 15 : index
    %c0_42 = arith.constant 0 : index
    %24 = vector.load %arg15[%c0_39, %c1_40, %c15_41, %c0_42] : memref<1x18x33x4xbf16, #tpu.memory_space<vmem>>, vector<1x16x16x4xbf16>
    %c0_43 = arith.constant 0 : index
    %c1_44 = arith.constant 1 : index
    %c16_45 = arith.constant 16 : index
    %c0_46 = arith.constant 0 : index
    %25 = vector.load %arg15[%c0_43, %c1_44, %c16_45, %c0_46] : memref<1x18x33x4xbf16, #tpu.memory_space<vmem>>, vector<1x16x16x4xbf16>
    %c0_47 = arith.constant 0 : index
    %c1_48 = arith.constant 1 : index
    %c17_49 = arith.constant 17 : index
    %c0_50 = arith.constant 0 : index
    %26 = vector.load %arg15[%c0_47, %c1_48, %c17_49, %c0_50] : memref<1x18x33x4xbf16, #tpu.memory_space<vmem>>, vector<1x16x16x4xbf16>
    %c0_51 = arith.constant 0 : index
    %c2 = arith.constant 2 : index
    %c15_52 = arith.constant 15 : index
    %c0_53 = arith.constant 0 : index
    %27 = vector.load %arg15[%c0_51, %c2, %c15_52, %c0_53] : memref<1x18x33x4xbf16, #tpu.memory_space<vmem>>, vector<1x16x16x4xbf16>
    %c0_54 = arith.constant 0 : index
    %c2_55 = arith.constant 2 : index
    %c16_56 = arith.constant 16 : index
    %c0_57 = arith.constant 0 : index
    %28 = vector.load %arg15[%c0_54, %c2_55, %c16_56, %c0_57] : memref<1x18x33x4xbf16, #tpu.memory_space<vmem>>, vector<1x16x16x4xbf16>
    %c0_58 = arith.constant 0 : index
    %c2_59 = arith.constant 2 : index
    %c17_60 = arith.constant 17 : index
    %c0_61 = arith.constant 0 : index
    %29 = vector.load %arg15[%c0_58, %c2_59, %c17_60, %c0_61] : memref<1x18x33x4xbf16, #tpu.memory_space<vmem>>, vector<1x16x16x4xbf16>
    %30 = tpu.concatenate %21, %22, %23, %24, %25, %26, %27, %28, %29 in 3 : vector<1x16x16x4xbf16>, vector<1x16x16x4xbf16>, vector<1x16x16x4xbf16>, vector<1x16x16x4xbf16>, vector<1x16x16x4xbf16>, vector<1x16x16x4xbf16>, vector<1x16x16x4xbf16>, vector<1x16x16x4xbf16>, vector<1x16x16x4xbf16> -> vector<1x16x16x36xbf16>
    %31 = vector.shape_cast %30 : vector<1x16x16x36xbf16> to vector<256x36xbf16>
    %c0_62 = arith.constant 0 : index
    %c0_63 = arith.constant 0 : index
    %32 = vector.load %arg5[%c0_62, %c0_63] : memref<36x4xbf16, #tpu.memory_space<vmem>>, vector<36x4xbf16>
    %cst_64 = arith.constant dense<0.000000e+00> : vector<256x4xf32>
    %33 = tpu.matmul %31, %32, %cst_64 {dimension_numbers = #tpu.dot_dimension_numbers<[1], [0], [0], [1], [0, 0, 1, 1], [], []>} : vector<256x36xbf16>, vector<36x4xbf16>, vector<256x4xf32> -> vector<256x4xf32>
    %c0_65 = arith.constant 0 : index
    %c0_66 = arith.constant 0 : index
    %34 = vector.load %arg6[%c0_65, %c0_66] : memref<1x4xf32, #tpu.memory_space<vmem>>, vector<1x4xf32>
    %35 = vector.broadcast %34 : vector<1x4xf32> to vector<256x4xf32>
    %36 = arith.mulf %33, %35 : vector<256x4xf32>
    %c0_67 = arith.constant 0 : index
    %c0_68 = arith.constant 0 : index
    %37 = vector.load %arg7[%c0_67, %c0_68] : memref<1x4xf32, #tpu.memory_space<vmem>>, vector<1x4xf32>
    %38 = vector.broadcast %37 : vector<1x4xf32> to vector<256x4xf32>
    %39 = arith.addf %36, %38 : vector<256x4xf32>
    %cst_69 = arith.constant 0.000000e+00 : f32
    %40 = vector.broadcast %cst_69 : f32 to vector<256x4xf32>
    %41 = arith.maximumf %39, %40 : vector<256x4xf32>
    %42 = arith.truncf %41 : vector<256x4xf32> to vector<256x4xbf16>
    %43 = vector.shape_cast %6 : vector<1x16x16x4xbf16> to vector<256x4xbf16>
    %c0_70 = arith.constant 0 : index
    %c0_71 = arith.constant 0 : index
    %44 = vector.load %arg11[%c0_70, %c0_71] : memref<4x16xbf16, #tpu.memory_space<vmem>>, vector<4x16xbf16>
    %cst_72 = arith.constant dense<0.000000e+00> : vector<256x16xf32>
    %45 = tpu.matmul %43, %44, %cst_72 {dimension_numbers = #tpu.dot_dimension_numbers<[1], [0], [0], [1], [0, 0, 1, 1], [], []>} : vector<256x4xbf16>, vector<4x16xbf16>, vector<256x16xf32> -> vector<256x16xf32>
    %c0_73 = arith.constant 0 : index
    %c0_74 = arith.constant 0 : index
    %46 = vector.load %arg12[%c0_73, %c0_74] : memref<1x16xf32, #tpu.memory_space<vmem>>, vector<1x16xf32>
    %47 = vector.broadcast %46 : vector<1x16xf32> to vector<256x16xf32>
    %48 = arith.mulf %45, %47 : vector<256x16xf32>
    %c0_75 = arith.constant 0 : index
    %c0_76 = arith.constant 0 : index
    %49 = vector.load %arg13[%c0_75, %c0_76] : memref<1x16xf32, #tpu.memory_space<vmem>>, vector<1x16xf32>
    %50 = vector.broadcast %49 : vector<1x16xf32> to vector<256x16xf32>
    %51 = arith.addf %48, %50 : vector<256x16xf32>
    %c0_77 = arith.constant 0 : index
    %c0_78 = arith.constant 0 : index
    %52 = vector.load %arg8[%c0_77, %c0_78] : memref<4x16xbf16, #tpu.memory_space<vmem>>, vector<4x16xbf16>
    %cst_79 = arith.constant dense<0.000000e+00> : vector<256x16xf32>
    %53 = tpu.matmul %42, %52, %cst_79 {dimension_numbers = #tpu.dot_dimension_numbers<[1], [0], [0], [1], [0, 0, 1, 1], [], []>} : vector<256x4xbf16>, vector<4x16xbf16>, vector<256x16xf32> -> vector<256x16xf32>
    %c0_80 = arith.constant 0 : index
    %c0_81 = arith.constant 0 : index
    %54 = vector.load %arg9[%c0_80, %c0_81] : memref<1x16xf32, #tpu.memory_space<vmem>>, vector<1x16xf32>
    %55 = vector.broadcast %54 : vector<1x16xf32> to vector<256x16xf32>
    %56 = arith.mulf %53, %55 : vector<256x16xf32>
    %c0_82 = arith.constant 0 : index
    %c0_83 = arith.constant 0 : index
    %57 = vector.load %arg10[%c0_82, %c0_83] : memref<1x16xf32, #tpu.memory_space<vmem>>, vector<1x16xf32>
    %58 = vector.broadcast %57 : vector<1x16xf32> to vector<256x16xf32>
    %59 = arith.addf %56, %58 : vector<256x16xf32>
    %60 = arith.addf %59, %51 : vector<256x16xf32>
    %cst_84 = arith.constant 0.000000e+00 : f32
    %61 = vector.broadcast %cst_84 : f32 to vector<256x16xf32>
    %62 = arith.maximumf %60, %61 : vector<256x16xf32>
    %63 = vector.shape_cast %62 : vector<256x16xf32> to vector<1x16x16x16xf32>
    %64 = arith.truncf %63 : vector<1x16x16x16xf32> to vector<1x16x16x16xbf16>
    %c0_85 = arith.constant 0 : index
    %c0_86 = arith.constant 0 : index
    %c0_87 = arith.constant 0 : index
    %c0_88 = arith.constant 0 : index
    %65 = vector.load %arg14[%c0_85, %c0_86, %c0_87, %c0_88] : memref<1x16x16x16xbf16, #tpu.memory_space<vmem>>, vector<1x16x16x16xbf16>
    tpu.vector_store %arg14[%c0_85, %c0_86, %c0_87, %c0_88], %64 {strides = array<i32>} : memref<1x16x16x16xbf16, #tpu.memory_space<vmem>>, vector<1x16x16x16xbf16>,
    return
  }
  func.func @transform_0(%arg0: i32) -> (i32, i32, i32, i32) {
    %c0_i32 = arith.constant 0 : i32
    %c0_i32_0 = arith.constant 0 : i32
    %c0_i32_1 = arith.constant 0 : i32
    %c0_i32_2 = arith.constant 0 : i32
    return %arg0, %c0_i32, %c0_i32_0, %c0_i32_1 : i32, i32, i32, i32
  }
  func.func @transform_1(%arg0: i32) -> (i32, i32) {
    %c0_i32 = arith.constant 0 : i32
    %c0_i32_0 = arith.constant 0 : i32
    %c0_i32_1 = arith.constant 0 : i32
    return %c0_i32, %c0_i32_0 : i32, i32
  }
  func.func @transform_2(%arg0: i32) -> (i32, i32) {
    %c0_i32 = arith.constant 0 : i32
    %c0_i32_0 = arith.constant 0 : i32
    %c0_i32_1 = arith.constant 0 : i32
    return %c0_i32, %c0_i32_0 : i32, i32
  }
  func.func @transform_3(%arg0: i32) -> (i32, i32) {
    %c0_i32 = arith.constant 0 : i32
    %c0_i32_0 = arith.constant 0 : i32
    %c0_i32_1 = arith.constant 0 : i32
    return %c0_i32, %c0_i32_0 : i32, i32
  }
  func.func @transform_4(%arg0: i32) -> (i32, i32) {
    %c0_i32 = arith.constant 0 : i32
    %c0_i32_0 = arith.constant 0 : i32
    %c0_i32_1 = arith.constant 0 : i32
    return %c0_i32, %c0_i32_0 : i32, i32
  }
  func.func @transform_5(%arg0: i32) -> (i32, i32) {
    %c0_i32 = arith.constant 0 : i32
    %c0_i32_0 = arith.constant 0 : i32
    %c0_i32_1 = arith.constant 0 : i32
    return %c0_i32, %c0_i32_0 : i32, i32
  }
  func.func @transform_6(%arg0: i32) -> (i32, i32) {
    %c0_i32 = arith.constant 0 : i32
    %c0_i32_0 = arith.constant 0 : i32
    %c0_i32_1 = arith.constant 0 : i32
    return %c0_i32, %c0_i32_0 : i32, i32
  }
  func.func @transform_7(%arg0: i32) -> (i32, i32) {
    %c0_i32 = arith.constant 0 : i32
    %c0_i32_0 = arith.constant 0 : i32
    %c0_i32_1 = arith.constant 0 : i32
    return %c0_i32, %c0_i32_0 : i32, i32
  }
  func.func @transform_8(%arg0: i32) -> (i32, i32) {
    %c0_i32 = arith.constant 0 : i32
    %c0_i32_0 = arith.constant 0 : i32
    %c0_i32_1 = arith.constant 0 : i32
    return %c0_i32, %c0_i32_0 : i32, i32
  }
  func.func @transform_9(%arg0: i32) -> (i32, i32) {
    %c0_i32 = arith.constant 0 : i32
    %c0_i32_0 = arith.constant 0 : i32
    %c0_i32_1 = arith.constant 0 : i32
    return %c0_i32, %c0_i32_0 : i32, i32
  }
  func.func @transform_10(%arg0: i32) -> (i32, i32) {
    %c0_i32 = arith.constant 0 : i32
    %c0_i32_0 = arith.constant 0 : i32
    %c0_i32_1 = arith.constant 0 : i32
    return %c0_i32, %c0_i32_0 : i32, i32
  }
  func.func @transform_11(%arg0: i32) -> (i32, i32) {
    %c0_i32 = arith.constant 0 : i32
    %c0_i32_0 = arith.constant 0 : i32
    %c0_i32_1 = arith.constant 0 : i32
    return %c0_i32, %c0_i32_0 : i32, i32
  }
  func.func @transform_12(%arg0: i32) -> (i32, i32) {
    %c0_i32 = arith.constant 0 : i32
    %c0_i32_0 = arith.constant 0 : i32
    %c0_i32_1 = arith.constant 0 : i32
    return %c0_i32, %c0_i32_0 : i32, i32
  }
  func.func @transform_13(%arg0: i32) -> (i32, i32, i32, i32) {
    %c0_i32 = arith.constant 0 : i32
    %c0_i32_0 = arith.constant 0 : i32
    %c0_i32_1 = arith.constant 0 : i32
    %c0_i32_2 = arith.constant 0 : i32
    return %arg0, %c0_i32, %c0_i32_0, %c0_i32_1 : i32, i32, i32, i32
  }
}

</mosaic_0001>

<llo_original>
// kernel: bottleneck_forward_nhwc.1
$region0: #{bottleneck_forward_nhwc.1}
  #allocation0 [shape = 'u32[]', space=smem, size = 0x4, offset = 0x4, fixed_abs, tag = 'smem constant byte address 0x4 - core index']
  #allocation1 [shape = 'u32[144,128]{1,0:T(1,128)}', space=vmem, size = 0x12000, scoped, tag = 'internal scratch']
  #allocation2 [shape = 'bf16[1,18,33,4]{3,2,1,0:T(8,128)(2,1)}', space=vmem, size = 0x2d000, scoped, tag = 'scratch operand']
  %s0 = inlined_call_operand.vmem [shape: bf16[2,16,16,4], index: 0, kind: input, shape index: {}]
  %s1 = inlined_call_operand.vmem [shape: bf16[4,4], index: 1, kind: input, shape index: {}]
  %s2 = inlined_call_operand.vmem [shape: f32[1,4], index: 2, kind: input, shape index: {}]
  %s3 = inlined_call_operand.vmem [shape: f32[1,4], index: 3, kind: input, shape index: {}]
  %s4 = inlined_call_operand.vmem [shape: bf16[36,4], index: 4, kind: input, shape index: {}]
  %s5 = inlined_call_operand.vmem [shape: f32[1,4], index: 5, kind: input, shape index: {}]
  %s6 = inlined_call_operand.vmem [shape: f32[1,4], index: 6, kind: input, shape index: {}]
  %s7 = inlined_call_operand.vmem [shape: bf16[4,16], index: 7, kind: input, shape index: {}]
  %s8 = inlined_call_operand.vmem [shape: f32[1,16], index: 8, kind: input, shape index: {}]
  %s9 = inlined_call_operand.vmem [shape: f32[1,16], index: 9, kind: input, shape index: {}]
  %s10 = inlined_call_operand.vmem [shape: bf16[4,16], index: 10, kind: input, shape index: {}]
  %s11 = inlined_call_operand.vmem [shape: f32[1,16], index: 11, kind: input, shape index: {}]
  %s12 = inlined_call_operand.vmem [shape: f32[1,16], index: 12, kind: input, shape index: {}]
  %s13 = inlined_call_operand.hbm [shape: bf16[2,16,16,16], index: 13, kind: output, shape index: {}]
  %s14 = sld [smem:[#allocation0]]
  $region85: #{bottleneck_forward_nhwc.1} parent=0
    _
  %s16 = ssub.s32 1, %s14
  %s17 = scalar_select 0, %s16, %s14
  $region1: #{bottleneck_forward_nhwc.1} parent=0
    #allocation3 [shape = 'u8[131072]{0}', space=vmem, size = 0x20000, scoped, tag = 'output window, operand 0']
    #allocation4 [shape = 's32[2]{0}', space=sflag, size = 0x8, scoped, tag = 'scoped memory for bottleneck_forward_nhwc.1']
    %18 = vsyncpa [#allocation4], 0
    %s19 = scalar_lea.sflag [#allocation4], 1
    %20 = vsyncpa %s19, 0
    loop: start=0, step=1, limit=4
    $region2: #{bottleneck_forward_nhwc.1} parent=1 // loop_pre_header
      _
    $region3: #{bottleneck_forward_nhwc.1} parent=1 // loop_header
      %s22 = sphi 0, %s26
      %p23 = scmp.ge.s32.totalorder %s22, 4
      %s32 = sphi 0, %s34
      %s35 = sphi 0, %s32
      %s36 = sphi 0, %s35
      %s52 = sphi 0, %s36
      %s56 = sphi 0, %s56
      %s58 = sphi 0, %s56
      %s59 = sphi 0, %s58
      %s73 = sphi 0, %s59
      %s77 = sphi 0, %s77
      %s79 = sphi 0, %s77
      %s80 = sphi 0, %s79
      %s94 = sphi 0, %s80
      %s98 = sphi 0, %s98
      %s100 = sphi 0, %s98
      %s101 = sphi 0, %s100
      %s115 = sphi 0, %s101
      %s119 = sphi 0, %s119
      %s121 = sphi 0, %s119
      %s122 = sphi 0, %s121
      %s136 = sphi 0, %s122
      %s140 = sphi 0, %s140
      %s142 = sphi 0, %s140
      %s143 = sphi 0, %s142
      %s157 = sphi 0, %s143
      %s161 = sphi 0, %s161
      %s163 = sphi 0, %s161
      %s164 = sphi 0, %s163
      %s178 = sphi 0, %s164
      %s182 = sphi 0, %s182
      %s184 = sphi 0, %s182
      %s185 = sphi 0, %s184
      %s199 = sphi 0, %s185
      %s203 = sphi 0, %s203
      %s205 = sphi 0, %s203
      %s206 = sphi 0, %s205
      %s220 = sphi 0, %s206
      %s224 = sphi 0, %s224
      %s226 = sphi 0, %s224
      %s227 = sphi 0, %s226
      %s241 = sphi 0, %s227
      %s245 = sphi 0, %s245
      %s247 = sphi 0, %s245
      %s248 = sphi 0, %s247
      %s262 = sphi 0, %s248
      %s266 = sphi 0, %s266
      %s268 = sphi 0, %s266
      %s269 = sphi 0, %s268
      %s283 = sphi 0, %s269
      %s287 = sphi 0, %s287
      %s289 = sphi 0, %s287
      %s290 = sphi 0, %s289
      %s304 = sphi 0, %s290
      %s310 = sphi 0, %s312
      %s313 = sphi 0, %s310
      %s314 = sphi 0, %s313
      %s330 = sphi 0, %s314
    $region4: #{bottleneck_forward_nhwc.1} parent=1 // loop_header_branch
      %25 = sbr.rel (%p23) target = $region8
    $region5: #{bottleneck_forward_nhwc.1} parent=1 // loop_body
      %s27 = ssub.s32 %s22, 1
      %s28 = ssub.s32 %s22, 2
      %s29 = sadd.s32 %s22, 1
      %s30 = ssub.s32 %s22, %s29
      %p31 = scmp.eq.s32.totalorder %s30, 0
      %s33 = sadd.s32 %s32, 1
      %s34 = scalar_select %p31, %s32, %s33
      %p37 = pneg %p31
      %p38 = scmp.eq.s32.totalorder %s22, 1
      %p39 = por %p37, %p38
      %p40 = scmp.ne.s32.totalorder %s32, %s35
      %p41 = scmp.eq.s32.totalorder %s22, 0
      %p42 = por %p40, %p41
      %p43 = scmp.ne.s32.totalorder %s32, %s35
      %p44 = scmp.eq.s32.totalorder %s27, 1
      %p45 = por %p43, %p44
      %p46 = scmp.ne.s32.totalorder %s35, %s36
      %p47 = scmp.eq.s32.totalorder %s27, 0
      %p48 = por %p46, %p47
      %p49 = scmp.ne.s32.totalorder %s35, %s36
      %p50 = scmp.eq.s32.totalorder %s28, 1
      %p51 = por %p49, %p50
      %p53 = scmp.ne.s32.totalorder %s36, %s52
      %p54 = scmp.eq.s32.totalorder %s28, 0
      %p55 = por %p53, %p54
      %s57 = sadd.s32 %s56, 1
      %p60 = scmp.eq.s32.totalorder %s22, 1
      %p61 = scmp.ne.s32.totalorder %s56, %s58
      %p62 = scmp.eq.s32.totalorder %s22, 0
      %p63 = por %p61, %p62
      %p64 = scmp.ne.s32.totalorder %s56, %s58
      %p65 = scmp.eq.s32.totalorder %s27, 1
      %p66 = por %p64, %p65
      %p67 = scmp.ne.s32.totalorder %s58, %s59
      %p68 = scmp.eq.s32.totalorder %s27, 0
      %p69 = por %p67, %p68
      %p70 = scmp.ne.s32.totalorder %s58, %s59
      %p71 = scmp.eq.s32.totalorder %s28, 1
      %p72 = por %p70, %p71
      %p74 = scmp.ne.s32.totalorder %s59, %s73
      %p75 = scmp.eq.s32.totalorder %s28, 0
      %p76 = por %p74, %p75
      %s78 = sadd.s32 %s77, 1
      %p81 = scmp.eq.s32.totalorder %s22, 1
      %p82 = scmp.ne.s32.totalorder %s77, %s79
      %p83 = scmp.eq.s32.totalorder %s22, 0
      %p84 = por %p82, %p83
      %p85 = scmp.ne.s32.totalorder %s77, %s79
      %p86 = scmp.eq.s32.totalorder %s27, 1
      %p87 = por %p85, %p86
      %p88 = scmp.ne.s32.totalorder %s79, %s80
      %p89 = scmp.eq.s32.totalorder %s27, 0
      %p90 = por %p88, %p89
      %p91 = scmp.ne.s32.totalorder %s79, %s80
      %p92 = scmp.eq.s32.totalorder %s28, 1
      %p93 = por %p91, %p92
      %p95 = scmp.ne.s32.totalorder %s80, %s94
      %p96 = scmp.eq.s32.totalorder %s28, 0
      %p97 = por %p95, %p96
      %s99 = sadd.s32 %s98, 1
      %p102 = scmp.eq.s32.totalorder %s22, 1
      %p103 = scmp.ne.s32.totalorder %s98, %s100
      %p104 = scmp.eq.s32.totalorder %s22, 0
      %p105 = por %p103, %p104
      %p106 = scmp.ne.s32.totalorder %s98, %s100
      %p107 = scmp.eq.s32.totalorder %s27, 1
      %p108 = por %p106, %p107
      %p109 = scmp.ne.s32.totalorder %s100, %s101
      %p110 = scmp.eq.s32.totalorder %s27, 0
      %p111 = por %p109, %p110
      %p112 = scmp.ne.s32.totalorder %s100, %s101
      %p113 = scmp.eq.s32.totalorder %s28, 1
      %p114 = por %p112, %p113
      %p116 = scmp.ne.s32.totalorder %s101, %s115
      %p117 = scmp.eq.s32.totalorder %s28, 0
      %p118 = por %p116, %p117
      %s120 = sadd.s32 %s119, 1
      %p123 = scmp.eq.s32.totalorder %s22, 1
      %p124 = scmp.ne.s32.totalorder %s119, %s121
      %p125 = scmp.eq.s32.totalorder %s22, 0
      %p126 = por %p124, %p125
      %p127 = scmp.ne.s32.totalorder %s119, %s121
      %p128 = scmp.eq.s32.totalorder %s27, 1
      %p129 = por %p127, %p128
      %p130 = scmp.ne.s32.totalorder %s121, %s122
      %p131 = scmp.eq.s32.totalorder %s27, 0
      %p132 = por %p130, %p131
      %p133 = scmp.ne.s32.totalorder %s121, %s122
      %p134 = scmp.eq.s32.totalorder %s28, 1
      %p135 = por %p133, %p134
      %p137 = scmp.ne.s32.totalorder %s122, %s136
      %p138 = scmp.eq.s32.totalorder %s28, 0
      %p139 = por %p137, %p138
      %s141 = sadd.s32 %s140, 1
      %p144 = scmp.eq.s32.totalorder %s22, 1
      %p145 = scmp.ne.s32.totalorder %s140, %s142
      %p146 = scmp.eq.s32.totalorder %s22, 0
      %p147 = por %p145, %p146
      %p148 = scmp.ne.s32.totalorder %s140, %s142
      %p149 = scmp.eq.s32.totalorder %s27, 1
      %p150 = por %p148, %p149
      %p151 = scmp.ne.s32.totalorder %s142, %s143
      %p152 = scmp.eq.s32.totalorder %s27, 0
      %p153 = por %p151, %p152
      %p154 = scmp.ne.s32.totalorder %s142, %s143
      %p155 = scmp.eq.s32.totalorder %s28, 1
      %p156 = por %p154, %p155
      %p158 = scmp.ne.s32.totalorder %s143, %s157
      %p159 = scmp.eq.s32.totalorder %s28, 0
      %p160 = por %p158, %p159
      %s162 = sadd.s32 %s161, 1
      %p165 = scmp.eq.s32.totalorder %s22, 1
      %p166 = scmp.ne.s32.totalorder %s161, %s163
      %p167 = scmp.eq.s32.totalorder %s22, 0
      %p168 = por %p166, %p167
      %p169 = scmp.ne.s32.totalorder %s161, %s163
      %p170 = scmp.eq.s32.totalorder %s27, 1
      %p171 = por %p169, %p170
      %p172 = scmp.ne.s32.totalorder %s163, %s164
      %p173 = scmp.eq.s32.totalorder %s27, 0
      %p174 = por %p172, %p173
      %p175 = scmp.ne.s32.totalorder %s163, %s164
      %p176 = scmp.eq.s32.totalorder %s28, 1
      %p177 = por %p175, %p176
      %p179 = scmp.ne.s32.totalorder %s164, %s178
      %p180 = scmp.eq.s32.totalorder %s28, 0
      %p181 = por %p179, %p180
      %s183 = sadd.s32 %s182, 1
      %p186 = scmp.eq.s32.totalorder %s22, 1
      %p187 = scmp.ne.s32.totalorder %s182, %s184
      %p188 = scmp.eq.s32.totalorder %s22, 0
      %p189 = por %p187, %p188
      %p190 = scmp.ne.s32.totalorder %s182, %s184
      %p191 = scmp.eq.s32.totalorder %s27, 1
      %p192 = por %p190, %p191
      %p193 = scmp.ne.s32.totalorder %s184, %s185
      %p194 = scmp.eq.s32.totalorder %s27, 0
      %p195 = por %p193, %p194
      %p196 = scmp.ne.s32.totalorder %s184, %s185
      %p197 = scmp.eq.s32.totalorder %s28, 1
      %p198 = por %p196, %p197
      %p200 = scmp.ne.s32.totalorder %s185, %s199
      %p201 = scmp.eq.s32.totalorder %s28, 0
      %p202 = por %p200, %p201
      %s204 = sadd.s32 %s203, 1
      %p207 = scmp.eq.s32.totalorder %s22, 1
      %p208 = scmp.ne.s32.totalorder %s203, %s205
      %p209 = scmp.eq.s32.totalorder %s22, 0
      %p210 = por %p208, %p209
      %p211 = scmp.ne.s32.totalorder %s203, %s205
      %p212 = scmp.eq.s32.totalorder %s27, 1
      %p213 = por %p211, %p212
      %p214 = scmp.ne.s32.totalorder %s205, %s206
      %p215 = scmp.eq.s32.totalorder %s27, 0
      %p216 = por %p214, %p215
      %p217 = scmp.ne.s32.totalorder %s205, %s206
      %p218 = scmp.eq.s32.totalorder %s28, 1
      %p219 = por %p217, %p218
      %p221 = scmp.ne.s32.totalorder %s206, %s220
      %p222 = scmp.eq.s32.totalorder %s28, 0
      %p223 = por %p221, %p222
      %s225 = sadd.s32 %s224, 1
      %p228 = scmp.eq.s32.totalorder %s22, 1
      %p229 = scmp.ne.s32.totalorder %s224, %s226
      %p230 = scmp.eq.s32.totalorder %s22, 0
      %p231 = por %p229, %p230
      %p232 = scmp.ne.s32.totalorder %s224, %s226
      %p233 = scmp.eq.s32.totalorder %s27, 1
      %p234 = por %p232, %p233
      %p235 = scmp.ne.s32.totalorder %s226, %s227
      %p236 = scmp.eq.s32.totalorder %s27, 0
      %p237 = por %p235, %p236
      %p238 = scmp.ne.s32.totalorder %s226, %s227
      %p239 = scmp.eq.s32.totalorder %s28, 1
      %p240 = por %p238, %p239
      %p242 = scmp.ne.s32.totalorder %s227, %s241
      %p243 = scmp.eq.s32.totalorder %s28, 0
      %p244 = por %p242, %p243
      %s246 = sadd.s32 %s245, 1
      %p249 = scmp.eq.s32.totalorder %s22, 1
      %p250 = scmp.ne.s32.totalorder %s245, %s247
      %p251 = scmp.eq.s32.totalorder %s22, 0
      %p252 = por %p250, %p251
      %p253 = scmp.ne.s32.totalorder %s245, %s247
      %p254 = scmp.eq.s32.totalorder %s27, 1
      %p255 = por %p253, %p254
      %p256 = scmp.ne.s32.totalorder %s247, %s248
      %p257 = scmp.eq.s32.totalorder %s27, 0
      %p258 = por %p256, %p257
      %p259 = scmp.ne.s32.totalorder %s247, %s248
      %p260 = scmp.eq.s32.totalorder %s28, 1
      %p261 = por %p259, %p260
      %p263 = scmp.ne.s32.totalorder %s248, %s262
      %p264 = scmp.eq.s32.totalorder %s28, 0
      %p265 = por %p263, %p264
      %s267 = sadd.s32 %s266, 1
      %p270 = scmp.eq.s32.totalorder %s22, 1
      %p271 = scmp.ne.s32.totalorder %s266, %s268
      %p272 = scmp.eq.s32.totalorder %s22, 0
      %p273 = por %p271, %p272
      %p274 = scmp.ne.s32.totalorder %s266, %s268
      %p275 = scmp.eq.s32.totalorder %s27, 1
      %p276 = por %p274, %p275
      %p277 = scmp.ne.s32.totalorder %s268, %s269
      %p278 = scmp.eq.s32.totalorder %s27, 0
      %p279 = por %p277, %p278
      %p280 = scmp.ne.s32.totalorder %s268, %s269
      %p281 = scmp.eq.s32.totalorder %s28, 1
      %p282 = por %p280, %p281
      %p284 = scmp.ne.s32.totalorder %s269, %s283
      %p285 = scmp.eq.s32.totalorder %s28, 0
      %p286 = por %p284, %p285
      %s288 = sadd.s32 %s287, 1
      %p291 = scmp.eq.s32.totalorder %s22, 1
      %p292 = scmp.ne.s32.totalorder %s287, %s289
      %p293 = scmp.eq.s32.totalorder %s22, 0
      %p294 = por %p292, %p293
      %p295 = scmp.ne.s32.totalorder %s287, %s289
      %p296 = scmp.eq.s32.totalorder %s27, 1
      %p297 = por %p295, %p296
      %p298 = scmp.ne.s32.totalorder %s289, %s290
      %p299 = scmp.eq.s32.totalorder %s27, 0
      %p300 = por %p298, %p299
      %p301 = scmp.ne.s32.totalorder %s289, %s290
      %p302 = scmp.eq.s32.totalorder %s28, 1
      %p303 = por %p301, %p302
      %p305 = scmp.ne.s32.totalorder %s290, %s304
      %p306 = scmp.eq.s32.totalorder %s28, 0
      %p307 = por %p305, %p306
      %s308 = ssub.s32 %s22, %s29
      %p309 = scmp.eq.s32.totalorder %s308, 0
      %s311 = sadd.s32 %s310, 1
      %s312 = scalar_select %p309, %s310, %s311
      %p315 = pneg %p309
      %p316 = scmp.eq.s32.totalorder %s22, 1
      %p317 = por %p315, %p316
      %p318 = scmp.ne.s32.totalorder %s310, %s313
      %p319 = scmp.eq.s32.totalorder %s22, 0
      %p320 = por %p318, %p319
      %p321 = scmp.ne.s32.totalorder %s310, %s313
      %p322 = scmp.eq.s32.totalorder %s27, 1
      %p323 = por %p321, %p322
      %p324 = scmp.ne.s32.totalorder %s313, %s314
      %p325 = scmp.eq.s32.totalorder %s27, 0
      %p326 = por %p324, %p325
      %p327 = scmp.ne.s32.totalorder %s313, %s314
      %p328 = scmp.eq.s32.totalorder %s28, 1
      %p329 = por %p327, %p328
      %p331 = scmp.ne.s32.totalorder %s314, %s330
      %p332 = scmp.eq.s32.totalorder %s28, 0
      %p333 = por %p331, %p332
      %p334 = scmp.le.s32.totalorder 1, %s22
      %p335 = scmp.lt.s32.totalorder %s22, 3
      %p336 = pnand %p334, %p335
      %p337 = pneg %p336
      // Predicated region
      $region9: #{bottleneck_forward_nhwc.1} parent=5 // pred_check
        _
      $region10: #{bottleneck_forward_nhwc.1} parent=5 // pred_check_branch
        %339 = sbr.rel (%p336) target = $region12
      $region11: #{bottleneck_forward_nhwc.1} parent=5 // pred_region
        %s340 = ssub.s32 %s22, 1
        // Predicated region
        $region13: #{bottleneck_forward_nhwc.1} parent=11 // pred_check
          %p341 = pneg %p69
        $region14: #{bottleneck_forward_nhwc.1} parent=11 // pred_check_branch
          %343 = sbr.rel (%p341) target = $region16
        $region15: #{bottleneck_forward_nhwc.1} parent=11 // pred_region
          _
        $region16: #{bottleneck_forward_nhwc.1} parent=11 // pred_fallthru
          _
        // Predicated region
        $region17: #{bottleneck_forward_nhwc.1} parent=11 // pred_check
          %p344 = pneg %p90
        $region18: #{bottleneck_forward_nhwc.1} parent=11 // pred_check_branch
          %346 = sbr.rel (%p344) target = $region20
        $region19: #{bottleneck_forward_nhwc.1} parent=11 // pred_region
          _
        $region20: #{bottleneck_forward_nhwc.1} parent=11 // pred_fallthru
          _
        // Predicated region
        $region21: #{bottleneck_forward_nhwc.1} parent=11 // pred_check
          %p347 = pneg %p111
        $region22: #{bottleneck_forward_nhwc.1} parent=11 // pred_check_branch
          %349 = sbr.rel (%p347) target = $region24
        $region23: #{bottleneck_forward_nhwc.1} parent=11 // pred_region
          _
        $region24: #{bottleneck_forward_nhwc.1} parent=11 // pred_fallthru
          _
        // Predicated region
        $region25: #{bottleneck_forward_nhwc.1} parent=11 // pred_check
          %p350 = pneg %p132
        $region26: #{bottleneck_forward_nhwc.1} parent=11 // pred_check_branch
          %352 = sbr.rel (%p350) target = $region28
        $region27: #{bottleneck_forward_nhwc.1} parent=11 // pred_region
          _
        $region28: #{bottleneck_forward_nhwc.1} parent=11 // pred_fallthru
          _
        // Predicated region
        $region29: #{bottleneck_forward_nhwc.1} parent=11 // pred_check
          %p353 = pneg %p153
        $region30: #{bottleneck_forward_nhwc.1} parent=11 // pred_check_branch
          %355 = sbr.rel (%p353) target = $region32
        $region31: #{bottleneck_forward_nhwc.1} parent=11 // pred_region
          _
        $region32: #{bottleneck_forward_nhwc.1} parent=11 // pred_fallthru
          _
        // Predicated region
        $region33: #{bottleneck_forward_nhwc.1} parent=11 // pred_check
          %p356 = pneg %p174
        $region34: #{bottleneck_forward_nhwc.1} parent=11 // pred_check_branch
          %358 = sbr.rel (%p356) target = $region36
        $region35: #{bottleneck_forward_nhwc.1} parent=11 // pred_region
          _
        $region36: #{bottleneck_forward_nhwc.1} parent=11 // pred_fallthru
          _
        // Predicated region
        $region37: #{bottleneck_forward_nhwc.1} parent=11 // pred_check
          %p359 = pneg %p195
        $region38: #{bottleneck_forward_nhwc.1} parent=11 // pred_check_branch
          %361 = sbr.rel (%p359) target = $region40
        $region39: #{bottleneck_forward_nhwc.1} parent=11 // pred_region
          _
        $region40: #{bottleneck_forward_nhwc.1} parent=11 // pred_fallthru
          _
        // Predicated region
        $region41: #{bottleneck_forward_nhwc.1} parent=11 // pred_check
          %p362 = pneg %p216
        $region42: #{bottleneck_forward_nhwc.1} parent=11 // pred_check_branch
          %364 = sbr.rel (%p362) target = $region44
        $region43: #{bottleneck_forward_nhwc.1} parent=11 // pred_region
          _
        $region44: #{bottleneck_forward_nhwc.1} parent=11 // pred_fallthru
          _
        // Predicated region
        $region45: #{bottleneck_forward_nhwc.1} parent=11 // pred_check
          %p365 = pneg %p237
        $region46: #{bottleneck_forward_nhwc.1} parent=11 // pred_check_branch
          %367 = sbr.rel (%p365) target = $region48
        $region47: #{bottleneck_forward_nhwc.1} parent=11 // pred_region
          _
        $region48: #{bottleneck_forward_nhwc.1} parent=11 // pred_fallthru
          _
        // Predicated region
        $region49: #{bottleneck_forward_nhwc.1} parent=11 // pred_check
          %p368 = pneg %p258
        $region50: #{bottleneck_forward_nhwc.1} parent=11 // pred_check_branch
          %370 = sbr.rel (%p368) target = $region52
        $region51: #{bottleneck_forward_nhwc.1} parent=11 // pred_region
          _
        $region52: #{bottleneck_forward_nhwc.1} parent=11 // pred_fallthru
          _
        // Predicated region
        $region53: #{bottleneck_forward_nhwc.1} parent=11 // pred_check
          %p371 = pneg %p279
        $region54: #{bottleneck_forward_nhwc.1} parent=11 // pred_check_branch
          %373 = sbr.rel (%p371) target = $region56
        $region55: #{bottleneck_forward_nhwc.1} parent=11 // pred_region
          _
        $region56: #{bottleneck_forward_nhwc.1} parent=11 // pred_fallthru
          _
        // Predicated region
        $region57: #{bottleneck_forward_nhwc.1} parent=11 // pred_check
          %p374 = pneg %p300
        $region58: #{bottleneck_forward_nhwc.1} parent=11 // pred_check_branch
          %376 = sbr.rel (%p374) target = $region60
        $region59: #{bottleneck_forward_nhwc.1} parent=11 // pred_region
          _
        $region60: #{bottleneck_forward_nhwc.1} parent=11 // pred_fallthru
          _
      $region12: #{bottleneck_forward_nhwc.1} parent=5 // pred_fallthru
        _
      %p377 = scmp.lt.s32.totalorder %s22, 2
      // Predicated region
      $region61: #{bottleneck_forward_nhwc.1} parent=5 // pred_check
        %p378 = pneg %p377
      $region62: #{bottleneck_forward_nhwc.1} parent=5 // pred_check_branch
        %380 = sbr.rel (%p378) target = $region64
      $region63: #{bottleneck_forward_nhwc.1} parent=5 // pred_region
        // Predicated region
        $region65: #{bottleneck_forward_nhwc.1} parent=63 // pred_check
          %p381 = pneg %p42
        $region66: #{bottleneck_forward_nhwc.1} parent=63 // pred_check_branch
          %383 = sbr.rel (%p381) target = $region68
        $region67: #{bottleneck_forward_nhwc.1} parent=63 // pred_region
          %p384 = scmp.lt.s32.totalorder %s22, 1
          %s385 = scalar_select %p384, %s22, 1
          %s386 = smul.addr %s385, 32
          %s387 = smul.addr %s386, 4
          %s388 = scalar_lea.vmem %s0, %s387
        $region68: #{bottleneck_forward_nhwc.1} parent=63 // pred_fallthru
          _
      $region64: #{bottleneck_forward_nhwc.1} parent=5 // pred_fallthru
        _
      %p389 = scmp.le.s32.totalorder 1, %s22
      %p390 = scmp.lt.s32.totalorder %s22, 3
      %p391 = pnand %p389, %p390
      %p392 = pneg %p391
      // Predicated region
      $region69: #{bottleneck_forward_nhwc.1} parent=5 // pred_check
        _
      $region70: #{bottleneck_forward_nhwc.1} parent=5 // pred_check_branch
        %394 = sbr.rel (%p391) target = $region72
      $region71: #{bottleneck_forward_nhwc.1} parent=5 // pred_region
        %s395 = ssub.s32 %s22, 1
        %p396 = scmp.lt.s32.totalorder %s27, 1
        %s397 = scalar_select %p396, %s27, 1
        %s398 = smul.addr %s397, 32
        %s399 = smul.addr %s398, 4
        %s400 = scalar_lea.vmem %s0, %s399
        %p401 = pneg %p48
        %p402 = pneg %p45
        %p403 = pneg %p69
        %p404 = pneg %p66
        %p405 = pneg %p90
        %p406 = pneg %p87
        %p407 = pneg %p111
        %p408 = pneg %p108
        %p409 = pneg %p132
        %p410 = pneg %p129
        %p411 = pneg %p153
        %p412 = pneg %p150
        %p413 = pneg %p174
        %p414 = pneg %p171
        %p415 = pneg %p195
        %p416 = pneg %p192
        %p417 = pneg %p216
        %p418 = pneg %p213
        %p419 = pneg %p237
        %p420 = pneg %p234
        %p421 = pneg %p258
        %p422 = pneg %p255
        %p423 = pneg %p279
        %p424 = pneg %p276
        %p425 = pneg %p300
        %p426 = pneg %p297
        %p427 = pneg %p326
        %p428 = pneg %p323
        %s429 = sand.u32 %s313, 1
        %s430 = scalar_lea.sflag [#allocation4], %s429
        %s431 = sand.u32 %s313, 1
        %s432 = smul.addr %s431, 128
        %s433 = scalar_lea.vmem [#allocation3], %s432
        %p434 = scmp.lt.s32.totalorder %s27, 1
        %s435 = scalar_select %p434, %s27, 1
        %s436 = smul.addr %s435, 32
        %s437 = smul.addr %s436, 4
        %s438 = scalar_lea.vmem %s0, %s437
        %vm440 = vcmask 27651
        %vm441 = vsmask.f32 7950
        %vm442 = vmand %vm440, %vm441
        %v443 = vld [vmem:[#allocation2 + $0x4] sm:$0x8]
        %v444 = vsel %vm442, 0, %v443
        %445 = vst [vmem:[#allocation2 + $0x4] sm:$0x8] %v444
        %vm446 = vcmask 27648
        %447 = vst.msk [vmem:[#allocation2 + $0x8] sm:$0xf] %vm446, 0
        %448 = vst.msk [vmem:[#allocation2 + $0xc] sm:$0xf] %vm446, 0
        %vm449 = vcmask 24576
        %vm450 = vsmask.f32 256
        %vm451 = vmand %vm449, %vm450
        %v452 = vld [vmem:[#allocation2 + $0x10] sm:$0x1]
        %v453 = vsel %vm451, 0, %v452
        %454 = vst [vmem:[#allocation2 + $0x10] sm:$0x1] %v453
        %s455 = scalar_lea.vmem [#allocation2], 340
        %v456 = vld [vmem:[%s455 + $0x4] sm:$0x8]
        %v457 = vsel %vm442, 0, %v456
        %458 = vst [vmem:[%s455 + $0x4] sm:$0x8] %v457
        %459 = vst.msk [vmem:[%s455 + $0x8] sm:$0xf] %vm446, 0
        %460 = vst.msk [vmem:[%s455 + $0xc] sm:$0xf] %vm446, 0
        %v461 = vld [vmem:[%s455 + $0x10] sm:$0x1]
        %v462 = vsel %vm451, 0, %v461
        %463 = vst [vmem:[%s455 + $0x10] sm:$0x1] %v462
        %s464 = scalar_lea.vmem [#allocation2], 20
        %v465 = vld [vmem:[%s464 + $0x4] sm:$0x8]
        %v466 = vsel %vm442, 0, %v465
        %467 = vst [vmem:[%s464 + $0x4] sm:$0x8] %v466
        %v468 = vld [vmem:[%s464 + $0x18] sm:$0x8]
        %v469 = vsel %vm442, 0, %v468
        %470 = vst [vmem:[%s464 + $0x18] sm:$0x8] %v469
        %v471 = vld [vmem:[%s464 + $0x2c] sm:$0x8]
        %v472 = vsel %vm442, 0, %v471
        %473 = vst [vmem:[%s464 + $0x2c] sm:$0x8] %v472
        %v474 = vld [vmem:[%s464 + $0x40] sm:$0x8]
        %v475 = vsel %vm442, 0, %v474
        %476 = vst [vmem:[%s464 + $0x40] sm:$0x8] %v475
        %v477 = vld [vmem:[%s464 + $0x54] sm:$0x8]
        %v478 = vsel %vm442, 0, %v477
        %479 = vst [vmem:[%s464 + $0x54] sm:$0x8] %v478
        %v480 = vld [vmem:[%s464 + $0x68] sm:$0x8]
        %v481 = vsel %vm442, 0, %v480
        %482 = vst [vmem:[%s464 + $0x68] sm:$0x8] %v481
        %v483 = vld [vmem:[%s464 + $0x7c] sm:$0x8]
        %v484 = vsel %vm442, 0, %v483
        %485 = vst [vmem:[%s464 + $0x7c] sm:$0x8] %v484
        %v486 = vld [vmem:[%s464 + $0x90] sm:$0x8]
        %v487 = vsel %vm442, 0, %v486
        %488 = vst [vmem:[%s464 + $0x90] sm:$0x8] %v487
        %v489 = vld [vmem:[%s464 + $0xa4] sm:$0x8]
        %v490 = vsel %vm442, 0, %v489
        %491 = vst [vmem:[%s464 + $0xa4] sm:$0x8] %v490
        %v492 = vld [vmem:[%s464 + $0xb8] sm:$0x8]
        %v493 = vsel %vm442, 0, %v492
        %494 = vst [vmem:[%s464 + $0xb8] sm:$0x8] %v493
        %v495 = vld [vmem:[%s464 + $0xcc] sm:$0x8]
        %v496 = vsel %vm442, 0, %v495
        %497 = vst [vmem:[%s464 + $0xcc] sm:$0x8] %v496
        %v498 = vld [vmem:[%s464 + $0xe0] sm:$0x8]
        %v499 = vsel %vm442, 0, %v498
        %500 = vst [vmem:[%s464 + $0xe0] sm:$0x8] %v499
        %v501 = vld [vmem:[%s464 + $0xf4] sm:$0x8]
        %v502 = vsel %vm442, 0, %v501
        %503 = vst [vmem:[%s464 + $0xf4] sm:$0x8] %v502
        %v504 = vld [vmem:[%s464 + $0x108] sm:$0x8]
        %v505 = vsel %vm442, 0, %v504
        %506 = vst [vmem:[%s464 + $0x108] sm:$0x8] %v505
        %v507 = vld [vmem:[%s464 + $0x11c] sm:$0x8]
        %v508 = vsel %vm442, 0, %v507
        %509 = vst [vmem:[%s464 + $0x11c] sm:$0x8] %v508
        %v510 = vld [vmem:[%s464 + $0x130] sm:$0x8]
        %v511 = vsel %vm442, 0, %v510
        %512 = vst [vmem:[%s464 + $0x130] sm:$0x8] %v511
        %v513 = vld [vmem:[%s464 + $0x10] sm:$0x1]
        %v514 = vsel %vm451, 0, %v513
        %515 = vst [vmem:[%s464 + $0x10] sm:$0x1] %v514
        %v516 = vld [vmem:[%s464 + $0x24] sm:$0x1]
        %v517 = vsel %vm451, 0, %v516
        %518 = vst [vmem:[%s464 + $0x24] sm:$0x1] %v517
        %v519 = vld [vmem:[%s464 + $0x38] sm:$0x1]
        %v520 = vsel %vm451, 0, %v519
        %521 = vst [vmem:[%s464 + $0x38] sm:$0x1] %v520
        %v522 = vld [vmem:[%s464 + $0x4c] sm:$0x1]
        %v523 = vsel %vm451, 0, %v522
        %524 = vst [vmem:[%s464 + $0x4c] sm:$0x1] %v523
        %v525 = vld [vmem:[%s464 + $0x60] sm:$0x1]
        %v526 = vsel %vm451, 0, %v525
        %527 = vst [vmem:[%s464 + $0x60] sm:$0x1] %v526
        %v528 = vld [vmem:[%s464 + $0x74] sm:$0x1]
        %v529 = vsel %vm451, 0, %v528
        %530 = vst [vmem:[%s464 + $0x74] sm:$0x1] %v529
        %v531 = vld [vmem:[%s464 + $0x88] sm:$0x1]
        %v532 = vsel %vm451, 0, %v531
        %533 = vst [vmem:[%s464 + $0x88] sm:$0x1] %v532
        %v534 = vld [vmem:[%s464 + $0x9c] sm:$0x1]
        %v535 = vsel %vm451, 0, %v534
        %536 = vst [vmem:[%s464 + $0x9c] sm:$0x1] %v535
        %v537 = vld [vmem:[%s464 + $0xb0] sm:$0x1]
        %v538 = vsel %vm451, 0, %v537
        %539 = vst [vmem:[%s464 + $0xb0] sm:$0x1] %v538
        %v540 = vld [vmem:[%s464 + $0xc4] sm:$0x1]
        %v541 = vsel %vm451, 0, %v540
        %542 = vst [vmem:[%s464 + $0xc4] sm:$0x1] %v541
        %v543 = vld [vmem:[%s464 + $0xd8] sm:$0x1]
        %v544 = vsel %vm451, 0, %v543
        %545 = vst [vmem:[%s464 + $0xd8] sm:$0x1] %v544
        %v546 = vld [vmem:[%s464 + $0xec] sm:$0x1]
        %v547 = vsel %vm451, 0, %v546
        %548 = vst [vmem:[%s464 + $0xec] sm:$0x1] %v547
        %v549 = vld [vmem:[%s464 + $0x100] sm:$0x1]
        %v550 = vsel %vm451, 0, %v549
        %551 = vst [vmem:[%s464 + $0x100] sm:$0x1] %v550
        %v552 = vld [vmem:[%s464 + $0x114] sm:$0x1]
        %v553 = vsel %vm451, 0, %v552
        %554 = vst [vmem:[%s464 + $0x114] sm:$0x1] %v553
        %v555 = vld [vmem:[%s464 + $0x128] sm:$0x1]
        %v556 = vsel %vm451, 0, %v555
        %557 = vst [vmem:[%s464 + $0x128] sm:$0x1] %v556
        %v558 = vld [vmem:[%s464 + $0x13c] sm:$0x1]
        %v559 = vsel %vm451, 0, %v558
        %560 = vst [vmem:[%s464 + $0x13c] sm:$0x1] %v559
        %v561 = vld [vmem:[%s438] sm:$0xf]
        %v562 = vld [vmem:[%s438 + $0x4] sm:$0xf]
        %v563 = vld [vmem:[%s438 + $0x8] sm:$0xf]
        %v564 = vld [vmem:[%s438 + $0xc] sm:$0xf]
        %v565 = vld [vmem:[%s438 + $0x10] sm:$0xf]
        %v566 = vld [vmem:[%s438 + $0x14] sm:$0xf]
        %v567 = vld [vmem:[%s438 + $0x18] sm:$0xf]
        %v568 = vld [vmem:[%s438 + $0x1c] sm:$0xf]
        %v569 = vld [vmem:[%s438 + $0x20] sm:$0xf]
        %v570 = vld [vmem:[%s438 + $0x24] sm:$0xf]
        %v571 = vld [vmem:[%s438 + $0x28] sm:$0xf]
        %v572 = vld [vmem:[%s438 + $0x2c] sm:$0xf]
        %v573 = vld [vmem:[%s438 + $0x30] sm:$0xf]
        %v574 = vld [vmem:[%s438 + $0x34] sm:$0xf]
        %v575 = vld [vmem:[%s438 + $0x38] sm:$0xf]
        %v576 = vld [vmem:[%s438 + $0x3c] sm:$0xf]
        %v577 = vld [vmem:[%s438 + $0x40] sm:$0xf]
        %v578 = vld [vmem:[%s438 + $0x44] sm:$0xf]
        %v579 = vld [vmem:[%s438 + $0x48] sm:$0xf]
        %v580 = vld [vmem:[%s438 + $0x4c] sm:$0xf]
        %v581 = vld [vmem:[%s438 + $0x50] sm:$0xf]
        %v582 = vld [vmem:[%s438 + $0x54] sm:$0xf]
        %v583 = vld [vmem:[%s438 + $0x58] sm:$0xf]
        %v584 = vld [vmem:[%s438 + $0x5c] sm:$0xf]
        %v585 = vld [vmem:[%s438 + $0x60] sm:$0xf]
        %v586 = vld [vmem:[%s438 + $0x64] sm:$0xf]
        %v587 = vld [vmem:[%s438 + $0x68] sm:$0xf]
        %v588 = vld [vmem:[%s438 + $0x6c] sm:$0xf]
        %v589 = vld [vmem:[%s438 + $0x70] sm:$0xf]
        %v590 = vld [vmem:[%s438 + $0x74] sm:$0xf]
        %v591 = vld [vmem:[%s438 + $0x78] sm:$0xf]
        %v592 = vld [vmem:[%s438 + $0x7c] sm:$0xf]
        %v593 = vld [vmem:[%s1] sm:$0x3]
        %v626 = vunpack.c.l.b16 %v561
        %v627 = vunpack.c.l.b16 %v562
        %v628 = vunpack.c.l.b16 %v563
        %v629 = vunpack.c.l.b16 %v564
        %v630 = vunpack.c.l.b16 %v565
        %v631 = vunpack.c.l.b16 %v566
        %v632 = vunpack.c.l.b16 %v567
        %v633 = vunpack.c.l.b16 %v568
        %v634 = vunpack.c.l.b16 %v569
        %v635 = vunpack.c.l.b16 %v570
        %v636 = vunpack.c.l.b16 %v571
        %v637 = vunpack.c.l.b16 %v572
        %v638 = vunpack.c.l.b16 %v573
        %v639 = vunpack.c.l.b16 %v574
        %v640 = vunpack.c.l.b16 %v575
        %v641 = vunpack.c.l.b16 %v576
        %v642 = vunpack.c.l.b16 %v577
        %v643 = vunpack.c.l.b16 %v578
        %v644 = vunpack.c.l.b16 %v579
        %v645 = vunpack.c.l.b16 %v580
        %v646 = vunpack.c.l.b16 %v581
        %v647 = vunpack.c.l.b16 %v582
        %v648 = vunpack.c.l.b16 %v583
        %v649 = vunpack.c.l.b16 %v584
        %v650 = vunpack.c.l.b16 %v585
        %v651 = vunpack.c.l.b16 %v586
        %v652 = vunpack.c.l.b16 %v587
        %v653 = vunpack.c.l.b16 %v588
        %v654 = vunpack.c.l.b16 %v589
        %v655 = vunpack.c.l.b16 %v590
        %v656 = vunpack.c.l.b16 %v591
        %v657 = vunpack.c.l.b16 %v592
        %v658 = vpack.c.b16 %v627, %v626
        %v659 = vpack.c.b16 %v629, %v628
        %v660 = vpack.c.b16 %v631, %v630
        %v661 = vpack.c.b16 %v633, %v632
        %v662 = vpack.c.b16 %v635, %v634
        %v663 = vpack.c.b16 %v637, %v636
        %v664 = vpack.c.b16 %v639, %v638
        %v665 = vpack.c.b16 %v641, %v640
        %v666 = vpack.c.b16 %v643, %v642
        %v667 = vpack.c.b16 %v645, %v644
        %v668 = vpack.c.b16 %v647, %v646
        %v669 = vpack.c.b16 %v649, %v648
        %v670 = vpack.c.b16 %v651, %v650
        %v671 = vpack.c.b16 %v653, %v652
        %v672 = vpack.c.b16 %v655, %v654
        %v673 = vpack.c.b16 %v657, %v656
        %vm674 = vcmask 31744
        %v676 = vsel %vm674, %v658, 0
        %v679 = vsel %vm674, %v659, 0
        %v682 = vsel %vm674, %v660, 0
        %v685 = vsel %vm674, %v661, 0
        %v688 = vsel %vm674, %v662, 0
        %v691 = vsel %vm674, %v663, 0
        %v694 = vsel %vm674, %v664, 0
        %v697 = vsel %vm674, %v665, 0
        %v700 = vsel %vm674, %v666, 0
        %v703 = vsel %vm674, %v667, 0
        %v706 = vsel %vm674, %v668, 0
        %v709 = vsel %vm674, %v669, 0
        %v712 = vsel %vm674, %v670, 0
        %v715 = vsel %vm674, %v671, 0
        %v718 = vsel %vm674, %v672, 0
        %v721 = vsel %vm674, %v673, 0
        %vm723 = vcmask 1041408
        %v725 = vsel %vm723, %v593, 0
        %727 = vmatprep.subr.bf16.mxu0 0
        %728 = vmatpush1.bf16.msra.mxu0 %v725
        %729 = vmatprep.subr.bf16.mxu0 0
        %730 = vmatpush1.bf16.msra.mxu0 0
        %731 = vmatprep.subr.bf16.mxu0 0
        %732 = vmatpush1.bf16.msra.mxu0 0
        %733 = vmatprep.subr.bf16.mxu0 0
        %734 = vmatpush1.bf16.msra.mxu0 0
        %735 = vmatprep.subr.bf16.mxu0 0
        %736 = vmatpush1.bf16.msra.mxu0 0
        %737 = vmatprep.subr.bf16.mxu0 0
        %738 = vmatpush1.bf16.msra.mxu0 0
        %739 = vmatprep.subr.bf16.mxu0 0
        %740 = vmatpush1.bf16.msra.mxu0 0
        %741 = vmatprep.subr.bf16.mxu0 0
        %742 = vmatpush1.bf16.msra.mxu0 0
        %743 = vmatprep.subr.bf16.mxu0 0
        %744 = vmatpush1.bf16.msra.mxu0 0
        %745 = vmatprep.subr.bf16.mxu0 0
        %746 = vmatpush1.bf16.msra.mxu0 0
        %747 = vmatprep.subr.bf16.mxu0 0
        %748 = vmatpush1.bf16.msra.mxu0 0
        %749 = vmatprep.subr.bf16.mxu0 0
        %750 = vmatpush1.bf16.msra.mxu0 0
        %751 = vmatprep.subr.bf16.mxu0 0
        %752 = vmatpush1.bf16.msra.mxu0 0
        %753 = vmatprep.subr.bf16.mxu0 0
        %754 = vmatpush1.bf16.msra.mxu0 0
        %755 = vmatprep.subr.bf16.mxu0 0
        %756 = vmatpush1.bf16.msra.mxu0 0
        %757 = vmatprep.subr.bf16.mxu0 0
        %758 = vmatpush1.bf16.msra.mxu0 0
        %759 = vmatprep.mubr.bf16.mxu0 0
        %760 = vmatmul.mubr.bf16.gmra.mrb[0].mxu0 %v676
        %v761 = vpop.f32.mrb[0].mxu0
        %v762 = vadd.f32 0.0, %v761
        %v763 = vpop.f32.mrb[0].mxu0
        %v764 = vpop.f32.mrb[0].mxu0
        %v765 = vadd.f32 0.0, %v764
        %v766 = vpop.f32.mrb[0].mxu0
        %767 = vmatprep.mubr.bf16.mxu0 0
        %768 = vmatmul.mubr.bf16.gmra.mrb[0].mxu0 %v679
        %v769 = vpop.f32.mrb[0].mxu0
        %v770 = vadd.f32 0.0, %v769
        %v771 = vpop.f32.mrb[0].mxu0
        %v772 = vpop.f32.mrb[0].mxu0
        %v773 = vadd.f32 0.0, %v772
        %v774 = vpop.f32.mrb[0].mxu0
        %775 = vmatprep.mubr.bf16.mxu0 0
        %776 = vmatmul.mubr.bf16.gmra.mrb[0].mxu0 %v682
        %v777 = vpop.f32.mrb[0].mxu0
        %v778 = vadd.f32 0.0, %v777
        %v779 = vpop.f32.mrb[0].mxu0
        %v780 = vpop.f32.mrb[0].mxu0
        %v781 = vadd.f32 0.0, %v780
        %v782 = vpop.f32.mrb[0].mxu0
        %783 = vmatprep.mubr.bf16.mxu0 0
        %784 = vmatmul.mubr.bf16.gmra.mrb[0].mxu0 %v685
        %v785 = vpop.f32.mrb[0].mxu0
        %v786 = vadd.f32 0.0, %v785
        %v787 = vpop.f32.mrb[0].mxu0
        %v788 = vpop.f32.mrb[0].mxu0
        %v789 = vadd.f32 0.0, %v788
        %v790 = vpop.f32.mrb[0].mxu0
        %791 = vmatprep.mubr.bf16.mxu0 0
        %792 = vmatmul.mubr.bf16.gmra.mrb[0].mxu0 %v688
        %v793 = vpop.f32.mrb[0].mxu0
        %v794 = vadd.f32 0.0, %v793
        %v795 = vpop.f32.mrb[0].mxu0
        %v796 = vpop.f32.mrb[0].mxu0
        %v797 = vadd.f32 0.0, %v796
        %v798 = vpop.f32.mrb[0].mxu0
        %799 = vmatprep.mubr.bf16.mxu0 0
        %800 = vmatmul.mubr.bf16.gmra.mrb[0].mxu0 %v691
        %v801 = vpop.f32.mrb[0].mxu0
        %v802 = vadd.f32 0.0, %v801
        %v803 = vpop.f32.mrb[0].mxu0
        %v804 = vpop.f32.mrb[0].mxu0
        %v805 = vadd.f32 0.0, %v804
        %v806 = vpop.f32.mrb[0].mxu0
        %807 = vmatprep.mubr.bf16.mxu0 0
        %808 = vmatmul.mubr.bf16.gmra.mrb[0].mxu0 %v694
        %v809 = vpop.f32.mrb[0].mxu0
        %v810 = vadd.f32 0.0, %v809
        %v811 = vpop.f32.mrb[0].mxu0
        %v812 = vpop.f32.mrb[0].mxu0
        %v813 = vadd.f32 0.0, %v812
        %v814 = vpop.f32.mrb[0].mxu0
        %815 = vmatprep.mubr.bf16.mxu0 0
        %816 = vmatmul.mubr.bf16.gmra.mrb[0].mxu0 %v697
        %v817 = vpop.f32.mrb[0].mxu0
        %v818 = vadd.f32 0.0, %v817
        %v819 = vpop.f32.mrb[0].mxu0
        %v820 = vpop.f32.mrb[0].mxu0
        %v821 = vadd.f32 0.0, %v820
        %v822 = vpop.f32.mrb[0].mxu0
        %823 = vmatprep.mubr.bf16.mxu0 0
        %824 = vmatmul.mubr.bf16.gmra.mrb[0].mxu0 %v700
        %v825 = vpop.f32.mrb[0].mxu0
        %v826 = vadd.f32 0.0, %v825
        %v827 = vpop.f32.mrb[0].mxu0
        %v828 = vpop.f32.mrb[0].mxu0
        %v829 = vadd.f32 0.0, %v828
        %v830 = vpop.f32.mrb[0].mxu0
        %831 = vmatprep.mubr.bf16.mxu0 0
        %832 = vmatmul.mubr.bf16.gmra.mrb[0].mxu0 %v703
        %v833 = vpop.f32.mrb[0].mxu0
        %v834 = vadd.f32 0.0, %v833
        %v835 = vpop.f32.mrb[0].mxu0
        %v836 = vpop.f32.mrb[0].mxu0
        %v837 = vadd.f32 0.0, %v836
        %v838 = vpop.f32.mrb[0].mxu0
        %839 = vmatprep.mubr.bf16.mxu0 0
        %840 = vmatmul.mubr.bf16.gmra.mrb[0].mxu0 %v706
        %v841 = vpop.f32.mrb[0].mxu0
        %v842 = vadd.f32 0.0, %v841
        %v843 = vpop.f32.mrb[0].mxu0
        %v844 = vpop.f32.mrb[0].mxu0
        %v845 = vadd.f32 0.0, %v844
        %v846 = vpop.f32.mrb[0].mxu0
        %847 = vmatprep.mubr.bf16.mxu0 0
        %848 = vmatmul.mubr.bf16.gmra.mrb[0].mxu0 %v709
        %v849 = vpop.f32.mrb[0].mxu0
        %v850 = vadd.f32 0.0, %v849
        %v851 = vpop.f32.mrb[0].mxu0
        %v852 = vpop.f32.mrb[0].mxu0
        %v853 = vadd.f32 0.0, %v852
        %v854 = vpop.f32.mrb[0].mxu0
        %855 = vmatprep.mubr.bf16.mxu0 0
        %856 = vmatmul.mubr.bf16.gmra.mrb[0].mxu0 %v712
        %v857 = vpop.f32.mrb[0].mxu0
        %v858 = vadd.f32 0.0, %v857
        %v859 = vpop.f32.mrb[0].mxu0
        %v860 = vpop.f32.mrb[0].mxu0
        %v861 = vadd.f32 0.0, %v860
        %v862 = vpop.f32.mrb[0].mxu0
        %863 = vmatprep.mubr.bf16.mxu0 0
        %864 = vmatmul.mubr.bf16.gmra.mrb[0].mxu0 %v715
        %v865 = vpop.f32.mrb[0].mxu0
        %v866 = vadd.f32 0.0, %v865
        %v867 = vpop.f32.mrb[0].mxu0
        %v868 = vpop.f32.mrb[0].mxu0
        %v869 = vadd.f32 0.0, %v868
        %v870 = vpop.f32.mrb[0].mxu0
        %871 = vmatprep.mubr.bf16.mxu0 0
        %872 = vmatmul.mubr.bf16.gmra.mrb[0].mxu0 %v718
        %v873 = vpop.f32.mrb[0].mxu0
        %v874 = vadd.f32 0.0, %v873
        %v875 = vpop.f32.mrb[0].mxu0
        %v876 = vpop.f32.mrb[0].mxu0
        %v877 = vadd.f32 0.0, %v876
        %v878 = vpop.f32.mrb[0].mxu0
        %879 = vmatprep.mubr.bf16.mxu0 0
        %880 = vmatmul.mubr.bf16.gmra.mrb[0].mxu0 %v721
        %v881 = vpop.f32.mrb[0].mxu0
        %v882 = vadd.f32 0.0, %v881
        %v883 = vpop.f32.mrb[0].mxu0
        %v884 = vpop.f32.mrb[0].mxu0
        %v885 = vadd.f32 0.0, %v884
        %v886 = vpop.f32.mrb[0].mxu0
        %887 = vdwg.mxu0
        %v888 = vld [vmem:[%s2] sm:$0x1]
        %v890 = vlaneseq
        %v891 = vshrl.u32 %v890, 7
        %v892 = vsub.s32 0, %v891
        %v893 = vrot.slane %v888, %v892
        %v895 = vmul.f32 %v762, %v893
        %v896 = vmul.f32 %v765, %v893
        %v897 = vmul.f32 %v770, %v893
        %v898 = vmul.f32 %v773, %v893
        %v899 = vmul.f32 %v778, %v893
        %v900 = vmul.f32 %v781, %v893
        %v901 = vmul.f32 %v786, %v893
        %v902 = vmul.f32 %v789, %v893
        %v903 = vmul.f32 %v794, %v893
        %v904 = vmul.f32 %v797, %v893
        %v905 = vmul.f32 %v802, %v893
        %v906 = vmul.f32 %v805, %v893
        %v907 = vmul.f32 %v810, %v893
        %v908 = vmul.f32 %v813, %v893
        %v909 = vmul.f32 %v818, %v893
        %v910 = vmul.f32 %v821, %v893
        %v911 = vmul.f32 %v826, %v893
        %v912 = vmul.f32 %v829, %v893
        %v913 = vmul.f32 %v834, %v893
        %v914 = vmul.f32 %v837, %v893
        %v915 = vmul.f32 %v842, %v893
        %v916 = vmul.f32 %v845, %v893
        %v917 = vmul.f32 %v850, %v893
        %v918 = vmul.f32 %v853, %v893
        %v919 = vmul.f32 %v858, %v893
        %v920 = vmul.f32 %v861, %v893
        %v921 = vmul.f32 %v866, %v893
        %v922 = vmul.f32 %v869, %v893
        %v923 = vmul.f32 %v874, %v893
        %v924 = vmul.f32 %v877, %v893
        %v925 = vmul.f32 %v882, %v893
        %v926 = vmul.f32 %v885, %v893
        %v927 = vld [vmem:[%s3] sm:$0x1]
        %v929 = vlaneseq
        %v930 = vshrl.u32 %v929, 7
        %v931 = vsub.s32 0, %v930
        %v932 = vrot.slane %v927, %v931
        %v934 = vadd.f32 %v895, %v932
        %v935 = vadd.f32 %v896, %v932
        %v936 = vadd.f32 %v897, %v932
        %v937 = vadd.f32 %v898, %v932
        %v938 = vadd.f32 %v899, %v932
        %v939 = vadd.f32 %v900, %v932
        %v940 = vadd.f32 %v901, %v932
        %v941 = vadd.f32 %v902, %v932
        %v942 = vadd.f32 %v903, %v932
        %v943 = vadd.f32 %v904, %v932
        %v944 = vadd.f32 %v905, %v932
        %v945 = vadd.f32 %v906, %v932
        %v946 = vadd.f32 %v907, %v932
        %v947 = vadd.f32 %v908, %v932
        %v948 = vadd.f32 %v909, %v932
        %v949 = vadd.f32 %v910, %v932
        %v950 = vadd.f32 %v911, %v932
        %v951 = vadd.f32 %v912, %v932
        %v952 = vadd.f32 %v913, %v932
        %v953 = vadd.f32 %v914, %v932
        %v954 = vadd.f32 %v915, %v932
        %v955 = vadd.f32 %v916, %v932
        %v956 = vadd.f32 %v917, %v932
        %v957 = vadd.f32 %v918, %v932
        %v958 = vadd.f32 %v919, %v932
        %v959 = vadd.f32 %v920, %v932
        %v960 = vadd.f32 %v921, %v932
        %v961 = vadd.f32 %v922, %v932
        %v962 = vadd.f32 %v923, %v932
        %v963 = vadd.f32 %v924, %v932
        %v964 = vadd.f32 %v925, %v932
        %v965 = vadd.f32 %v926, %v932
        %v966 = vmax.f32 %v934, 0.0
        %v967 = vmax.f32 %v935, 0.0
        %v968 = vmax.f32 %v936, 0.0
        %v969 = vmax.f32 %v937, 0.0
        %v970 = vmax.f32 %v938, 0.0
        %v971 = vmax.f32 %v939, 0.0
        %v972 = vmax.f32 %v940, 0.0
        %v973 = vmax.f32 %v941, 0.0
        %v974 = vmax.f32 %v942, 0.0
        %v975 = vmax.f32 %v943, 0.0
        %v976 = vmax.f32 %v944, 0.0
        %v977 = vmax.f32 %v945, 0.0
        %v978 = vmax.f32 %v946, 0.0
        %v979 = vmax.f32 %v947, 0.0
        %v980 = vmax.f32 %v948, 0.0
        %v981 = vmax.f32 %v949, 0.0
        %v982 = vmax.f32 %v950, 0.0
        %v983 = vmax.f32 %v951, 0.0
        %v984 = vmax.f32 %v952, 0.0
        %v985 = vmax.f32 %v953, 0.0
        %v986 = vmax.f32 %v954, 0.0
        %v987 = vmax.f32 %v955, 0.0
        %v988 = vmax.f32 %v956, 0.0
        %v989 = vmax.f32 %v957, 0.0
        %v990 = vmax.f32 %v958, 0.0
        %v991 = vmax.f32 %v959, 0.0
        %v992 = vmax.f32 %v960, 0.0
        %v993 = vmax.f32 %v961, 0.0
        %v994 = vmax.f32 %v962, 0.0
        %v995 = vmax.f32 %v963, 0.0
        %v996 = vmax.f32 %v964, 0.0
        %v997 = vmax.f32 %v965, 0.0
        %v998 = vpack.c.bf16 %v967, %v966
        %v999 = vpack.c.bf16 %v969, %v968
        %v1000 = vpack.c.bf16 %v971, %v970
        %v1001 = vpack.c.bf16 %v973, %v972
        %v1002 = vpack.c.bf16 %v975, %v974
        %v1003 = vpack.c.bf16 %v977, %v976
        %v1004 = vpack.c.bf16 %v979, %v978
        %v1005 = vpack.c.bf16 %v981, %v980
        %v1006 = vpack.c.bf16 %v983, %v982
        %v1007 = vpack.c.bf16 %v985, %v984
        %v1008 = vpack.c.bf16 %v987, %v986
        %v1009 = vpack.c.bf16 %v989, %v988
        %v1010 = vpack.c.bf16 %v991, %v990
        %v1011 = vpack.c.bf16 %v993, %v992
        %v1012 = vpack.c.bf16 %v995, %v994
        %v1013 = vpack.c.bf16 %v997, %v996
        %v1030 = vunpack.c.l.b16 %v998
        %v1031 = vunpack.c.h.b16 %v998
        %v1032 = vunpack.c.l.b16 %v999
        %v1033 = vunpack.c.h.b16 %v999
        %v1034 = vunpack.c.l.b16 %v1000
        %v1035 = vunpack.c.h.b16 %v1000
        %v1036 = vunpack.c.l.b16 %v1001
        %v1037 = vunpack.c.h.b16 %v1001
        %v1038 = vunpack.c.l.b16 %v1002
        %v1039 = vunpack.c.h.b16 %v1002
        %v1040 = vunpack.c.l.b16 %v1003
        %v1041 = vunpack.c.h.b16 %v1003
        %v1042 = vunpack.c.l.b16 %v1004
        %v1043 = vunpack.c.h.b16 %v1004
        %v1044 = vunpack.c.l.b16 %v1005
        %v1045 = vunpack.c.h.b16 %v1005
        %v1046 = vunpack.c.l.b16 %v1006
        %v1047 = vunpack.c.h.b16 %v1006
        %v1048 = vunpack.c.l.b16 %v1007
        %v1049 = vunpack.c.h.b16 %v1007
        %v1050 = vunpack.c.l.b16 %v1008
        %v1051 = vunpack.c.h.b16 %v1008
        %v1052 = vunpack.c.l.b16 %v1009
        %v1053 = vunpack.c.h.b16 %v1009
        %v1054 = vunpack.c.l.b16 %v1010
        %v1055 = vunpack.c.h.b16 %v1010
        %v1056 = vunpack.c.l.b16 %v1011
        %v1057 = vunpack.c.h.b16 %v1011
        %v1058 = vunpack.c.l.b16 %v1012
        %v1059 = vunpack.c.h.b16 %v1012
        %v1060 = vunpack.c.l.b16 %v1013
        %v1061 = vunpack.c.h.b16 %v1013
        %v1062 = vpack.c.b16 %v1030, %v1030
        %v1063 = vpack.c.b16 %v1031, %v1031
        %v1064 = vpack.c.b16 %v1032, %v1032
        %v1065 = vpack.c.b16 %v1033, %v1033
        %v1066 = vpack.c.b16 %v1034, %v1034
        %v1067 = vpack.c.b16 %v1035, %v1035
        %v1068 = vpack.c.b16 %v1036, %v1036
        %v1069 = vpack.c.b16 %v1037, %v1037
        %v1070 = vpack.c.b16 %v1038, %v1038
        %v1071 = vpack.c.b16 %v1039, %v1039
        %v1072 = vpack.c.b16 %v1040, %v1040
        %v1073 = vpack.c.b16 %v1041, %v1041
        %v1074 = vpack.c.b16 %v1042, %v1042
        %v1075 = vpack.c.b16 %v1043, %v1043
        %v1076 = vpack.c.b16 %v1044, %v1044
        %v1077 = vpack.c.b16 %v1045, %v1045
        %v1078 = vpack.c.b16 %v1046, %v1046
        %v1079 = vpack.c.b16 %v1047, %v1047
        %v1080 = vpack.c.b16 %v1048, %v1048
        %v1081 = vpack.c.b16 %v1049, %v1049
        %v1082 = vpack.c.b16 %v1050, %v1050
        %v1083 = vpack.c.b16 %v1051, %v1051
        %v1084 = vpack.c.b16 %v1052, %v1052
        %v1085 = vpack.c.b16 %v1053, %v1053
        %v1086 = vpack.c.b16 %v1054, %v1054
        %v1087 = vpack.c.b16 %v1055, %v1055
        %v1088 = vpack.c.b16 %v1056, %v1056
        %v1089 = vpack.c.b16 %v1057, %v1057
        %v1090 = vpack.c.b16 %v1058, %v1058
        %v1091 = vpack.c.b16 %v1059, %v1059
        %v1092 = vpack.c.b16 %v1060, %v1060
        %v1093 = vpack.c.b16 %v1061, %v1061
        %1126 = vst.msk [vmem:[%s464 + $0x8] sm:$0xf] %vm446, %v1062
        %1127 = vst.msk [vmem:[%s464 + $0xc] sm:$0xf] %vm446, %v1063
        %1128 = vst.msk [vmem:[%s464 + $0x1c] sm:$0xf] %vm446, %v1064
        %1129 = vst.msk [vmem:[%s464 + $0x20] sm:$0xf] %vm446, %v1065
        %1130 = vst.msk [vmem:[%s464 + $0x30] sm:$0xf] %vm446, %v1066
        %1131 = vst.msk [vmem:[%s464 + $0x34] sm:$0xf] %vm446, %v1067
        %1132 = vst.msk [vmem:[%s464 + $0x44] sm:$0xf] %vm446, %v1068
        %1133 = vst.msk [vmem:[%s464 + $0x48] sm:$0xf] %vm446, %v1069
        %1134 = vst.msk [vmem:[%s464 + $0x58] sm:$0xf] %vm446, %v1070
        %1135 = vst.msk [vmem:[%s464 + $0x5c] sm:$0xf] %vm446, %v1071
        %1136 = vst.msk [vmem:[%s464 + $0x6c] sm:$0xf] %vm446, %v1072
        %1137 = vst.msk [vmem:[%s464 + $0x70] sm:$0xf] %vm446, %v1073
        %1138 = vst.msk [vmem:[%s464 + $0x80] sm:$0xf] %vm446, %v1074
        %1139 = vst.msk [vmem:[%s464 + $0x84] sm:$0xf] %vm446, %v1075
        %1140 = vst.msk [vmem:[%s464 + $0x94] sm:$0xf] %vm446, %v1076
        %1141 = vst.msk [vmem:[%s464 + $0x98] sm:$0xf] %vm446, %v1077
        %1142 = vst.msk [vmem:[%s464 + $0xa8] sm:$0xf] %vm446, %v1078
        %1143 = vst.msk [vmem:[%s464 + $0xac] sm:$0xf] %vm446, %v1079
        %1144 = vst.msk [vmem:[%s464 + $0xbc] sm:$0xf] %vm446, %v1080
        %1145 = vst.msk [vmem:[%s464 + $0xc0] sm:$0xf] %vm446, %v1081
        %1146 = vst.msk [vmem:[%s464 + $0xd0] sm:$0xf] %vm446, %v1082
        %1147 = vst.msk [vmem:[%s464 + $0xd4] sm:$0xf] %vm446, %v1083
        %1148 = vst.msk [vmem:[%s464 + $0xe4] sm:$0xf] %vm446, %v1084
        %1149 = vst.msk [vmem:[%s464 + $0xe8] sm:$0xf] %vm446, %v1085
        %1150 = vst.msk [vmem:[%s464 + $0xf8] sm:$0xf] %vm446, %v1086
        %1151 = vst.msk [vmem:[%s464 + $0xfc] sm:$0xf] %vm446, %v1087
        %1152 = vst.msk [vmem:[%s464 + $0x10c] sm:$0xf] %vm446, %v1088
        %1153 = vst.msk [vmem:[%s464 + $0x110] sm:$0xf] %vm446, %v1089
        %1154 = vst.msk [vmem:[%s464 + $0x120] sm:$0xf] %vm446, %v1090
        %1155 = vst.msk [vmem:[%s464 + $0x124] sm:$0xf] %vm446, %v1091
        %1156 = vst.msk [vmem:[%s464 + $0x134] sm:$0xf] %vm446, %v1092
        %1157 = vst.msk [vmem:[%s464 + $0x138] sm:$0xf] %vm446, %v1093
        %v1158 = vld [vmem:[#allocation2 + $0x4] sm:$0x8]
        %v1159 = vld [vmem:[#allocation2 + $0x8] sm:$0xf]
        %v1160 = vld [vmem:[#allocation2 + $0xc] sm:$0xf]
        %v1161 = vld [vmem:[#allocation2 + $0x18] sm:$0x8]
        %v1162 = vld [vmem:[#allocation2 + $0x1c] sm:$0xf]
        %v1163 = vld [vmem:[#allocation2 + $0x20] sm:$0xf]
        %v1164 = vld [vmem:[#allocation2 + $0x2c] sm:$0x8]
        %v1165 = vld [vmem:[#allocation2 + $0x30] sm:$0xf]
        %v1166 = vld [vmem:[#allocation2 + $0x34] sm:$0xf]
        %v1167 = vld [vmem:[#allocation2 + $0x40] sm:$0x8]
        %v1168 = vld [vmem:[#allocation2 + $0x44] sm:$0xf]
        %v1169 = vld [vmem:[#allocation2 + $0x48] sm:$0xf]
        %v1170 = vld [vmem:[#allocation2 + $0x54] sm:$0x8]
        %v1171 = vld [vmem:[#allocation2 + $0x58] sm:$0xf]
        %v1172 = vld [vmem:[#allocation2 + $0x5c] sm:$0xf]
        %v1173 = vld [vmem:[#allocation2 + $0x68] sm:$0x8]
        %v1174 = vld [vmem:[#allocation2 + $0x6c] sm:$0xf]
        %v1175 = vld [vmem:[#allocation2 + $0x70] sm:$0xf]
        %v1176 = vld [vmem:[#allocation2 + $0x7c] sm:$0x8]
        %v1177 = vld [vmem:[#allocation2 + $0x80] sm:$0xf]
        %v1178 = vld [vmem:[#allocation2 + $0x84] sm:$0xf]
        %v1179 = vld [vmem:[#allocation2 + $0x90] sm:$0x8]
        %v1180 = vld [vmem:[#allocation2 + $0x94] sm:$0xf]
        %v1181 = vld [vmem:[#allocation2 + $0x98] sm:$0xf]
        %v1182 = vld [vmem:[#allocation2 + $0xa4] sm:$0x8]
        %v1183 = vld [vmem:[#allocation2 + $0xa8] sm:$0xf]
        %v1184 = vld [vmem:[#allocation2 + $0xac] sm:$0xf]
        %v1185 = vld [vmem:[#allocation2 + $0xb8] sm:$0x8]
        %v1186 = vld [vmem:[#allocation2 + $0xbc] sm:$0xf]
        %v1187 = vld [vmem:[#allocation2 + $0xc0] sm:$0xf]
        %v1188 = vld [vmem:[#allocation2 + $0xcc] sm:$0x8]
        %v1189 = vld [vmem:[#allocation2 + $0xd0] sm:$0xf]
        %v1190 = vld [vmem:[#allocation2 + $0xd4] sm:$0xf]
        %v1191 = vld [vmem:[#allocation2 + $0xe0] sm:$0x8]
        %v1192 = vld [vmem:[#allocation2 + $0xe4] sm:$0xf]
        %v1193 = vld [vmem:[#allocation2 + $0xe8] sm:$0xf]
        %v1194 = vld [vmem:[#allocation2 + $0xf4] sm:$0x8]
        %v1195 = vld [vmem:[#allocation2 + $0xf8] sm:$0xf]
        %v1196 = vld [vmem:[#allocation2 + $0xfc] sm:$0xf]
        %v1197 = vld [vmem:[#allocation2 + $0x108] sm:$0x8]
        %v1198 = vld [vmem:[#allocation2 + $0x10c] sm:$0xf]
        %v1199 = vld [vmem:[#allocation2 + $0x110] sm:$0xf]
        %v1200 = vld [vmem:[#allocation2 + $0x11c] sm:$0x8]
        %v1201 = vld [vmem:[#allocation2 + $0x120] sm:$0xf]
        %v1202 = vld [vmem:[#allocation2 + $0x124] sm:$0xf]
        %v1203 = vld [vmem:[#allocation2 + $0x130] sm:$0x8]
        %v1204 = vld [vmem:[#allocation2 + $0x134] sm:$0xf]
        %v1205 = vld [vmem:[#allocation2 + $0x138] sm:$0xf]
        %v1206 = vld [vmem:[#allocation2 + $0x10] sm:$0x1]
        %v1207 = vld [vmem:[#allocation2 + $0x24] sm:$0x1]
        %v1208 = vld [vmem:[#allocation2 + $0x38] sm:$0x1]
        %v1209 = vld [vmem:[#allocation2 + $0x4c] sm:$0x1]
        %v1210 = vld [vmem:[#allocation2 + $0x60] sm:$0x1]
        %v1211 = vld [vmem:[#allocation2 + $0x74] sm:$0x1]
        %v1212 = vld [vmem:[#allocation2 + $0x88] sm:$0x1]
        %v1213 = vld [vmem:[#allocation2 + $0x9c] sm:$0x1]
        %v1214 = vld [vmem:[#allocation2 + $0xb0] sm:$0x1]
        %v1215 = vld [vmem:[#allocation2 + $0xc4] sm:$0x1]
        %v1216 = vld [vmem:[#allocation2 + $0xd8] sm:$0x1]
        %v1217 = vld [vmem:[#allocation2 + $0xec] sm:$0x1]
        %v1218 = vld [vmem:[#allocation2 + $0x100] sm:$0x1]
        %v1219 = vld [vmem:[#allocation2 + $0x114] sm:$0x1]
        %v1220 = vld [vmem:[#allocation2 + $0x128] sm:$0x1]
        %v1221 = vld [vmem:[#allocation2 + $0x13c] sm:$0x1]
        %v1222 = vld [vmem:[%s464 + $0x4] sm:$0x8]
        %v1223 = vld [vmem:[%s464 + $0x8] sm:$0xf]
        %v1224 = vld [vmem:[%s464 + $0xc] sm:$0xf]
        %v1225 = vld [vmem:[%s464 + $0x18] sm:$0x8]
        %v1226 = vld [vmem:[%s464 + $0x1c] sm:$0xf]
        %v1227 = vld [vmem:[%s464 + $0x20] sm:$0xf]
        %v1228 = vld [vmem:[%s464 + $0x2c] sm:$0x8]
        %v1229 = vld [vmem:[%s464 + $0x30] sm:$0xf]
        %v1230 = vld [vmem:[%s464 + $0x34] sm:$0xf]
        %v1231 = vld [vmem:[%s464 + $0x40] sm:$0x8]
        %v1232 = vld [vmem:[%s464 + $0x44] sm:$0xf]
        %v1233 = vld [vmem:[%s464 + $0x48] sm:$0xf]
        %v1234 = vld [vmem:[%s464 + $0x54] sm:$0x8]
        %v1235 = vld [vmem:[%s464 + $0x58] sm:$0xf]
        %v1236 = vld [vmem:[%s464 + $0x5c] sm:$0xf]
        %v1237 = vld [vmem:[%s464 + $0x68] sm:$0x8]
        %v1238 = vld [vmem:[%s464 + $0x6c] sm:$0xf]
        %v1239 = vld [vmem:[%s464 + $0x70] sm:$0xf]
        %v1240 = vld [vmem:[%s464 + $0x7c] sm:$0x8]
        %v1241 = vld [vmem:[%s464 + $0x80] sm:$0xf]
        %v1242 = vld [vmem:[%s464 + $0x84] sm:$0xf]
        %v1243 = vld [vmem:[%s464 + $0x90] sm:$0x8]
        %v1244 = vld [vmem:[%s464 + $0x94] sm:$0xf]
        %v1245 = vld [vmem:[%s464 + $0x98] sm:$0xf]
        %v1246 = vld [vmem:[%s464 + $0xa4] sm:$0x8]
        %v1247 = vld [vmem:[%s464 + $0xa8] sm:$0xf]
        %v1248 = vld [vmem:[%s464 + $0xac] sm:$0xf]
        %v1249 = vld [vmem:[%s464 + $0xb8] sm:$0x8]
        %v1250 = vld [vmem:[%s464 + $0xbc] sm:$0xf]
        %v1251 = vld [vmem:[%s464 + $0xc0] sm:$0xf]
        %v1252 = vld [vmem:[%s464 + $0xcc] sm:$0x8]
        %v1253 = vld [vmem:[%s464 + $0xd0] sm:$0xf]
        %v1254 = vld [vmem:[%s464 + $0xd4] sm:$0xf]
        %v1255 = vld [vmem:[%s464 + $0xe0] sm:$0x8]
        %v1256 = vld [vmem:[%s464 + $0xe4] sm:$0xf]
        %v1257 = vld [vmem:[%s464 + $0xe8] sm:$0xf]
        %v1258 = vld [vmem:[%s464 + $0xf4] sm:$0x8]
        %v1259 = vld [vmem:[%s464 + $0xf8] sm:$0xf]
        %v1260 = vld [vmem:[%s464 + $0xfc] sm:$0xf]
        %v1261 = vld [vmem:[%s464 + $0x108] sm:$0x8]
        %v1262 = vld [vmem:[%s464 + $0x10c] sm:$0xf]
        %v1263 = vld [vmem:[%s464 + $0x110] sm:$0xf]
        %v1264 = vld [vmem:[%s464 + $0x11c] sm:$0x8]
        %v1265 = vld [vmem:[%s464 + $0x120] sm:$0xf]
        %v1266 = vld [vmem:[%s464 + $0x124] sm:$0xf]
        %v1267 = vld [vmem:[%s464 + $0x130] sm:$0x8]
        %v1268 = vld [vmem:[%s464 + $0x134] sm:$0xf]
        %v1269 = vld [vmem:[%s464 + $0x138] sm:$0xf]
        %v1270 = vld [vmem:[%s464 + $0x10] sm:$0x1]
        %v1271 = vld [vmem:[%s464 + $0x24] sm:$0x1]
        %v1272 = vld [vmem:[%s464 + $0x38] sm:$0x1]
        %v1273 = vld [vmem:[%s464 + $0x4c] sm:$0x1]
        %v1274 = vld [vmem:[%s464 + $0x60] sm:$0x1]
        %v1275 = vld [vmem:[%s464 + $0x74] sm:$0x1]
        %v1276 = vld [vmem:[%s464 + $0x88] sm:$0x1]
        %v1277 = vld [vmem:[%s464 + $0x9c] sm:$0x1]
        %v1278 = vld [vmem:[%s464 + $0xb0] sm:$0x1]
        %v1279 = vld [vmem:[%s464 + $0xc4] sm:$0x1]
        %v1280 = vld [vmem:[%s464 + $0xd8] sm:$0x1]
        %v1281 = vld [vmem:[%s464 + $0xec] sm:$0x1]
        %v1282 = vld [vmem:[%s464 + $0x100] sm:$0x1]
        %v1283 = vld [vmem:[%s464 + $0x114] sm:$0x1]
        %v1284 = vld [vmem:[%s464 + $0x128] sm:$0x1]
        %v1285 = vld [vmem:[%s464 + $0x13c] sm:$0x1]
        %s1286 = scalar_lea.vmem [#allocation2], 40
        %v1287 = vld [vmem:[%s1286 + $0x4] sm:$0x8]
        %v1288 = vld [vmem:[%s1286 + $0x8] sm:$0xf]
        %v1289 = vld [vmem:[%s1286 + $0xc] sm:$0xf]
        %v1290 = vld [vmem:[%s1286 + $0x18] sm:$0x8]
        %v1291 = vld [vmem:[%s1286 + $0x1c] sm:$0xf]
        %v1292 = vld [vmem:[%s1286 + $0x20] sm:$0xf]
        %v1293 = vld [vmem:[%s1286 + $0x2c] sm:$0x8]
        %v1294 = vld [vmem:[%s1286 + $0x30] sm:$0xf]
        %v1295 = vld [vmem:[%s1286 + $0x34] sm:$0xf]
        %v1296 = vld [vmem:[%s1286 + $0x40] sm:$0x8]
        %v1297 = vld [vmem:[%s1286 + $0x44] sm:$0xf]
        %v1298 = vld [vmem:[%s1286 + $0x48] sm:$0xf]
        %v1299 = vld [vmem:[%s1286 + $0x54] sm:$0x8]
        %v1300 = vld [vmem:[%s1286 + $0x58] sm:$0xf]
        %v1301 = vld [vmem:[%s1286 + $0x5c] sm:$0xf]
        %v1302 = vld [vmem:[%s1286 + $0x68] sm:$0x8]
        %v1303 = vld [vmem:[%s1286 + $0x6c] sm:$0xf]
        %v1304 = vld [vmem:[%s1286 + $0x70] sm:$0xf]
        %v1305 = vld [vmem:[%s1286 + $0x7c] sm:$0x8]
        %v1306 = vld [vmem:[%s1286 + $0x80] sm:$0xf]
        %v1307 = vld [vmem:[%s1286 + $0x84] sm:$0xf]
        %v1308 = vld [vmem:[%s1286 + $0x90] sm:$0x8]
        %v1309 = vld [vmem:[%s1286 + $0x94] sm:$0xf]
        %v1310 = vld [vmem:[%s1286 + $0x98] sm:$0xf]
        %v1311 = vld [vmem:[%s1286 + $0xa4] sm:$0x8]
        %v1312 = vld [vmem:[%s1286 + $0xa8] sm:$0xf]
        %v1313 = vld [vmem:[%s1286 + $0xac] sm:$0xf]
        %v1314 = vld [vmem:[%s1286 + $0xb8] sm:$0x8]
        %v1315 = vld [vmem:[%s1286 + $0xbc] sm:$0xf]
        %v1316 = vld [vmem:[%s1286 + $0xc0] sm:$0xf]
        %v1317 = vld [vmem:[%s1286 + $0xcc] sm:$0x8]
        %v1318 = vld [vmem:[%s1286 + $0xd0] sm:$0xf]
        %v1319 = vld [vmem:[%s1286 + $0xd4] sm:$0xf]
        %v1320 = vld [vmem:[%s1286 + $0xe0] sm:$0x8]
        %v1321 = vld [vmem:[%s1286 + $0xe4] sm:$0xf]
        %v1322 = vld [vmem:[%s1286 + $0xe8] sm:$0xf]
        %v1323 = vld [vmem:[%s1286 + $0xf4] sm:$0x8]
        %v1324 = vld [vmem:[%s1286 + $0xf8] sm:$0xf]
        %v1325 = vld [vmem:[%s1286 + $0xfc] sm:$0xf]
        %v1326 = vld [vmem:[%s1286 + $0x108] sm:$0x8]
        %v1327 = vld [vmem:[%s1286 + $0x10c] sm:$0xf]
        %v1328 = vld [vmem:[%s1286 + $0x110] sm:$0xf]
        %v1329 = vld [vmem:[%s1286 + $0x11c] sm:$0x8]
        %v1330 = vld [vmem:[%s1286 + $0x120] sm:$0xf]
        %v1331 = vld [vmem:[%s1286 + $0x124] sm:$0xf]
        %v1332 = vld [vmem:[%s1286 + $0x130] sm:$0x8]
        %v1333 = vld [vmem:[%s1286 + $0x134] sm:$0xf]
        %v1334 = vld [vmem:[%s1286 + $0x138] sm:$0xf]
        %v1335 = vld [vmem:[%s1286 + $0x10] sm:$0x1]
        %v1336 = vld [vmem:[%s1286 + $0x24] sm:$0x1]
        %v1337 = vld [vmem:[%s1286 + $0x38] sm:$0x1]
        %v1338 = vld [vmem:[%s1286 + $0x4c] sm:$0x1]
        %v1339 = vld [vmem:[%s1286 + $0x60] sm:$0x1]
        %v1340 = vld [vmem:[%s1286 + $0x74] sm:$0x1]
        %v1341 = vld [vmem:[%s1286 + $0x88] sm:$0x1]
        %v1342 = vld [vmem:[%s1286 + $0x9c] sm:$0x1]
        %v1343 = vld [vmem:[%s1286 + $0xb0] sm:$0x1]
        %v1344 = vld [vmem:[%s1286 + $0xc4] sm:$0x1]
        %v1345 = vld [vmem:[%s1286 + $0xd8] sm:$0x1]
        %v1346 = vld [vmem:[%s1286 + $0xec] sm:$0x1]
        %v1347 = vld [vmem:[%s1286 + $0x100] sm:$0x1]
        %v1348 = vld [vmem:[%s1286 + $0x114] sm:$0x1]
        %v1349 = vld [vmem:[%s1286 + $0x128] sm:$0x1]
        %v1350 = vld [vmem:[%s1286 + $0x13c] sm:$0x1]
        %v1399 = vunpack.c.l.b16 %v1158
        %v1400 = vunpack.c.l.b16 %v1159
        %v1401 = vunpack.c.l.b16 %v1160
        %v1402 = vunpack.c.l.b16 %v1161
        %v1403 = vunpack.c.l.b16 %v1162
        %v1404 = vunpack.c.l.b16 %v1163
        %v1405 = vunpack.c.l.b16 %v1164
        %v1406 = vunpack.c.l.b16 %v1165
        %v1407 = vunpack.c.l.b16 %v1166
        %v1408 = vunpack.c.l.b16 %v1167
        %v1409 = vunpack.c.l.b16 %v1168
        %v1410 = vunpack.c.l.b16 %v1169
        %v1411 = vunpack.c.l.b16 %v1170
        %v1412 = vunpack.c.l.b16 %v1171
        %v1413 = vunpack.c.l.b16 %v1172
        %v1414 = vunpack.c.l.b16 %v1173
        %v1415 = vunpack.c.l.b16 %v1174
        %v1416 = vunpack.c.l.b16 %v1175
        %v1417 = vunpack.c.l.b16 %v1176
        %v1418 = vunpack.c.l.b16 %v1177
        %v1419 = vunpack.c.l.b16 %v1178
        %v1420 = vunpack.c.l.b16 %v1179
        %v1421 = vunpack.c.l.b16 %v1180
        %v1422 = vunpack.c.l.b16 %v1181
        %v1423 = vunpack.c.l.b16 %v1182
        %v1424 = vunpack.c.l.b16 %v1183
        %v1425 = vunpack.c.l.b16 %v1184
        %v1426 = vunpack.c.l.b16 %v1185
        %v1427 = vunpack.c.l.b16 %v1186
        %v1428 = vunpack.c.l.b16 %v1187
        %v1429 = vunpack.c.l.b16 %v1188
        %v1430 = vunpack.c.l.b16 %v1189
        %v1431 = vunpack.c.l.b16 %v1190
        %v1432 = vunpack.c.l.b16 %v1191
        %v1433 = vunpack.c.l.b16 %v1192
        %v1434 = vunpack.c.l.b16 %v1193
        %v1435 = vunpack.c.l.b16 %v1194
        %v1436 = vunpack.c.l.b16 %v1195
        %v1437 = vunpack.c.l.b16 %v1196
        %v1438 = vunpack.c.l.b16 %v1197
        %v1439 = vunpack.c.l.b16 %v1198
        %v1440 = vunpack.c.l.b16 %v1199
        %v1441 = vunpack.c.l.b16 %v1200
        %v1442 = vunpack.c.l.b16 %v1201
        %v1443 = vunpack.c.l.b16 %v1202
        %v1444 = vunpack.c.l.b16 %v1203
        %v1445 = vunpack.c.l.b16 %v1204
        %v1446 = vunpack.c.l.b16 %v1205
        %v1447 = vpack.c.b16 %v1400, %v1399
        %v1448 = vpack.c.b16 %v1401, %v1401
        %v1449 = vpack.c.b16 %v1403, %v1402
        %v1450 = vpack.c.b16 %v1404, %v1404
        %v1451 = vpack.c.b16 %v1406, %v1405
        %v1452 = vpack.c.b16 %v1407, %v1407
        %v1453 = vpack.c.b16 %v1409, %v1408
        %v1454 = vpack.c.b16 %v1410, %v1410
        %v1455 = vpack.c.b16 %v1412, %v1411
        %v1456 = vpack.c.b16 %v1413, %v1413
        %v1457 = vpack.c.b16 %v1415, %v1414
        %v1458 = vpack.c.b16 %v1416, %v1416
        %v1459 = vpack.c.b16 %v1418, %v1417
        %v1460 = vpack.c.b16 %v1419, %v1419
        %v1461 = vpack.c.b16 %v1421, %v1420
        %v1462 = vpack.c.b16 %v1422, %v1422
        %v1463 = vpack.c.b16 %v1424, %v1423
        %v1464 = vpack.c.b16 %v1425, %v1425
        %v1465 = vpack.c.b16 %v1427, %v1426
        %v1466 = vpack.c.b16 %v1428, %v1428
        %v1467 = vpack.c.b16 %v1430, %v1429
        %v1468 = vpack.c.b16 %v1431, %v1431
        %v1469 = vpack.c.b16 %v1433, %v1432
        %v1470 = vpack.c.b16 %v1434, %v1434
        %v1471 = vpack.c.b16 %v1436, %v1435
        %v1472 = vpack.c.b16 %v1437, %v1437
        %v1473 = vpack.c.b16 %v1439, %v1438
        %v1474 = vpack.c.b16 %v1440, %v1440
        %v1475 = vpack.c.b16 %v1442, %v1441
        %v1476 = vpack.c.b16 %v1443, %v1443
        %v1477 = vpack.c.b16 %v1445, %v1444
        %v1478 = vpack.c.b16 %v1446, %v1446
        %v1479 = vpack.c.b16 %v1401, %v1400
        %v1480 = vpack.c.b16 %v1404, %v1403
        %v1481 = vpack.c.b16 %v1407, %v1406
        %v1482 = vpack.c.b16 %v1410, %v1409
        %v1483 = vpack.c.b16 %v1413, %v1412
        %v1484 = vpack.c.b16 %v1416, %v1415
        %v1485 = vpack.c.b16 %v1419, %v1418
        %v1486 = vpack.c.b16 %v1422, %v1421
        %v1487 = vpack.c.b16 %v1425, %v1424
        %v1488 = vpack.c.b16 %v1428, %v1427
        %v1489 = vpack.c.b16 %v1431, %v1430
        %v1490 = vpack.c.b16 %v1434, %v1433
        %v1491 = vpack.c.b16 %v1437, %v1436
        %v1492 = vpack.c.b16 %v1440, %v1439
        %v1493 = vpack.c.b16 %v1443, %v1442
        %v1494 = vpack.c.b16 %v1446, %v1445
        %v1496 = vshrl.u32 %v1479, 16
        %v1498 = vrot.slane %v1496, 4
        %v1499 = vshll.u32 %v1479, 16
        %v1501 = vrot.slane %v1499, 5
        %v1502 = vor.u32 %v1498, %v1501
        %v1504 = vshrl.u32 %v1480, 16
        %v1506 = vrot.slane %v1504, 4
        %v1507 = vshll.u32 %v1480, 16
        %v1509 = vrot.slane %v1507, 5
        %v1510 = vor.u32 %v1506, %v1509
        %v1512 = vshrl.u32 %v1481, 16
        %v1514 = vrot.slane %v1512, 4
        %v1515 = vshll.u32 %v1481, 16
        %v1517 = vrot.slane %v1515, 5
        %v1518 = vor.u32 %v1514, %v1517
        %v1520 = vshrl.u32 %v1482, 16
        %v1522 = vrot.slane %v1520, 4
        %v1523 = vshll.u32 %v1482, 16
        %v1525 = vrot.slane %v1523, 5
        %v1526 = vor.u32 %v1522, %v1525
        %v1528 = vshrl.u32 %v1483, 16
        %v1530 = vrot.slane %v1528, 4
        %v1531 = vshll.u32 %v1483, 16
        %v1533 = vrot.slane %v1531, 5
        %v1534 = vor.u32 %v1530, %v1533
        %v1536 = vshrl.u32 %v1484, 16
        %v1538 = vrot.slane %v1536, 4
        %v1539 = vshll.u32 %v1484, 16
        %v1541 = vrot.slane %v1539, 5
        %v1542 = vor.u32 %v1538, %v1541
        %v1544 = vshrl.u32 %v1485, 16
        %v1546 = vrot.slane %v1544, 4
        %v1547 = vshll.u32 %v1485, 16
        %v1549 = vrot.slane %v1547, 5
        %v1550 = vor.u32 %v1546, %v1549
        %v1552 = vshrl.u32 %v1486, 16
        %v1554 = vrot.slane %v1552, 4
        %v1555 = vshll.u32 %v1486, 16
        %v1557 = vrot.slane %v1555, 5
        %v1558 = vor.u32 %v1554, %v1557
        %v1560 = vshrl.u32 %v1487, 16
        %v1562 = vrot.slane %v1560, 4
        %v1563 = vshll.u32 %v1487, 16
        %v1565 = vrot.slane %v1563, 5
        %v1566 = vor.u32 %v1562, %v1565
        %v1568 = vshrl.u32 %v1488, 16
        %v1570 = vrot.slane %v1568, 4
        %v1571 = vshll.u32 %v1488, 16
        %v1573 = vrot.slane %v1571, 5
        %v1574 = vor.u32 %v1570, %v1573
        %v1576 = vshrl.u32 %v1489, 16
        %v1578 = vrot.slane %v1576, 4
        %v1579 = vshll.u32 %v1489, 16
        %v1581 = vrot.slane %v1579, 5
        %v1582 = vor.u32 %v1578, %v1581
        %v1584 = vshrl.u32 %v1490, 16
        %v1586 = vrot.slane %v1584, 4
        %v1587 = vshll.u32 %v1490, 16
        %v1589 = vrot.slane %v1587, 5
        %v1590 = vor.u32 %v1586, %v1589
        %v1592 = vshrl.u32 %v1491, 16
        %v1594 = vrot.slane %v1592, 4
        %v1595 = vshll.u32 %v1491, 16
        %v1597 = vrot.slane %v1595, 5
        %v1598 = vor.u32 %v1594, %v1597
        %v1600 = vshrl.u32 %v1492, 16
        %v1602 = vrot.slane %v1600, 4
        %v1603 = vshll.u32 %v1492, 16
        %v1605 = vrot.slane %v1603, 5
        %v1606 = vor.u32 %v1602, %v1605
        %v1608 = vshrl.u32 %v1493, 16
        %v1610 = vrot.slane %v1608, 4
        %v1611 = vshll.u32 %v1493, 16
        %v1613 = vrot.slane %v1611, 5
        %v1614 = vor.u32 %v1610, %v1613
        %v1616 = vshrl.u32 %v1494, 16
        %v1618 = vrot.slane %v1616, 4
        %v1619 = vshll.u32 %v1494, 16
        %v1621 = vrot.slane %v1619, 5
        %v1622 = vor.u32 %v1618, %v1621
        %1623 = vrot.lane.b32.xlu0 %v1502, 4
        %v1624 = vpop.permute.xlu0 %1623
        %1625 = vrot.lane.b32.xlu0 %v1510, 4
        %v1626 = vpop.permute.xlu0 %1625
        %1627 = vrot.lane.b32.xlu0 %v1518, 4
        %v1628 = vpop.permute.xlu0 %1627
        %1629 = vrot.lane.b32.xlu0 %v1526, 4
        %v1630 = vpop.permute.xlu0 %1629
        %1631 = vrot.lane.b32.xlu0 %v1534, 4
        %v1632 = vpop.permute.xlu0 %1631
        %1633 = vrot.lane.b32.xlu0 %v1542, 4
        %v1634 = vpop.permute.xlu0 %1633
        %1635 = vrot.lane.b32.xlu0 %v1550, 4
        %v1636 = vpop.permute.xlu0 %1635
        %1637 = vrot.lane.b32.xlu0 %v1558, 4
        %v1638 = vpop.permute.xlu0 %1637
        %1639 = vrot.lane.b32.xlu0 %v1566, 4
        %v1640 = vpop.permute.xlu0 %1639
        %1641 = vrot.lane.b32.xlu0 %v1574, 4
        %v1642 = vpop.permute.xlu0 %1641
        %1643 = vrot.lane.b32.xlu0 %v1582, 4
        %v1644 = vpop.permute.xlu0 %1643
        %1645 = vrot.lane.b32.xlu0 %v1590, 4
        %v1646 = vpop.permute.xlu0 %1645
        %1647 = vrot.lane.b32.xlu0 %v1598, 4
        %v1648 = vpop.permute.xlu0 %1647
        %1649 = vrot.lane.b32.xlu0 %v1606, 4
        %v1650 = vpop.permute.xlu0 %1649
        %1651 = vrot.lane.b32.xlu0 %v1614, 4
        %v1652 = vpop.permute.xlu0 %1651
        %1653 = vrot.lane.b32.xlu0 %v1622, 4
        %v1654 = vpop.permute.xlu0 %1653
        %v1671 = vunpack.c.l.b16 %v1206
        %v1672 = vunpack.c.l.b16 %v1207
        %v1673 = vunpack.c.l.b16 %v1208
        %v1674 = vunpack.c.l.b16 %v1209
        %v1675 = vunpack.c.l.b16 %v1210
        %v1676 = vunpack.c.l.b16 %v1211
        %v1677 = vunpack.c.l.b16 %v1212
        %v1678 = vunpack.c.l.b16 %v1213
        %v1679 = vunpack.c.l.b16 %v1214
        %v1680 = vunpack.c.l.b16 %v1215
        %v1681 = vunpack.c.l.b16 %v1216
        %v1682 = vunpack.c.l.b16 %v1217
        %v1683 = vunpack.c.l.b16 %v1218
        %v1684 = vunpack.c.l.b16 %v1219
        %v1685 = vunpack.c.l.b16 %v1220
        %v1686 = vunpack.c.l.b16 %v1221
        %v1687 = vpack.c.b16 %v1671, %v1671
        %v1688 = vpack.c.b16 %v1672, %v1672
        %v1689 = vpack.c.b16 %v1673, %v1673
        %v1690 = vpack.c.b16 %v1674, %v1674
        %v1691 = vpack.c.b16 %v1675, %v1675
        %v1692 = vpack.c.b16 %v1676, %v1676
        %v1693 = vpack.c.b16 %v1677, %v1677
        %v1694 = vpack.c.b16 %v1678, %v1678
        %v1695 = vpack.c.b16 %v1679, %v1679
        %v1696 = vpack.c.b16 %v1680, %v1680
        %v1697 = vpack.c.b16 %v1681, %v1681
        %v1698 = vpack.c.b16 %v1682, %v1682
        %v1699 = vpack.c.b16 %v1683, %v1683
        %v1700 = vpack.c.b16 %v1684, %v1684
        %v1701 = vpack.c.b16 %v1685, %v1685
        %v1702 = vpack.c.b16 %v1686, %v1686
        %vm1703 = vcmask 1042432
        %v1704 = vrot.slane %v1479, 5
        %v1705 = vrot.slane %v1687, 5
        %v1706 = vsel %vm1703, %v1704, %v1705
        %v1707 = vrot.slane %v1480, 5
        %v1708 = vrot.slane %v1688, 5
        %v1709 = vsel %vm1703, %v1707, %v1708
        %v1710 = vrot.slane %v1481, 5
        %v1711 = vrot.slane %v1689, 5
        %v1712 = vsel %vm1703, %v1710, %v1711
        %v1713 = vrot.slane %v1482, 5
        %v1714 = vrot.slane %v1690, 5
        %v1715 = vsel %vm1703, %v1713, %v1714
        %v1716 = vrot.slane %v1483, 5
        %v1717 = vrot.slane %v1691, 5
        %v1718 = vsel %vm1703, %v1716, %v1717
        %v1719 = vrot.slane %v1484, 5
        %v1720 = vrot.slane %v1692, 5
        %v1721 = vsel %vm1703, %v1719, %v1720
        %v1722 = vrot.slane %v1485, 5
        %v1723 = vrot.slane %v1693, 5
        %v1724 = vsel %vm1703, %v1722, %v1723
        %v1725 = vrot.slane %v1486, 5
        %v1726 = vrot.slane %v1694, 5
        %v1727 = vsel %vm1703, %v1725, %v1726
        %v1728 = vrot.slane %v1487, 5
        %v1729 = vrot.slane %v1695, 5
        %v1730 = vsel %vm1703, %v1728, %v1729
        %v1731 = vrot.slane %v1488, 5
        %v1732 = vrot.slane %v1696, 5
        %v1733 = vsel %vm1703, %v1731, %v1732
        %v1734 = vrot.slane %v1489, 5
        %v1735 = vrot.slane %v1697, 5
        %v1736 = vsel %vm1703, %v1734, %v1735
        %v1737 = vrot.slane %v1490, 5
        %v1738 = vrot.slane %v1698, 5
        %v1739 = vsel %vm1703, %v1737, %v1738
        %v1740 = vrot.slane %v1491, 5
        %v1741 = vrot.slane %v1699, 5
        %v1742 = vsel %vm1703, %v1740, %v1741
        %v1743 = vrot.slane %v1492, 5
        %v1744 = vrot.slane %v1700, 5
        %v1745 = vsel %vm1703, %v1743, %v1744
        %v1746 = vrot.slane %v1493, 5
        %v1747 = vrot.slane %v1701, 5
        %v1748 = vsel %vm1703, %v1746, %v1747
        %v1749 = vrot.slane %v1494, 5
        %v1750 = vrot.slane %v1702, 5
        %v1751 = vsel %vm1703, %v1749, %v1750
        %1752 = vrot.lane.b32.xlu0 %v1704, 8
        %v1753 = vpop.permute.xlu0 %1752
        %1754 = vrot.lane.b32.xlu0 %v1706, 8
        %v1755 = vpop.permute.xlu0 %1754
        %1756 = vrot.lane.b32.xlu0 %v1707, 8
        %v1757 = vpop.permute.xlu0 %1756
        %1758 = vrot.lane.b32.xlu0 %v1709, 8
        %v1759 = vpop.permute.xlu0 %1758
        %1760 = vrot.lane.b32.xlu0 %v1710, 8
        %v1761 = vpop.permute.xlu0 %1760
        %1762 = vrot.lane.b32.xlu0 %v1712, 8
        %v1763 = vpop.permute.xlu0 %1762
        %1764 = vrot.lane.b32.xlu0 %v1713, 8
        %v1765 = vpop.permute.xlu0 %1764
        %1766 = vrot.lane.b32.xlu0 %v1715, 8
        %v1767 = vpop.permute.xlu0 %1766
        %1768 = vrot.lane.b32.xlu0 %v1716, 8
        %v1769 = vpop.permute.xlu0 %1768
        %1770 = vrot.lane.b32.xlu0 %v1718, 8
        %v1771 = vpop.permute.xlu0 %1770
        %1772 = vrot.lane.b32.xlu0 %v1719, 8
        %v1773 = vpop.permute.xlu0 %1772
        %1774 = vrot.lane.b32.xlu0 %v1721, 8
        %v1775 = vpop.permute.xlu0 %1774
        %1776 = vrot.lane.b32.xlu0 %v1722, 8
        %v1777 = vpop.permute.xlu0 %1776
        %1778 = vrot.lane.b32.xlu0 %v1724, 8
        %v1779 = vpop.permute.xlu0 %1778
        %1780 = vrot.lane.b32.xlu0 %v1725, 8
        %v1781 = vpop.permute.xlu0 %1780
        %1782 = vrot.lane.b32.xlu0 %v1727, 8
        %v1783 = vpop.permute.xlu0 %1782
        %1784 = vrot.lane.b32.xlu0 %v1728, 8
        %v1785 = vpop.permute.xlu0 %1784
        %1786 = vrot.lane.b32.xlu0 %v1730, 8
        %v1787 = vpop.permute.xlu0 %1786
        %1788 = vrot.lane.b32.xlu0 %v1731, 8
        %v1789 = vpop.permute.xlu0 %1788
        %1790 = vrot.lane.b32.xlu0 %v1733, 8
        %v1791 = vpop.permute.xlu0 %1790
        %1792 = vrot.lane.b32.xlu0 %v1734, 8
        %v1793 = vpop.permute.xlu0 %1792
        %1794 = vrot.lane.b32.xlu0 %v1736, 8
        %v1795 = vpop.permute.xlu0 %1794
        %1796 = vrot.lane.b32.xlu0 %v1737, 8
        %v1797 = vpop.permute.xlu0 %1796
        %1798 = vrot.lane.b32.xlu0 %v1739, 8
        %v1799 = vpop.permute.xlu0 %1798
        %1800 = vrot.lane.b32.xlu0 %v1740, 8
        %v1801 = vpop.permute.xlu0 %1800
        %1802 = vrot.lane.b32.xlu0 %v1742, 8
        %v1803 = vpop.permute.xlu0 %1802
        %1804 = vrot.lane.b32.xlu0 %v1743, 8
        %v1805 = vpop.permute.xlu0 %1804
        %1806 = vrot.lane.b32.xlu0 %v1745, 8
        %v1807 = vpop.permute.xlu0 %1806
        %1808 = vrot.lane.b32.xlu0 %v1746, 8
        %v1809 = vpop.permute.xlu0 %1808
        %1810 = vrot.lane.b32.xlu0 %v1748, 8
        %v1811 = vpop.permute.xlu0 %1810
        %1812 = vrot.lane.b32.xlu0 %v1749, 8
        %v1813 = vpop.permute.xlu0 %1812
        %1814 = vrot.lane.b32.xlu0 %v1751, 8
        %v1815 = vpop.permute.xlu0 %1814
        %v1864 = vunpack.c.l.b16 %v1222
        %v1865 = vunpack.c.l.b16 %v1223
        %v1866 = vunpack.c.l.b16 %v1224
        %v1867 = vunpack.c.l.b16 %v1225
        %v1868 = vunpack.c.l.b16 %v1226
        %v1869 = vunpack.c.l.b16 %v1227
        %v1870 = vunpack.c.l.b16 %v1228
        %v1871 = vunpack.c.l.b16 %v1229
        %v1872 = vunpack.c.l.b16 %v1230
        %v1873 = vunpack.c.l.b16 %v1231
        %v1874 = vunpack.c.l.b16 %v1232
        %v1875 = vunpack.c.l.b16 %v1233
        %v1876 = vunpack.c.l.b16 %v1234
        %v1877 = vunpack.c.l.b16 %v1235
        %v1878 = vunpack.c.l.b16 %v1236
        %v1879 = vunpack.c.l.b16 %v1237
        %v1880 = vunpack.c.l.b16 %v1238
        %v1881 = vunpack.c.l.b16 %v1239
        %v1882 = vunpack.c.l.b16 %v1240
        %v1883 = vunpack.c.l.b16 %v1241
        %v1884 = vunpack.c.l.b16 %v1242
        %v1885 = vunpack.c.l.b16 %v1243
        %v1886 = vunpack.c.l.b16 %v1244
        %v1887 = vunpack.c.l.b16 %v1245
        %v1888 = vunpack.c.l.b16 %v1246
        %v1889 = vunpack.c.l.b16 %v1247
        %v1890 = vunpack.c.l.b16 %v1248
        %v1891 = vunpack.c.l.b16 %v1249
        %v1892 = vunpack.c.l.b16 %v1250
        %v1893 = vunpack.c.l.b16 %v1251
        %v1894 = vunpack.c.l.b16 %v1252
        %v1895 = vunpack.c.l.b16 %v1253
        %v1896 = vunpack.c.l.b16 %v1254
        %v1897 = vunpack.c.l.b16 %v1255
        %v1898 = vunpack.c.l.b16 %v1256
        %v1899 = vunpack.c.l.b16 %v1257
        %v1900 = vunpack.c.l.b16 %v1258
        %v1901 = vunpack.c.l.b16 %v1259
        %v1902 = vunpack.c.l.b16 %v1260
        %v1903 = vunpack.c.l.b16 %v1261
        %v1904 = vunpack.c.l.b16 %v1262
        %v1905 = vunpack.c.l.b16 %v1263
        %v1906 = vunpack.c.l.b16 %v1264
        %v1907 = vunpack.c.l.b16 %v1265
        %v1908 = vunpack.c.l.b16 %v1266
        %v1909 = vunpack.c.l.b16 %v1267
        %v1910 = vunpack.c.l.b16 %v1268
        %v1911 = vunpack.c.l.b16 %v1269
        %v1912 = vpack.c.b16 %v1865, %v1864
        %v1913 = vpack.c.b16 %v1866, %v1866
        %v1914 = vpack.c.b16 %v1868, %v1867
        %v1915 = vpack.c.b16 %v1869, %v1869
        %v1916 = vpack.c.b16 %v1871, %v1870
        %v1917 = vpack.c.b16 %v1872, %v1872
        %v1918 = vpack.c.b16 %v1874, %v1873
        %v1919 = vpack.c.b16 %v1875, %v1875
        %v1920 = vpack.c.b16 %v1877, %v1876
        %v1921 = vpack.c.b16 %v1878, %v1878
        %v1922 = vpack.c.b16 %v1880, %v1879
        %v1923 = vpack.c.b16 %v1881, %v1881
        %v1924 = vpack.c.b16 %v1883, %v1882
        %v1925 = vpack.c.b16 %v1884, %v1884
        %v1926 = vpack.c.b16 %v1886, %v1885
        %v1927 = vpack.c.b16 %v1887, %v1887
        %v1928 = vpack.c.b16 %v1889, %v1888
        %v1929 = vpack.c.b16 %v1890, %v1890
        %v1930 = vpack.c.b16 %v1892, %v1891
        %v1931 = vpack.c.b16 %v1893, %v1893
        %v1932 = vpack.c.b16 %v1895, %v1894
        %v1933 = vpack.c.b16 %v1896, %v1896
        %v1934 = vpack.c.b16 %v1898, %v1897
        %v1935 = vpack.c.b16 %v1899, %v1899
        %v1936 = vpack.c.b16 %v1901, %v1900
        %v1937 = vpack.c.b16 %v1902, %v1902
        %v1938 = vpack.c.b16 %v1904, %v1903
        %v1939 = vpack.c.b16 %v1905, %v1905
        %v1940 = vpack.c.b16 %v1907, %v1906
        %v1941 = vpack.c.b16 %v1908, %v1908
        %v1942 = vpack.c.b16 %v1910, %v1909
        %v1943 = vpack.c.b16 %v1911, %v1911
        %1944 = vrot.lane.b32.xlu0 %v1912, 12
        %v1945 = vpop.permute.xlu0 %1944
        %1946 = vrot.lane.b32.xlu0 %v1913, 12
        %v1947 = vpop.permute.xlu0 %1946
        %1948 = vrot.lane.b32.xlu0 %v1914, 12
        %v1949 = vpop.permute.xlu0 %1948
        %1950 = vrot.lane.b32.xlu0 %v1915, 12
        %v1951 = vpop.permute.xlu0 %1950
        %1952 = vrot.lane.b32.xlu0 %v1916, 12
        %v1953 = vpop.permute.xlu0 %1952
        %1954 = vrot.lane.b32.xlu0 %v1917, 12
        %v1955 = vpop.permute.xlu0 %1954
        %1956 = vrot.lane.b32.xlu0 %v1918, 12
        %v1957 = vpop.permute.xlu0 %1956
        %1958 = vrot.lane.b32.xlu0 %v1919, 12
        %v1959 = vpop.permute.xlu0 %1958
        %1960 = vrot.lane.b32.xlu0 %v1920, 12
        %v1961 = vpop.permute.xlu0 %1960
        %1962 = vrot.lane.b32.xlu0 %v1921, 12
        %v1963 = vpop.permute.xlu0 %1962
        %1964 = vrot.lane.b32.xlu0 %v1922, 12
        %v1965 = vpop.permute.xlu0 %1964
        %1966 = vrot.lane.b32.xlu0 %v1923, 12
        %v1967 = vpop.permute.xlu0 %1966
        %1968 = vrot.lane.b32.xlu0 %v1924, 12
        %v1969 = vpop.permute.xlu0 %1968
        %1970 = vrot.lane.b32.xlu0 %v1925, 12
        %v1971 = vpop.permute.xlu0 %1970
        %1972 = vrot.lane.b32.xlu0 %v1926, 12
        %v1973 = vpop.permute.xlu0 %1972
        %1974 = vrot.lane.b32.xlu0 %v1927, 12
        %v1975 = vpop.permute.xlu0 %1974
        %1976 = vrot.lane.b32.xlu0 %v1928, 12
        %v1977 = vpop.permute.xlu0 %1976
        %1978 = vrot.lane.b32.xlu0 %v1929, 12
        %v1979 = vpop.permute.xlu0 %1978
        %1980 = vrot.lane.b32.xlu0 %v1930, 12
        %v1981 = vpop.permute.xlu0 %1980
        %1982 = vrot.lane.b32.xlu0 %v1931, 12
        %v1983 = vpop.permute.xlu0 %1982
        %1984 = vrot.lane.b32.xlu0 %v1932, 12
        %v1985 = vpop.permute.xlu0 %1984
        %1986 = vrot.lane.b32.xlu0 %v1933, 12
        %v1987 = vpop.permute.xlu0 %1986
        %1988 = vrot.lane.b32.xlu0 %v1934, 12
        %v1989 = vpop.permute.xlu0 %1988
        %1990 = vrot.lane.b32.xlu0 %v1935, 12
        %v1991 = vpop.permute.xlu0 %1990
        %1992 = vrot.lane.b32.xlu0 %v1936, 12
        %v1993 = vpop.permute.xlu0 %1992
        %1994 = vrot.lane.b32.xlu0 %v1937, 12
        %v1995 = vpop.permute.xlu0 %1994
        %1996 = vrot.lane.b32.xlu0 %v1938, 12
        %v1997 = vpop.permute.xlu0 %1996
        %1998 = vrot.lane.b32.xlu0 %v1939, 12
        %v1999 = vpop.permute.xlu0 %1998
        %2000 = vrot.lane.b32.xlu0 %v1940, 12
        %v2001 = vpop.permute.xlu0 %2000
        %2002 = vrot.lane.b32.xlu0 %v1941, 12
        %v2003 = vpop.permute.xlu0 %2002
        %2004 = vrot.lane.b32.xlu0 %v1942, 12
        %v2005 = vpop.permute.xlu0 %2004
        %2006 = vrot.lane.b32.xlu0 %v1943, 12
        %v2007 = vpop.permute.xlu0 %2006
        %v2008 = vpack.c.b16 %v1866, %v1865
        %v2009 = vpack.c.b16 %v1869, %v1868
        %v2010 = vpack.c.b16 %v1872, %v1871
        %v2011 = vpack.c.b16 %v1875, %v1874
        %v2012 = vpack.c.b16 %v1878, %v1877
        %v2013 = vpack.c.b16 %v1881, %v1880
        %v2014 = vpack.c.b16 %v1884, %v1883
        %v2015 = vpack.c.b16 %v1887, %v1886
        %v2016 = vpack.c.b16 %v1890, %v1889
        %v2017 = vpack.c.b16 %v1893, %v1892
        %v2018 = vpack.c.b16 %v1896, %v1895
        %v2019 = vpack.c.b16 %v1899, %v1898
        %v2020 = vpack.c.b16 %v1902, %v1901
        %v2021 = vpack.c.b16 %v1905, %v1904
        %v2022 = vpack.c.b16 %v1908, %v1907
        %v2023 = vpack.c.b16 %v1911, %v1910
        %v2025 = vshrl.u32 %v2008, 16
        %v2027 = vrot.slane %v2025, 4
        %v2028 = vshll.u32 %v2008, 16
        %v2030 = vrot.slane %v2028, 5
        %v2031 = vor.u32 %v2027, %v2030
        %v2033 = vshrl.u32 %v2009, 16
        %v2035 = vrot.slane %v2033, 4
        %v2036 = vshll.u32 %v2009, 16
        %v2038 = vrot.slane %v2036, 5
        %v2039 = vor.u32 %v2035, %v2038
        %v2041 = vshrl.u32 %v2010, 16
        %v2043 = vrot.slane %v2041, 4
        %v2044 = vshll.u32 %v2010, 16
        %v2046 = vrot.slane %v2044, 5
        %v2047 = vor.u32 %v2043, %v2046
        %v2049 = vshrl.u32 %v2011, 16
        %v2051 = vrot.slane %v2049, 4
        %v2052 = vshll.u32 %v2011, 16
        %v2054 = vrot.slane %v2052, 5
        %v2055 = vor.u32 %v2051, %v2054
        %v2057 = vshrl.u32 %v2012, 16
        %v2059 = vrot.slane %v2057, 4
        %v2060 = vshll.u32 %v2012, 16
        %v2062 = vrot.slane %v2060, 5
        %v2063 = vor.u32 %v2059, %v2062
        %v2065 = vshrl.u32 %v2013, 16
        %v2067 = vrot.slane %v2065, 4
        %v2068 = vshll.u32 %v2013, 16
        %v2070 = vrot.slane %v2068, 5
        %v2071 = vor.u32 %v2067, %v2070
        %v2073 = vshrl.u32 %v2014, 16
        %v2075 = vrot.slane %v2073, 4
        %v2076 = vshll.u32 %v2014, 16
        %v2078 = vrot.slane %v2076, 5
        %v2079 = vor.u32 %v2075, %v2078
        %v2081 = vshrl.u32 %v2015, 16
        %v2083 = vrot.slane %v2081, 4
        %v2084 = vshll.u32 %v2015, 16
        %v2086 = vrot.slane %v2084, 5
        %v2087 = vor.u32 %v2083, %v2086
        %v2089 = vshrl.u32 %v2016, 16
        %v2091 = vrot.slane %v2089, 4
        %v2092 = vshll.u32 %v2016, 16
        %v2094 = vrot.slane %v2092, 5
        %v2095 = vor.u32 %v2091, %v2094
        %v2097 = vshrl.u32 %v2017, 16
        %v2099 = vrot.slane %v2097, 4
        %v2100 = vshll.u32 %v2017, 16
        %v2102 = vrot.slane %v2100, 5
        %v2103 = vor.u32 %v2099, %v2102
        %v2105 = vshrl.u32 %v2018, 16
        %v2107 = vrot.slane %v2105, 4
        %v2108 = vshll.u32 %v2018, 16
        %v2110 = vrot.slane %v2108, 5
        %v2111 = vor.u32 %v2107, %v2110
        %v2113 = vshrl.u32 %v2019, 16
        %v2115 = vrot.slane %v2113, 4
        %v2116 = vshll.u32 %v2019, 16
        %v2118 = vrot.slane %v2116, 5
        %v2119 = vor.u32 %v2115, %v2118
        %v2121 = vshrl.u32 %v2020, 16
        %v2123 = vrot.slane %v2121, 4
        %v2124 = vshll.u32 %v2020, 16
        %v2126 = vrot.slane %v2124, 5
        %v2127 = vor.u32 %v2123, %v2126
        %v2129 = vshrl.u32 %v2021, 16
        %v2131 = vrot.slane %v2129, 4
        %v2132 = vshll.u32 %v2021, 16
        %v2134 = vrot.slane %v2132, 5
        %v2135 = vor.u32 %v2131, %v2134
        %v2137 = vshrl.u32 %v2022, 16
        %v2139 = vrot.slane %v2137, 4
        %v2140 = vshll.u32 %v2022, 16
        %v2142 = vrot.slane %v2140, 5
        %v2143 = vor.u32 %v2139, %v2142
        %v2145 = vshrl.u32 %v2023, 16
        %v2147 = vrot.slane %v2145, 4
        %v2148 = vshll.u32 %v2023, 16
        %v2150 = vrot.slane %v2148, 5
        %v2151 = vor.u32 %v2147, %v2150
        %2152 = vrot.lane.b32.xlu0 %v2031, 16
        %v2153 = vpop.permute.xlu0 %2152
        %2154 = vrot.lane.b32.xlu0 %v2039, 16
        %v2155 = vpop.permute.xlu0 %2154
        %2156 = vrot.lane.b32.xlu0 %v2047, 16
        %v2157 = vpop.permute.xlu0 %2156
        %2158 = vrot.lane.b32.xlu0 %v2055, 16
        %v2159 = vpop.permute.xlu0 %2158
        %2160 = vrot.lane.b32.xlu0 %v2063, 16
        %v2161 = vpop.permute.xlu0 %2160
        %2162 = vrot.lane.b32.xlu0 %v2071, 16
        %v2163 = vpop.permute.xlu0 %2162
        %2164 = vrot.lane.b32.xlu0 %v2079, 16
        %v2165 = vpop.permute.xlu0 %2164
        %2166 = vrot.lane.b32.xlu0 %v2087, 16
        %v2167 = vpop.permute.xlu0 %2166
        %2168 = vrot.lane.b32.xlu0 %v2095, 16
        %v2169 = vpop.permute.xlu0 %2168
        %2170 = vrot.lane.b32.xlu0 %v2103, 16
        %v2171 = vpop.permute.xlu0 %2170
        %2172 = vrot.lane.b32.xlu0 %v2111, 16
        %v2173 = vpop.permute.xlu0 %2172
        %2174 = vrot.lane.b32.xlu0 %v2119, 16
        %v2175 = vpop.permute.xlu0 %2174
        %2176 = vrot.lane.b32.xlu0 %v2127, 16
        %v2177 = vpop.permute.xlu0 %2176
        %2178 = vrot.lane.b32.xlu0 %v2135, 16
        %v2179 = vpop.permute.xlu0 %2178
        %2180 = vrot.lane.b32.xlu0 %v2143, 16
        %v2181 = vpop.permute.xlu0 %2180
        %2182 = vrot.lane.b32.xlu0 %v2151, 16
        %v2183 = vpop.permute.xlu0 %2182
        %v2200 = vunpack.c.l.b16 %v1270
        %v2201 = vunpack.c.l.b16 %v1271
        %v2202 = vunpack.c.l.b16 %v1272
        %v2203 = vunpack.c.l.b16 %v1273
        %v2204 = vunpack.c.l.b16 %v1274
        %v2205 = vunpack.c.l.b16 %v1275
        %v2206 = vunpack.c.l.b16 %v1276
        %v2207 = vunpack.c.l.b16 %v1277
        %v2208 = vunpack.c.l.b16 %v1278
        %v2209 = vunpack.c.l.b16 %v1279
        %v2210 = vunpack.c.l.b16 %v1280
        %v2211 = vunpack.c.l.b16 %v1281
        %v2212 = vunpack.c.l.b16 %v1282
        %v2213 = vunpack.c.l.b16 %v1283
        %v2214 = vunpack.c.l.b16 %v1284
        %v2215 = vunpack.c.l.b16 %v1285
        %v2216 = vpack.c.b16 %v2200, %v2200
        %v2217 = vpack.c.b16 %v2201, %v2201
        %v2218 = vpack.c.b16 %v2202, %v2202
        %v2219 = vpack.c.b16 %v2203, %v2203
        %v2220 = vpack.c.b16 %v2204, %v2204
        %v2221 = vpack.c.b16 %v2205, %v2205
        %v2222 = vpack.c.b16 %v2206, %v2206
        %v2223 = vpack.c.b16 %v2207, %v2207
        %v2224 = vpack.c.b16 %v2208, %v2208
        %v2225 = vpack.c.b16 %v2209, %v2209
        %v2226 = vpack.c.b16 %v2210, %v2210
        %v2227 = vpack.c.b16 %v2211, %v2211
        %v2228 = vpack.c.b16 %v2212, %v2212
        %v2229 = vpack.c.b16 %v2213, %v2213
        %v2230 = vpack.c.b16 %v2214, %v2214
        %v2231 = vpack.c.b16 %v2215, %v2215
        %v2232 = vrot.slane %v2008, 5
        %v2233 = vrot.slane %v2216, 5
        %v2234 = vsel %vm1703, %v2232, %v2233
        %v2235 = vrot.slane %v2009, 5
        %v2236 = vrot.slane %v2217, 5
        %v2237 = vsel %vm1703, %v2235, %v2236
        %v2238 = vrot.slane %v2010, 5
        %v2239 = vrot.slane %v2218, 5
        %v2240 = vsel %vm1703, %v2238, %v2239
        %v2241 = vrot.slane %v2011, 5
        %v2242 = vrot.slane %v2219, 5
        %v2243 = vsel %vm1703, %v2241, %v2242
        %v2244 = vrot.slane %v2012, 5
        %v2245 = vrot.slane %v2220, 5
        %v2246 = vsel %vm1703, %v2244, %v2245
        %v2247 = vrot.slane %v2013, 5
        %v2248 = vrot.slane %v2221, 5
        %v2249 = vsel %vm1703, %v2247, %v2248
        %v2250 = vrot.slane %v2014, 5
        %v2251 = vrot.slane %v2222, 5
        %v2252 = vsel %vm1703, %v2250, %v2251
        %v2253 = vrot.slane %v2015, 5
        %v2254 = vrot.slane %v2223, 5
        %v2255 = vsel %vm1703, %v2253, %v2254
        %v2256 = vrot.slane %v2016, 5
        %v2257 = vrot.slane %v2224, 5
        %v2258 = vsel %vm1703, %v2256, %v2257
        %v2259 = vrot.slane %v2017, 5
        %v2260 = vrot.slane %v2225, 5
        %v2261 = vsel %vm1703, %v2259, %v2260
        %v2262 = vrot.slane %v2018, 5
        %v2263 = vrot.slane %v2226, 5
        %v2264 = vsel %vm1703, %v2262, %v2263
        %v2265 = vrot.slane %v2019, 5
        %v2266 = vrot.slane %v2227, 5
        %v2267 = vsel %vm1703, %v2265, %v2266
        %v2268 = vrot.slane %v2020, 5
        %v2269 = vrot.slane %v2228, 5
        %v2270 = vsel %vm1703, %v2268, %v2269
        %v2271 = vrot.slane %v2021, 5
        %v2272 = vrot.slane %v2229, 5
        %v2273 = vsel %vm1703, %v2271, %v2272
        %v2274 = vrot.slane %v2022, 5
        %v2275 = vrot.slane %v2230, 5
        %v2276 = vsel %vm1703, %v2274, %v2275
        %v2277 = vrot.slane %v2023, 5
        %v2278 = vrot.slane %v2231, 5
        %v2279 = vsel %vm1703, %v2277, %v2278
        %2280 = vrot.lane.b32.xlu0 %v2232, 20
        %v2281 = vpop.permute.xlu0 %2280
        %2282 = vrot.lane.b32.xlu0 %v2234, 20
        %v2283 = vpop.permute.xlu0 %2282
        %2284 = vrot.lane.b32.xlu0 %v2235, 20
        %v2285 = vpop.permute.xlu0 %2284
        %2286 = vrot.lane.b32.xlu0 %v2237, 20
        %v2287 = vpop.permute.xlu0 %2286
        %2288 = vrot.lane.b32.xlu0 %v2238, 20
        %v2289 = vpop.permute.xlu0 %2288
        %2290 = vrot.lane.b32.xlu0 %v2240, 20
        %v2291 = vpop.permute.xlu0 %2290
        %2292 = vrot.lane.b32.xlu0 %v2241, 20
        %v2293 = vpop.permute.xlu0 %2292
        %2294 = vrot.lane.b32.xlu0 %v2243, 20
        %v2295 = vpop.permute.xlu0 %2294
        %2296 = vrot.lane.b32.xlu0 %v2244, 20
        %v2297 = vpop.permute.xlu0 %2296
        %2298 = vrot.lane.b32.xlu0 %v2246, 20
        %v2299 = vpop.permute.xlu0 %2298
        %2300 = vrot.lane.b32.xlu0 %v2247, 20
        %v2301 = vpop.permute.xlu0 %2300
        %2302 = vrot.lane.b32.xlu0 %v2249, 20
        %v2303 = vpop.permute.xlu0 %2302
        %2304 = vrot.lane.b32.xlu0 %v2250, 20
        %v2305 = vpop.permute.xlu0 %2304
        %2306 = vrot.lane.b32.xlu0 %v2252, 20
        %v2307 = vpop.permute.xlu0 %2306
        %2308 = vrot.lane.b32.xlu0 %v2253, 20
        %v2309 = vpop.permute.xlu0 %2308
        %2310 = vrot.lane.b32.xlu0 %v2255, 20
        %v2311 = vpop.permute.xlu0 %2310
        %2312 = vrot.lane.b32.xlu0 %v2256, 20
        %v2313 = vpop.permute.xlu0 %2312
        %2314 = vrot.lane.b32.xlu0 %v2258, 20
        %v2315 = vpop.permute.xlu0 %2314
        %2316 = vrot.lane.b32.xlu0 %v2259, 20
        %v2317 = vpop.permute.xlu0 %2316
        %2318 = vrot.lane.b32.xlu0 %v2261, 20
        %v2319 = vpop.permute.xlu0 %2318
        %2320 = vrot.lane.b32.xlu0 %v2262, 20
        %v2321 = vpop.permute.xlu0 %2320
        %2322 = vrot.lane.b32.xlu0 %v2264, 20
        %v2323 = vpop.permute.xlu0 %2322
        %2324 = vrot.lane.b32.xlu0 %v2265, 20
        %v2325 = vpop.permute.xlu0 %2324
        %2326 = vrot.lane.b32.xlu0 %v2267, 20
        %v2327 = vpop.permute.xlu0 %2326
        %2328 = vrot.lane.b32.xlu0 %v2268, 20
        %v2329 = vpop.permute.xlu0 %2328
        %2330 = vrot.lane.b32.xlu0 %v2270, 20
        %v2331 = vpop.permute.xlu0 %2330
        %2332 = vrot.lane.b32.xlu0 %v2271, 20
        %v2333 = vpop.permute.xlu0 %2332
        %2334 = vrot.lane.b32.xlu0 %v2273, 20
        %v2335 = vpop.permute.xlu0 %2334
        %2336 = vrot.lane.b32.xlu0 %v2274, 20
        %v2337 = vpop.permute.xlu0 %2336
        %2338 = vrot.lane.b32.xlu0 %v2276, 20
        %v2339 = vpop.permute.xlu0 %2338
        %2340 = vrot.lane.b32.xlu0 %v2277, 20
        %v2341 = vpop.permute.xlu0 %2340
        %2342 = vrot.lane.b32.xlu0 %v2279, 20
        %v2343 = vpop.permute.xlu0 %2342
        %v2392 = vunpack.c.l.b16 %v1287
        %v2393 = vunpack.c.l.b16 %v1288
        %v2394 = vunpack.c.l.b16 %v1289
        %v2395 = vunpack.c.l.b16 %v1290
        %v2396 = vunpack.c.l.b16 %v1291
        %v2397 = vunpack.c.l.b16 %v1292
        %v2398 = vunpack.c.l.b16 %v1293
        %v2399 = vunpack.c.l.b16 %v1294
        %v2400 = vunpack.c.l.b16 %v1295
        %v2401 = vunpack.c.l.b16 %v1296
        %v2402 = vunpack.c.l.b16 %v1297
        %v2403 = vunpack.c.l.b16 %v1298
        %v2404 = vunpack.c.l.b16 %v1299
        %v2405 = vunpack.c.l.b16 %v1300
        %v2406 = vunpack.c.l.b16 %v1301
        %v2407 = vunpack.c.l.b16 %v1302
        %v2408 = vunpack.c.l.b16 %v1303
        %v2409 = vunpack.c.l.b16 %v1304
        %v2410 = vunpack.c.l.b16 %v1305
        %v2411 = vunpack.c.l.b16 %v1306
        %v2412 = vunpack.c.l.b16 %v1307
        %v2413 = vunpack.c.l.b16 %v1308
        %v2414 = vunpack.c.l.b16 %v1309
        %v2415 = vunpack.c.l.b16 %v1310
        %v2416 = vunpack.c.l.b16 %v1311
        %v2417 = vunpack.c.l.b16 %v1312
        %v2418 = vunpack.c.l.b16 %v1313
        %v2419 = vunpack.c.l.b16 %v1314
        %v2420 = vunpack.c.l.b16 %v1315
        %v2421 = vunpack.c.l.b16 %v1316
        %v2422 = vunpack.c.l.b16 %v1317
        %v2423 = vunpack.c.l.b16 %v1318
        %v2424 = vunpack.c.l.b16 %v1319
        %v2425 = vunpack.c.l.b16 %v1320
        %v2426 = vunpack.c.l.b16 %v1321
        %v2427 = vunpack.c.l.b16 %v1322
        %v2428 = vunpack.c.l.b16 %v1323
        %v2429 = vunpack.c.l.b16 %v1324
        %v2430 = vunpack.c.l.b16 %v1325
        %v2431 = vunpack.c.l.b16 %v1326
        %v2432 = vunpack.c.l.b16 %v1327
        %v2433 = vunpack.c.l.b16 %v1328
        %v2434 = vunpack.c.l.b16 %v1329
        %v2435 = vunpack.c.l.b16 %v1330
        %v2436 = vunpack.c.l.b16 %v1331
        %v2437 = vunpack.c.l.b16 %v1332
        %v2438 = vunpack.c.l.b16 %v1333
        %v2439 = vunpack.c.l.b16 %v1334
        %v2440 = vpack.c.b16 %v2393, %v2392
        %v2441 = vpack.c.b16 %v2394, %v2394
        %v2442 = vpack.c.b16 %v2396, %v2395
        %v2443 = vpack.c.b16 %v2397, %v2397
        %v2444 = vpack.c.b16 %v2399, %v2398
        %v2445 = vpack.c.b16 %v2400, %v2400
        %v2446 = vpack.c.b16 %v2402, %v2401
        %v2447 = vpack.c.b16 %v2403, %v2403
        %v2448 = vpack.c.b16 %v2405, %v2404
        %v2449 = vpack.c.b16 %v2406, %v2406
        %v2450 = vpack.c.b16 %v2408, %v2407
        %v2451 = vpack.c.b16 %v2409, %v2409
        %v2452 = vpack.c.b16 %v2411, %v2410
        %v2453 = vpack.c.b16 %v2412, %v2412
        %v2454 = vpack.c.b16 %v2414, %v2413
        %v2455 = vpack.c.b16 %v2415, %v2415
        %v2456 = vpack.c.b16 %v2417, %v2416
        %v2457 = vpack.c.b16 %v2418, %v2418
        %v2458 = vpack.c.b16 %v2420, %v2419
        %v2459 = vpack.c.b16 %v2421, %v2421
        %v2460 = vpack.c.b16 %v2423, %v2422
        %v2461 = vpack.c.b16 %v2424, %v2424
        %v2462 = vpack.c.b16 %v2426, %v2425
        %v2463 = vpack.c.b16 %v2427, %v2427
        %v2464 = vpack.c.b16 %v2429, %v2428
        %v2465 = vpack.c.b16 %v2430, %v2430
        %v2466 = vpack.c.b16 %v2432, %v2431
        %v2467 = vpack.c.b16 %v2433, %v2433
        %v2468 = vpack.c.b16 %v2435, %v2434
        %v2469 = vpack.c.b16 %v2436, %v2436
        %v2470 = vpack.c.b16 %v2438, %v2437
        %v2471 = vpack.c.b16 %v2439, %v2439
        %2472 = vrot.lane.b32.xlu0 %v2440, 24
        %v2473 = vpop.permute.xlu0 %2472
        %2474 = vrot.lane.b32.xlu0 %v2441, 24
        %v2475 = vpop.permute.xlu0 %2474
        %2476 = vrot.lane.b32.xlu0 %v2442, 24
        %v2477 = vpop.permute.xlu0 %2476
        %2478 = vrot.lane.b32.xlu0 %v2443, 24
        %v2479 = vpop.permute.xlu0 %2478
        %2480 = vrot.lane.b32.xlu0 %v2444, 24
        %v2481 = vpop.permute.xlu0 %2480
        %2482 = vrot.lane.b32.xlu0 %v2445, 24
        %v2483 = vpop.permute.xlu0 %2482
        %2484 = vrot.lane.b32.xlu0 %v2446, 24
        %v2485 = vpop.permute.xlu0 %2484
        %2486 = vrot.lane.b32.xlu0 %v2447, 24
        %v2487 = vpop.permute.xlu0 %2486
        %2488 = vrot.lane.b32.xlu0 %v2448, 24
        %v2489 = vpop.permute.xlu0 %2488
        %2490 = vrot.lane.b32.xlu0 %v2449, 24
        %v2491 = vpop.permute.xlu0 %2490
        %2492 = vrot.lane.b32.xlu0 %v2450, 24
        %v2493 = vpop.permute.xlu0 %2492
        %2494 = vrot.lane.b32.xlu0 %v2451, 24
        %v2495 = vpop.permute.xlu0 %2494
        %2496 = vrot.lane.b32.xlu0 %v2452, 24
        %v2497 = vpop.permute.xlu0 %2496
        %2498 = vrot.lane.b32.xlu0 %v2453, 24
        %v2499 = vpop.permute.xlu0 %2498
        %2500 = vrot.lane.b32.xlu0 %v2454, 24
        %v2501 = vpop.permute.xlu0 %2500
        %2502 = vrot.lane.b32.xlu0 %v2455, 24
        %v2503 = vpop.permute.xlu0 %2502
        %2504 = vrot.lane.b32.xlu0 %v2456, 24
        %v2505 = vpop.permute.xlu0 %2504
        %2506 = vrot.lane.b32.xlu0 %v2457, 24
        %v2507 = vpop.permute.xlu0 %2506
        %2508 = vrot.lane.b32.xlu0 %v2458, 24
        %v2509 = vpop.permute.xlu0 %2508
        %2510 = vrot.lane.b32.xlu0 %v2459, 24
        %v2511 = vpop.permute.xlu0 %2510
        %2512 = vrot.lane.b32.xlu0 %v2460, 24
        %v2513 = vpop.permute.xlu0 %2512
        %2514 = vrot.lane.b32.xlu0 %v2461, 24
        %v2515 = vpop.permute.xlu0 %2514
        %2516 = vrot.lane.b32.xlu0 %v2462, 24
        %v2517 = vpop.permute.xlu0 %2516
        %2518 = vrot.lane.b32.xlu0 %v2463, 24
        %v2519 = vpop.permute.xlu0 %2518
        %2520 = vrot.lane.b32.xlu0 %v2464, 24
        %v2521 = vpop.permute.xlu0 %2520
        %2522 = vrot.lane.b32.xlu0 %v2465, 24
        %v2523 = vpop.permute.xlu0 %2522
        %2524 = vrot.lane.b32.xlu0 %v2466, 24
        %v2525 = vpop.permute.xlu0 %2524
        %2526 = vrot.lane.b32.xlu0 %v2467, 24
        %v2527 = vpop.permute.xlu0 %2526
        %2528 = vrot.lane.b32.xlu0 %v2468, 24
        %v2529 = vpop.permute.xlu0 %2528
        %2530 = vrot.lane.b32.xlu0 %v2469, 24
        %v2531 = vpop.permute.xlu0 %2530
        %2532 = vrot.lane.b32.xlu0 %v2470, 24
        %v2533 = vpop.permute.xlu0 %2532
        %2534 = vrot.lane.b32.xlu0 %v2471, 24
        %v2535 = vpop.permute.xlu0 %2534
        %v2536 = vpack.c.b16 %v2394, %v2393
        %v2537 = vpack.c.b16 %v2397, %v2396
        %v2538 = vpack.c.b16 %v2400, %v2399
        %v2539 = vpack.c.b16 %v2403, %v2402
        %v2540 = vpack.c.b16 %v2406, %v2405
        %v2541 = vpack.c.b16 %v2409, %v2408
        %v2542 = vpack.c.b16 %v2412, %v2411
        %v2543 = vpack.c.b16 %v2415, %v2414
        %v2544 = vpack.c.b16 %v2418, %v2417
        %v2545 = vpack.c.b16 %v2421, %v2420
        %v2546 = vpack.c.b16 %v2424, %v2423
        %v2547 = vpack.c.b16 %v2427, %v2426
        %v2548 = vpack.c.b16 %v2430, %v2429
        %v2549 = vpack.c.b16 %v2433, %v2432
        %v2550 = vpack.c.b16 %v2436, %v2435
        %v2551 = vpack.c.b16 %v2439, %v2438
        %v2553 = vshrl.u32 %v2536, 16
        %v2555 = vrot.slane %v2553, 4
        %v2556 = vshll.u32 %v2536, 16
        %v2558 = vrot.slane %v2556, 5
        %v2559 = vor.u32 %v2555, %v2558
        %v2561 = vshrl.u32 %v2537, 16
        %v2563 = vrot.slane %v2561, 4
        %v2564 = vshll.u32 %v2537, 16
        %v2566 = vrot.slane %v2564, 5
        %v2567 = vor.u32 %v2563, %v2566
        %v2569 = vshrl.u32 %v2538, 16
        %v2571 = vrot.slane %v2569, 4
        %v2572 = vshll.u32 %v2538, 16
        %v2574 = vrot.slane %v2572, 5
        %v2575 = vor.u32 %v2571, %v2574
        %v2577 = vshrl.u32 %v2539, 16
        %v2579 = vrot.slane %v2577, 4
        %v2580 = vshll.u32 %v2539, 16
        %v2582 = vrot.slane %v2580, 5
        %v2583 = vor.u32 %v2579, %v2582
        %v2585 = vshrl.u32 %v2540, 16
        %v2587 = vrot.slane %v2585, 4
        %v2588 = vshll.u32 %v2540, 16
        %v2590 = vrot.slane %v2588, 5
        %v2591 = vor.u32 %v2587, %v2590
        %v2593 = vshrl.u32 %v2541, 16
        %v2595 = vrot.slane %v2593, 4
        %v2596 = vshll.u32 %v2541, 16
        %v2598 = vrot.slane %v2596, 5
        %v2599 = vor.u32 %v2595, %v2598
        %v2601 = vshrl.u32 %v2542, 16
        %v2603 = vrot.slane %v2601, 4
        %v2604 = vshll.u32 %v2542, 16
        %v2606 = vrot.slane %v2604, 5
        %v2607 = vor.u32 %v2603, %v2606
        %v2609 = vshrl.u32 %v2543, 16
        %v2611 = vrot.slane %v2609, 4
        %v2612 = vshll.u32 %v2543, 16
        %v2614 = vrot.slane %v2612, 5
        %v2615 = vor.u32 %v2611, %v2614
        %v2617 = vshrl.u32 %v2544, 16
        %v2619 = vrot.slane %v2617, 4
        %v2620 = vshll.u32 %v2544, 16
        %v2622 = vrot.slane %v2620, 5
        %v2623 = vor.u32 %v2619, %v2622
        %v2625 = vshrl.u32 %v2545, 16
        %v2627 = vrot.slane %v2625, 4
        %v2628 = vshll.u32 %v2545, 16
        %v2630 = vrot.slane %v2628, 5
        %v2631 = vor.u32 %v2627, %v2630
        %v2633 = vshrl.u32 %v2546, 16
        %v2635 = vrot.slane %v2633, 4
        %v2636 = vshll.u32 %v2546, 16
        %v2638 = vrot.slane %v2636, 5
        %v2639 = vor.u32 %v2635, %v2638
        %v2641 = vshrl.u32 %v2547, 16
        %v2643 = vrot.slane %v2641, 4
        %v2644 = vshll.u32 %v2547, 16
        %v2646 = vrot.slane %v2644, 5
        %v2647 = vor.u32 %v2643, %v2646
        %v2649 = vshrl.u32 %v2548, 16
        %v2651 = vrot.slane %v2649, 4
        %v2652 = vshll.u32 %v2548, 16
        %v2654 = vrot.slane %v2652, 5
        %v2655 = vor.u32 %v2651, %v2654
        %v2657 = vshrl.u32 %v2549, 16
        %v2659 = vrot.slane %v2657, 4
        %v2660 = vshll.u32 %v2549, 16
        %v2662 = vrot.slane %v2660, 5
        %v2663 = vor.u32 %v2659, %v2662
        %v2665 = vshrl.u32 %v2550, 16
        %v2667 = vrot.slane %v2665, 4
        %v2668 = vshll.u32 %v2550, 16
        %v2670 = vrot.slane %v2668, 5
        %v2671 = vor.u32 %v2667, %v2670
        %v2673 = vshrl.u32 %v2551, 16
        %v2675 = vrot.slane %v2673, 4
        %v2676 = vshll.u32 %v2551, 16
        %v2678 = vrot.slane %v2676, 5
        %v2679 = vor.u32 %v2675, %v2678
        %2680 = vrot.lane.b32.xlu0 %v2559, 28
        %v2681 = vpop.permute.xlu0 %2680
        %2682 = vrot.lane.b32.xlu0 %v2567, 28
        %v2683 = vpop.permute.xlu0 %2682
        %2684 = vrot.lane.b32.xlu0 %v2575, 28
        %v2685 = vpop.permute.xlu0 %2684
        %2686 = vrot.lane.b32.xlu0 %v2583, 28
        %v2687 = vpop.permute.xlu0 %2686
        %2688 = vrot.lane.b32.xlu0 %v2591, 28
        %v2689 = vpop.permute.xlu0 %2688
        %2690 = vrot.lane.b32.xlu0 %v2599, 28
        %v2691 = vpop.permute.xlu0 %2690
        %2692 = vrot.lane.b32.xlu0 %v2607, 28
        %v2693 = vpop.permute.xlu0 %2692
        %2694 = vrot.lane.b32.xlu0 %v2615, 28
        %v2695 = vpop.permute.xlu0 %2694
        %2696 = vrot.lane.b32.xlu0 %v2623, 28
        %v2697 = vpop.permute.xlu0 %2696
        %2698 = vrot.lane.b32.xlu0 %v2631, 28
        %v2699 = vpop.permute.xlu0 %2698
        %2700 = vrot.lane.b32.xlu0 %v2639, 28
        %v2701 = vpop.permute.xlu0 %2700
        %2702 = vrot.lane.b32.xlu0 %v2647, 28
        %v2703 = vpop.permute.xlu0 %2702
        %2704 = vrot.lane.b32.xlu0 %v2655, 28
        %v2705 = vpop.permute.xlu0 %2704
        %2706 = vrot.lane.b32.xlu0 %v2663, 28
        %v2707 = vpop.permute.xlu0 %2706
        %2708 = vrot.lane.b32.xlu0 %v2671, 28
        %v2709 = vpop.permute.xlu0 %2708
        %2710 = vrot.lane.b32.xlu0 %v2679, 28
        %v2711 = vpop.permute.xlu0 %2710
        %v2728 = vunpack.c.l.b16 %v1335
        %v2729 = vunpack.c.l.b16 %v1336
        %v2730 = vunpack.c.l.b16 %v1337
        %v2731 = vunpack.c.l.b16 %v1338
        %v2732 = vunpack.c.l.b16 %v1339
        %v2733 = vunpack.c.l.b16 %v1340
        %v2734 = vunpack.c.l.b16 %v1341
        %v2735 = vunpack.c.l.b16 %v1342
        %v2736 = vunpack.c.l.b16 %v1343
        %v2737 = vunpack.c.l.b16 %v1344
        %v2738 = vunpack.c.l.b16 %v1345
        %v2739 = vunpack.c.l.b16 %v1346
        %v2740 = vunpack.c.l.b16 %v1347
        %v2741 = vunpack.c.l.b16 %v1348
        %v2742 = vunpack.c.l.b16 %v1349
        %v2743 = vunpack.c.l.b16 %v1350
        %v2744 = vpack.c.b16 %v2728, %v2728
        %v2745 = vpack.c.b16 %v2729, %v2729
        %v2746 = vpack.c.b16 %v2730, %v2730
        %v2747 = vpack.c.b16 %v2731, %v2731
        %v2748 = vpack.c.b16 %v2732, %v2732
        %v2749 = vpack.c.b16 %v2733, %v2733
        %v2750 = vpack.c.b16 %v2734, %v2734
        %v2751 = vpack.c.b16 %v2735, %v2735
        %v2752 = vpack.c.b16 %v2736, %v2736
        %v2753 = vpack.c.b16 %v2737, %v2737
        %v2754 = vpack.c.b16 %v2738, %v2738
        %v2755 = vpack.c.b16 %v2739, %v2739
        %v2756 = vpack.c.b16 %v2740, %v2740
        %v2757 = vpack.c.b16 %v2741, %v2741
        %v2758 = vpack.c.b16 %v2742, %v2742
        %v2759 = vpack.c.b16 %v2743, %v2743
        %v2760 = vrot.slane %v2536, 5
        %v2761 = vrot.slane %v2744, 5
        %v2762 = vsel %vm1703, %v2760, %v2761
        %v2763 = vrot.slane %v2537, 5
        %v2764 = vrot.slane %v2745, 5
        %v2765 = vsel %vm1703, %v2763, %v2764
        %v2766 = vrot.slane %v2538, 5
        %v2767 = vrot.slane %v2746, 5
        %v2768 = vsel %vm1703, %v2766, %v2767
        %v2769 = vrot.slane %v2539, 5
        %v2770 = vrot.slane %v2747, 5
        %v2771 = vsel %vm1703, %v2769, %v2770
        %v2772 = vrot.slane %v2540, 5
        %v2773 = vrot.slane %v2748, 5
        %v2774 = vsel %vm1703, %v2772, %v2773
        %v2775 = vrot.slane %v2541, 5
        %v2776 = vrot.slane %v2749, 5
        %v2777 = vsel %vm1703, %v2775, %v2776
        %v2778 = vrot.slane %v2542, 5
        %v2779 = vrot.slane %v2750, 5
        %v2780 = vsel %vm1703, %v2778, %v2779
        %v2781 = vrot.slane %v2543, 5
        %v2782 = vrot.slane %v2751, 5
        %v2783 = vsel %vm1703, %v2781, %v2782
        %v2784 = vrot.slane %v2544, 5
        %v2785 = vrot.slane %v2752, 5
        %v2786 = vsel %vm1703, %v2784, %v2785
        %v2787 = vrot.slane %v2545, 5
        %v2788 = vrot.slane %v2753, 5
        %v2789 = vsel %vm1703, %v2787, %v2788
        %v2790 = vrot.slane %v2546, 5
        %v2791 = vrot.slane %v2754, 5
        %v2792 = vsel %vm1703, %v2790, %v2791
        %v2793 = vrot.slane %v2547, 5
        %v2794 = vrot.slane %v2755, 5
        %v2795 = vsel %vm1703, %v2793, %v2794
        %v2796 = vrot.slane %v2548, 5
        %v2797 = vrot.slane %v2756, 5
        %v2798 = vsel %vm1703, %v2796, %v2797
        %v2799 = vrot.slane %v2549, 5
        %v2800 = vrot.slane %v2757, 5
        %v2801 = vsel %vm1703, %v2799, %v2800
        %v2802 = vrot.slane %v2550, 5
        %v2803 = vrot.slane %v2758, 5
        %v2804 = vsel %vm1703, %v2802, %v2803
        %v2805 = vrot.slane %v2551, 5
        %v2806 = vrot.slane %v2759, 5
        %v2807 = vsel %vm1703, %v2805, %v2806
        %2808 = vrot.lane.b32.xlu0 %v2760, 32
        %v2809 = vpop.permute.xlu0 %2808
        %2810 = vrot.lane.b32.xlu0 %v2762, 32
        %v2811 = vpop.permute.xlu0 %2810
        %2812 = vrot.lane.b32.xlu0 %v2763, 32
        %v2813 = vpop.permute.xlu0 %2812
        %2814 = vrot.lane.b32.xlu0 %v2765, 32
        %v2815 = vpop.permute.xlu0 %2814
        %2816 = vrot.lane.b32.xlu0 %v2766, 32
        %v2817 = vpop.permute.xlu0 %2816
        %2818 = vrot.lane.b32.xlu0 %v2768, 32
        %v2819 = vpop.permute.xlu0 %2818
        %2820 = vrot.lane.b32.xlu0 %v2769, 32
        %v2821 = vpop.permute.xlu0 %2820
        %2822 = vrot.lane.b32.xlu0 %v2771, 32
        %v2823 = vpop.permute.xlu0 %2822
        %2824 = vrot.lane.b32.xlu0 %v2772, 32
        %v2825 = vpop.permute.xlu0 %2824
        %2826 = vrot.lane.b32.xlu0 %v2774, 32
        %v2827 = vpop.permute.xlu0 %2826
        %2828 = vrot.lane.b32.xlu0 %v2775, 32
        %v2829 = vpop.permute.xlu0 %2828
        %2830 = vrot.lane.b32.xlu0 %v2777, 32
        %v2831 = vpop.permute.xlu0 %2830
        %2832 = vrot.lane.b32.xlu0 %v2778, 32
        %v2833 = vpop.permute.xlu0 %2832
        %2834 = vrot.lane.b32.xlu0 %v2780, 32
        %v2835 = vpop.permute.xlu0 %2834
        %2836 = vrot.lane.b32.xlu0 %v2781, 32
        %v2837 = vpop.permute.xlu0 %2836
        %2838 = vrot.lane.b32.xlu0 %v2783, 32
        %v2839 = vpop.permute.xlu0 %2838
        %2840 = vrot.lane.b32.xlu0 %v2784, 32
        %v2841 = vpop.permute.xlu0 %2840
        %2842 = vrot.lane.b32.xlu0 %v2786, 32
        %v2843 = vpop.permute.xlu0 %2842
        %2844 = vrot.lane.b32.xlu0 %v2787, 32
        %v2845 = vpop.permute.xlu0 %2844
        %2846 = vrot.lane.b32.xlu0 %v2789, 32
        %v2847 = vpop.permute.xlu0 %2846
        %2848 = vrot.lane.b32.xlu0 %v2790, 32
        %v2849 = vpop.permute.xlu0 %2848
        %2850 = vrot.lane.b32.xlu0 %v2792, 32
        %v2851 = vpop.permute.xlu0 %2850
        %2852 = vrot.lane.b32.xlu0 %v2793, 32
        %v2853 = vpop.permute.xlu0 %2852
        %2854 = vrot.lane.b32.xlu0 %v2795, 32
        %v2855 = vpop.permute.xlu0 %2854
        %2856 = vrot.lane.b32.xlu0 %v2796, 32
        %v2857 = vpop.permute.xlu0 %2856
        %2858 = vrot.lane.b32.xlu0 %v2798, 32
        %v2859 = vpop.permute.xlu0 %2858
        %2860 = vrot.lane.b32.xlu0 %v2799, 32
        %v2861 = vpop.permute.xlu0 %2860
        %2862 = vrot.lane.b32.xlu0 %v2801, 32
        %v2863 = vpop.permute.xlu0 %2862
        %2864 = vrot.lane.b32.xlu0 %v2802, 32
        %v2865 = vpop.permute.xlu0 %2864
        %2866 = vrot.lane.b32.xlu0 %v2804, 32
        %v2867 = vpop.permute.xlu0 %2866
        %2868 = vrot.lane.b32.xlu0 %v2805, 32
        %v2869 = vpop.permute.xlu0 %2868
        %2870 = vrot.lane.b32.xlu0 %v2807, 32
        %v2871 = vpop.permute.xlu0 %2870
        %v2874 = vsel %vm674, %v1447, %v1624
        %v2876 = vsel %vm674, %v1448, %v1624
        %v2879 = vsel %vm674, %v1449, %v1626
        %v2881 = vsel %vm674, %v1450, %v1626
        %v2884 = vsel %vm674, %v1451, %v1628
        %v2886 = vsel %vm674, %v1452, %v1628
        %v2889 = vsel %vm674, %v1453, %v1630
        %v2891 = vsel %vm674, %v1454, %v1630
        %v2894 = vsel %vm674, %v1455, %v1632
        %v2896 = vsel %vm674, %v1456, %v1632
        %v2899 = vsel %vm674, %v1457, %v1634
        %v2901 = vsel %vm674, %v1458, %v1634
        %v2904 = vsel %vm674, %v1459, %v1636
        %v2906 = vsel %vm674, %v1460, %v1636
        %v2909 = vsel %vm674, %v1461, %v1638
        %v2911 = vsel %vm674, %v1462, %v1638
        %v2914 = vsel %vm674, %v1463, %v1640
        %v2916 = vsel %vm674, %v1464, %v1640
        %v2919 = vsel %vm674, %v1465, %v1642
        %v2921 = vsel %vm674, %v1466, %v1642
        %v2924 = vsel %vm674, %v1467, %v1644
        %v2926 = vsel %vm674, %v1468, %v1644
        %v2929 = vsel %vm674, %v1469, %v1646
        %v2931 = vsel %vm674, %v1470, %v1646
        %v2934 = vsel %vm674, %v1471, %v1648
        %v2936 = vsel %vm674, %v1472, %v1648
        %v2939 = vsel %vm674, %v1473, %v1650
        %v2941 = vsel %vm674, %v1474, %v1650
        %v2944 = vsel %vm674, %v1475, %v1652
        %v2946 = vsel %vm674, %v1476, %v1652
        %v2949 = vsel %vm674, %v1477, %v1654
        %v2951 = vsel %vm674, %v1478, %v1654
        %vm2952 = vcmask 64512
        %v2954 = vsel %vm2952, %v2874, %v1753
        %v2956 = vsel %vm2952, %v2876, %v1755
        %v2958 = vsel %vm2952, %v2879, %v1757
        %v2960 = vsel %vm2952, %v2881, %v1759
        %v2962 = vsel %vm2952, %v2884, %v1761
        %v2964 = vsel %vm2952, %v2886, %v1763
        %v2966 = vsel %vm2952, %v2889, %v1765
        %v2968 = vsel %vm2952, %v2891, %v1767
        %v2970 = vsel %vm2952, %v2894, %v1769
        %v2972 = vsel %vm2952, %v2896, %v1771
        %v2974 = vsel %vm2952, %v2899, %v1773
        %v2976 = vsel %vm2952, %v2901, %v1775
        %v2978 = vsel %vm2952, %v2904, %v1777
        %v2980 = vsel %vm2952, %v2906, %v1779
        %v2982 = vsel %vm2952, %v2909, %v1781
        %v2984 = vsel %vm2952, %v2911, %v1783
        %v2986 = vsel %vm2952, %v2914, %v1785
        %v2988 = vsel %vm2952, %v2916, %v1787
        %v2990 = vsel %vm2952, %v2919, %v1789
        %v2992 = vsel %vm2952, %v2921, %v1791
        %v2994 = vsel %vm2952, %v2924, %v1793
        %v2996 = vsel %vm2952, %v2926, %v1795
        %v2998 = vsel %vm2952, %v2929, %v1797
        %v3000 = vsel %vm2952, %v2931, %v1799
        %v3002 = vsel %vm2952, %v2934, %v1801
        %v3004 = vsel %vm2952, %v2936, %v1803
        %v3006 = vsel %vm2952, %v2939, %v1805
        %v3008 = vsel %vm2952, %v2941, %v1807
        %v3010 = vsel %vm2952, %v2944, %v1809
        %v3012 = vsel %vm2952, %v2946, %v1811
        %v3014 = vsel %vm2952, %v2949, %v1813
        %v3016 = vsel %vm2952, %v2951, %v1815
        %vm3017 = vcmask 97280
        %v3019 = vsel %vm3017, %v2954, %v1945
        %v3021 = vsel %vm3017, %v2956, %v1947
        %v3023 = vsel %vm3017, %v2958, %v1949
        %v3025 = vsel %vm3017, %v2960, %v1951
        %v3027 = vsel %vm3017, %v2962, %v1953
        %v3029 = vsel %vm3017, %v2964, %v1955
        %v3031 = vsel %vm3017, %v2966, %v1957
        %v3033 = vsel %vm3017, %v2968, %v1959
        %v3035 = vsel %vm3017, %v2970, %v1961
        %v3037 = vsel %vm3017, %v2972, %v1963
        %v3039 = vsel %vm3017, %v2974, %v1965
        %v3041 = vsel %vm3017, %v2976, %v1967
        %v3043 = vsel %vm3017, %v2978, %v1969
        %v3045 = vsel %vm3017, %v2980, %v1971
        %v3047 = vsel %vm3017, %v2982, %v1973
        %v3049 = vsel %vm3017, %v2984, %v1975
        %v3051 = vsel %vm3017, %v2986, %v1977
        %v3053 = vsel %vm3017, %v2988, %v1979
        %v3055 = vsel %vm3017, %v2990, %v1981
        %v3057 = vsel %vm3017, %v2992, %v1983
        %v3059 = vsel %vm3017, %v2994, %v1985
        %v3061 = vsel %vm3017, %v2996, %v1987
        %v3063 = vsel %vm3017, %v2998, %v1989
        %v3065 = vsel %vm3017, %v3000, %v1991
        %v3067 = vsel %vm3017, %v3002, %v1993
        %v3069 = vsel %vm3017, %v3004, %v1995
        %v3071 = vsel %vm3017, %v3006, %v1997
        %v3073 = vsel %vm3017, %v3008, %v1999
        %v3075 = vsel %vm3017, %v3010, %v2001
        %v3077 = vsel %vm3017, %v3012, %v2003
        %v3079 = vsel %vm3017, %v3014, %v2005
        %v3081 = vsel %vm3017, %v3016, %v2007
        %vm3082 = vcmask 130048
        %v3084 = vsel %vm3082, %v3019, %v2153
        %v3085 = vsel %vm3082, %v3021, %v2153
        %v3087 = vsel %vm3082, %v3023, %v2155
        %v3088 = vsel %vm3082, %v3025, %v2155
        %v3090 = vsel %vm3082, %v3027, %v2157
        %v3091 = vsel %vm3082, %v3029, %v2157
        %v3093 = vsel %vm3082, %v3031, %v2159
        %v3094 = vsel %vm3082, %v3033, %v2159
        %v3096 = vsel %vm3082, %v3035, %v2161
        %v3097 = vsel %vm3082, %v3037, %v2161
        %v3099 = vsel %vm3082, %v3039, %v2163
        %v3100 = vsel %vm3082, %v3041, %v2163
        %v3102 = vsel %vm3082, %v3043, %v2165
        %v3103 = vsel %vm3082, %v3045, %v2165
        %v3105 = vsel %vm3082, %v3047, %v2167
        %v3106 = vsel %vm3082, %v3049, %v2167
        %v3108 = vsel %vm3082, %v3051, %v2169
        %v3109 = vsel %vm3082, %v3053, %v2169
        %v3111 = vsel %vm3082, %v3055, %v2171
        %v3112 = vsel %vm3082, %v3057, %v2171
        %v3114 = vsel %vm3082, %v3059, %v2173
        %v3115 = vsel %vm3082, %v3061, %v2173
        %v3117 = vsel %vm3082, %v3063, %v2175
        %v3118 = vsel %vm3082, %v3065, %v2175
        %v3120 = vsel %vm3082, %v3067, %v2177
        %v3121 = vsel %vm3082, %v3069, %v2177
        %v3123 = vsel %vm3082, %v3071, %v2179
        %v3124 = vsel %vm3082, %v3073, %v2179
        %v3126 = vsel %vm3082, %v3075, %v2181
        %v3127 = vsel %vm3082, %v3077, %v2181
        %v3129 = vsel %vm3082, %v3079, %v2183
        %v3130 = vsel %vm3082, %v3081, %v2183
        %vm3131 = vcmask 162816
        %v3133 = vsel %vm3131, %v3084, %v2281
        %v3135 = vsel %vm3131, %v3085, %v2283
        %v3137 = vsel %vm3131, %v3087, %v2285
        %v3139 = vsel %vm3131, %v3088, %v2287
        %v3141 = vsel %vm3131, %v3090, %v2289
        %v3143 = vsel %vm3131, %v3091, %v2291
        %v3145 = vsel %vm3131, %v3093, %v2293
        %v3147 = vsel %vm3131, %v3094, %v2295
        %v3149 = vsel %vm3131, %v3096, %v2297
        %v3151 = vsel %vm3131, %v3097, %v2299
        %v3153 = vsel %vm3131, %v3099, %v2301
        %v3155 = vsel %vm3131, %v3100, %v2303
        %v3157 = vsel %vm3131, %v3102, %v2305
        %v3159 = vsel %vm3131, %v3103, %v2307
        %v3161 = vsel %vm3131, %v3105, %v2309
        %v3163 = vsel %vm3131, %v3106, %v2311
        %v3165 = vsel %vm3131, %v3108, %v2313
        %v3167 = vsel %vm3131, %v3109, %v2315
        %v3169 = vsel %vm3131, %v3111, %v2317
        %v3171 = vsel %vm3131, %v3112, %v2319
        %v3173 = vsel %vm3131, %v3114, %v2321
        %v3175 = vsel %vm3131, %v3115, %v2323
        %v3177 = vsel %vm3131, %v3117, %v2325
        %v3179 = vsel %vm3131, %v3118, %v2327
        %v3181 = vsel %vm3131, %v3120, %v2329
        %v3183 = vsel %vm3131, %v3121, %v2331
        %v3185 = vsel %vm3131, %v3123, %v2333
        %v3187 = vsel %vm3131, %v3124, %v2335
        %v3189 = vsel %vm3131, %v3126, %v2337
        %v3191 = vsel %vm3131, %v3127, %v2339
        %v3193 = vsel %vm3131, %v3129, %v2341
        %v3195 = vsel %vm3131, %v3130, %v2343
        %vm3196 = vcmask 195584
        %v3198 = vsel %vm3196, %v3133, %v2473
        %v3200 = vsel %vm3196, %v3135, %v2475
        %v3202 = vsel %vm3196, %v3137, %v2477
        %v3204 = vsel %vm3196, %v3139, %v2479
        %v3206 = vsel %vm3196, %v3141, %v2481
        %v3208 = vsel %vm3196, %v3143, %v2483
        %v3210 = vsel %vm3196, %v3145, %v2485
        %v3212 = vsel %vm3196, %v3147, %v2487
        %v3214 = vsel %vm3196, %v3149, %v2489
        %v3216 = vsel %vm3196, %v3151, %v2491
        %v3218 = vsel %vm3196, %v3153, %v2493
        %v3220 = vsel %vm3196, %v3155, %v2495
        %v3222 = vsel %vm3196, %v3157, %v2497
        %v3224 = vsel %vm3196, %v3159, %v2499
        %v3226 = vsel %vm3196, %v3161, %v2501
        %v3228 = vsel %vm3196, %v3163, %v2503
        %v3230 = vsel %vm3196, %v3165, %v2505
        %v3232 = vsel %vm3196, %v3167, %v2507
        %v3234 = vsel %vm3196, %v3169, %v2509
        %v3236 = vsel %vm3196, %v3171, %v2511
        %v3238 = vsel %vm3196, %v3173, %v2513
        %v3240 = vsel %vm3196, %v3175, %v2515
        %v3242 = vsel %vm3196, %v3177, %v2517
        %v3244 = vsel %vm3196, %v3179, %v2519
        %v3246 = vsel %vm3196, %v3181, %v2521
        %v3248 = vsel %vm3196, %v3183, %v2523
        %v3250 = vsel %vm3196, %v3185, %v2525
        %v3252 = vsel %vm3196, %v3187, %v2527
        %v3254 = vsel %vm3196, %v3189, %v2529
        %v3256 = vsel %vm3196, %v3191, %v2531
        %v3258 = vsel %vm3196, %v3193, %v2533
        %v3260 = vsel %vm3196, %v3195, %v2535
        %vm3261 = vcmask 228352
        %v3263 = vsel %vm3261, %v3198, %v2681
        %v3264 = vsel %vm3261, %v3200, %v2681
        %v3266 = vsel %vm3261, %v3202, %v2683
        %v3267 = vsel %vm3261, %v3204, %v2683
        %v3269 = vsel %vm3261, %v3206, %v2685
        %v3270 = vsel %vm3261, %v3208, %v2685
        %v3272 = vsel %vm3261, %v3210, %v2687
        %v3273 = vsel %vm3261, %v3212, %v2687
        %v3275 = vsel %vm3261, %v3214, %v2689
        %v3276 = vsel %vm3261, %v3216, %v2689
        %v3278 = vsel %vm3261, %v3218, %v2691
        %v3279 = vsel %vm3261, %v3220, %v2691
        %v3281 = vsel %vm3261, %v3222, %v2693
        %v3282 = vsel %vm3261, %v3224, %v2693
        %v3284 = vsel %vm3261, %v3226, %v2695
        %v3285 = vsel %vm3261, %v3228, %v2695
        %v3287 = vsel %vm3261, %v3230, %v2697
        %v3288 = vsel %vm3261, %v3232, %v2697
        %v3290 = vsel %vm3261, %v3234, %v2699
        %v3291 = vsel %vm3261, %v3236, %v2699
        %v3293 = vsel %vm3261, %v3238, %v2701
        %v3294 = vsel %vm3261, %v3240, %v2701
        %v3296 = vsel %vm3261, %v3242, %v2703
        %v3297 = vsel %vm3261, %v3244, %v2703
        %v3299 = vsel %vm3261, %v3246, %v2705
        %v3300 = vsel %vm3261, %v3248, %v2705
        %v3302 = vsel %vm3261, %v3250, %v2707
        %v3303 = vsel %vm3261, %v3252, %v2707
        %v3305 = vsel %vm3261, %v3254, %v2709
        %v3306 = vsel %vm3261, %v3256, %v2709
        %v3308 = vsel %vm3261, %v3258, %v2711
        %v3309 = vsel %vm3261, %v3260, %v2711
        %vm3310 = vcmask 261120
        %v3312 = vsel %vm3310, %v3263, %v2809
        %v3314 = vsel %vm3310, %v3264, %v2811
        %v3316 = vsel %vm3310, %v3266, %v2813
        %v3318 = vsel %vm3310, %v3267, %v2815
        %v3320 = vsel %vm3310, %v3269, %v2817
        %v3322 = vsel %vm3310, %v3270, %v2819
        %v3324 = vsel %vm3310, %v3272, %v2821
        %v3326 = vsel %vm3310, %v3273, %v2823
        %v3328 = vsel %vm3310, %v3275, %v2825
        %v3330 = vsel %vm3310, %v3276, %v2827
        %v3332 = vsel %vm3310, %v3278, %v2829
        %v3334 = vsel %vm3310, %v3279, %v2831
        %v3336 = vsel %vm3310, %v3281, %v2833
        %v3338 = vsel %vm3310, %v3282, %v2835
        %v3340 = vsel %vm3310, %v3284, %v2837
        %v3342 = vsel %vm3310, %v3285, %v2839
        %v3344 = vsel %vm3310, %v3287, %v2841
        %v3346 = vsel %vm3310, %v3288, %v2843
        %v3348 = vsel %vm3310, %v3290, %v2845
        %v3350 = vsel %vm3310, %v3291, %v2847
        %v3352 = vsel %vm3310, %v3293, %v2849
        %v3354 = vsel %vm3310, %v3294, %v2851
        %v3356 = vsel %vm3310, %v3296, %v2853
        %v3358 = vsel %vm3310, %v3297, %v2855
        %v3360 = vsel %vm3310, %v3299, %v2857
        %v3362 = vsel %vm3310, %v3300, %v2859
        %v3364 = vsel %vm3310, %v3302, %v2861
        %v3366 = vsel %vm3310, %v3303, %v2863
        %v3368 = vsel %vm3310, %v3305, %v2865
        %v3370 = vsel %vm3310, %v3306, %v2867
        %v3372 = vsel %vm3310, %v3308, %v2869
        %v3374 = vsel %vm3310, %v3309, %v2871
        %vm3375 = vsmask.f32 4352
        %v3376 = vshrl.u32 %v3312, 16
        %v3378 = vrot.slane %v3376, 3
        %v3379 = vshll.u32 %v3312, 16
        %v3381 = vrot.slane %v3379, 4
        %v3382 = vor.u32 %v3378, %v3381
        %v3383 = vshrl.u32 %v3314, 16
        %v3385 = vrot.slane %v3383, 3
        %v3386 = vshll.u32 %v3314, 16
        %v3388 = vrot.slane %v3386, 4
        %v3389 = vor.u32 %v3385, %v3388
        %v3390 = vsel %vm3375, %v3382, %v3389
        %v3391 = vshrl.u32 %v3316, 16
        %v3393 = vrot.slane %v3391, 3
        %v3394 = vshll.u32 %v3316, 16
        %v3396 = vrot.slane %v3394, 4
        %v3397 = vor.u32 %v3393, %v3396
        %v3398 = vshrl.u32 %v3318, 16
        %v3400 = vrot.slane %v3398, 3
        %v3401 = vshll.u32 %v3318, 16
        %v3403 = vrot.slane %v3401, 4
        %v3404 = vor.u32 %v3400, %v3403
        %v3405 = vsel %vm3375, %v3397, %v3404
        %v3406 = vshrl.u32 %v3320, 16
        %v3408 = vrot.slane %v3406, 3
        %v3409 = vshll.u32 %v3320, 16
        %v3411 = vrot.slane %v3409, 4
        %v3412 = vor.u32 %v3408, %v3411
        %v3413 = vshrl.u32 %v3322, 16
        %v3415 = vrot.slane %v3413, 3
        %v3416 = vshll.u32 %v3322, 16
        %v3418 = vrot.slane %v3416, 4
        %v3419 = vor.u32 %v3415, %v3418
        %v3420 = vsel %vm3375, %v3412, %v3419
        %v3421 = vshrl.u32 %v3324, 16
        %v3423 = vrot.slane %v3421, 3
        %v3424 = vshll.u32 %v3324, 16
        %v3426 = vrot.slane %v3424, 4
        %v3427 = vor.u32 %v3423, %v3426
        %v3428 = vshrl.u32 %v3326, 16
        %v3430 = vrot.slane %v3428, 3
        %v3431 = vshll.u32 %v3326, 16
        %v3433 = vrot.slane %v3431, 4
        %v3434 = vor.u32 %v3430, %v3433
        %v3435 = vsel %vm3375, %v3427, %v3434
        %v3436 = vshrl.u32 %v3328, 16
        %v3438 = vrot.slane %v3436, 3
        %v3439 = vshll.u32 %v3328, 16
        %v3441 = vrot.slane %v3439, 4
        %v3442 = vor.u32 %v3438, %v3441
        %v3443 = vshrl.u32 %v3330, 16
        %v3445 = vrot.slane %v3443, 3
        %v3446 = vshll.u32 %v3330, 16
        %v3448 = vrot.slane %v3446, 4
        %v3449 = vor.u32 %v3445, %v3448
        %v3450 = vsel %vm3375, %v3442, %v3449
        %v3451 = vshrl.u32 %v3332, 16
        %v3453 = vrot.slane %v3451, 3
        %v3454 = vshll.u32 %v3332, 16
        %v3456 = vrot.slane %v3454, 4
        %v3457 = vor.u32 %v3453, %v3456
        %v3458 = vshrl.u32 %v3334, 16
        %v3460 = vrot.slane %v3458, 3
        %v3461 = vshll.u32 %v3334, 16
        %v3463 = vrot.slane %v3461, 4
        %v3464 = vor.u32 %v3460, %v3463
        %v3465 = vsel %vm3375, %v3457, %v3464
        %v3466 = vshrl.u32 %v3336, 16
        %v3468 = vrot.slane %v3466, 3
        %v3469 = vshll.u32 %v3336, 16
        %v3471 = vrot.slane %v3469, 4
        %v3472 = vor.u32 %v3468, %v3471
        %v3473 = vshrl.u32 %v3338, 16
        %v3475 = vrot.slane %v3473, 3
        %v3476 = vshll.u32 %v3338, 16
        %v3478 = vrot.slane %v3476, 4
        %v3479 = vor.u32 %v3475, %v3478
        %v3480 = vsel %vm3375, %v3472, %v3479
        %v3481 = vshrl.u32 %v3340, 16
        %v3483 = vrot.slane %v3481, 3
        %v3484 = vshll.u32 %v3340, 16
        %v3486 = vrot.slane %v3484, 4
        %v3487 = vor.u32 %v3483, %v3486
        %v3488 = vshrl.u32 %v3342, 16
        %v3490 = vrot.slane %v3488, 3
        %v3491 = vshll.u32 %v3342, 16
        %v3493 = vrot.slane %v3491, 4
        %v3494 = vor.u32 %v3490, %v3493
        %v3495 = vsel %vm3375, %v3487, %v3494
        %v3496 = vshrl.u32 %v3344, 16
        %v3498 = vrot.slane %v3496, 3
        %v3499 = vshll.u32 %v3344, 16
        %v3501 = vrot.slane %v3499, 4
        %v3502 = vor.u32 %v3498, %v3501
        %v3503 = vshrl.u32 %v3346, 16
        %v3505 = vrot.slane %v3503, 3
        %v3506 = vshll.u32 %v3346, 16
        %v3508 = vrot.slane %v3506, 4
        %v3509 = vor.u32 %v3505, %v3508
        %v3510 = vsel %vm3375, %v3502, %v3509
        %v3511 = vshrl.u32 %v3348, 16
        %v3513 = vrot.slane %v3511, 3
        %v3514 = vshll.u32 %v3348, 16
        %v3516 = vrot.slane %v3514, 4
        %v3517 = vor.u32 %v3513, %v3516
        %v3518 = vshrl.u32 %v3350, 16
        %v3520 = vrot.slane %v3518, 3
        %v3521 = vshll.u32 %v3350, 16
        %v3523 = vrot.slane %v3521, 4
        %v3524 = vor.u32 %v3520, %v3523
        %v3525 = vsel %vm3375, %v3517, %v3524
        %v3526 = vshrl.u32 %v3352, 16
        %v3528 = vrot.slane %v3526, 3
        %v3529 = vshll.u32 %v3352, 16
        %v3531 = vrot.slane %v3529, 4
        %v3532 = vor.u32 %v3528, %v3531
        %v3533 = vshrl.u32 %v3354, 16
        %v3535 = vrot.slane %v3533, 3
        %v3536 = vshll.u32 %v3354, 16
        %v3538 = vrot.slane %v3536, 4
        %v3539 = vor.u32 %v3535, %v3538
        %v3540 = vsel %vm3375, %v3532, %v3539
        %v3541 = vshrl.u32 %v3356, 16
        %v3543 = vrot.slane %v3541, 3
        %v3544 = vshll.u32 %v3356, 16
        %v3546 = vrot.slane %v3544, 4
        %v3547 = vor.u32 %v3543, %v3546
        %v3548 = vshrl.u32 %v3358, 16
        %v3550 = vrot.slane %v3548, 3
        %v3551 = vshll.u32 %v3358, 16
        %v3553 = vrot.slane %v3551, 4
        %v3554 = vor.u32 %v3550, %v3553
        %v3555 = vsel %vm3375, %v3547, %v3554
        %v3556 = vshrl.u32 %v3360, 16
        %v3558 = vrot.slane %v3556, 3
        %v3559 = vshll.u32 %v3360, 16
        %v3561 = vrot.slane %v3559, 4
        %v3562 = vor.u32 %v3558, %v3561
        %v3563 = vshrl.u32 %v3362, 16
        %v3565 = vrot.slane %v3563, 3
        %v3566 = vshll.u32 %v3362, 16
        %v3568 = vrot.slane %v3566, 4
        %v3569 = vor.u32 %v3565, %v3568
        %v3570 = vsel %vm3375, %v3562, %v3569
        %v3571 = vshrl.u32 %v3364, 16
        %v3573 = vrot.slane %v3571, 3
        %v3574 = vshll.u32 %v3364, 16
        %v3576 = vrot.slane %v3574, 4
        %v3577 = vor.u32 %v3573, %v3576
        %v3578 = vshrl.u32 %v3366, 16
        %v3580 = vrot.slane %v3578, 3
        %v3581 = vshll.u32 %v3366, 16
        %v3583 = vrot.slane %v3581, 4
        %v3584 = vor.u32 %v3580, %v3583
        %v3585 = vsel %vm3375, %v3577, %v3584
        %v3586 = vshrl.u32 %v3368, 16
        %v3588 = vrot.slane %v3586, 3
        %v3589 = vshll.u32 %v3368, 16
        %v3591 = vrot.slane %v3589, 4
        %v3592 = vor.u32 %v3588, %v3591
        %v3593 = vshrl.u32 %v3370, 16
        %v3595 = vrot.slane %v3593, 3
        %v3596 = vshll.u32 %v3370, 16
        %v3598 = vrot.slane %v3596, 4
        %v3599 = vor.u32 %v3595, %v3598
        %v3600 = vsel %vm3375, %v3592, %v3599
        %v3601 = vshrl.u32 %v3372, 16
        %v3603 = vrot.slane %v3601, 3
        %v3604 = vshll.u32 %v3372, 16
        %v3606 = vrot.slane %v3604, 4
        %v3607 = vor.u32 %v3603, %v3606
        %v3608 = vshrl.u32 %v3374, 16
        %v3610 = vrot.slane %v3608, 3
        %v3611 = vshll.u32 %v3374, 16
        %v3613 = vrot.slane %v3611, 4
        %v3614 = vor.u32 %v3610, %v3613
        %v3615 = vsel %vm3375, %v3607, %v3614
        %v3616 = vld [vmem:[%s4] sm:$0xf]
        %v3617 = vld [vmem:[%s4 + $0x4] sm:$0xf]
        %v3618 = vld [vmem:[%s4 + $0x8] sm:$0xf]
        %v3619 = vld [vmem:[%s4 + $0xc] sm:$0xf]
        %v3620 = vld [vmem:[%s4 + $0x10] sm:$0x3]
        %v3626 = vunpack.c.l.b16 %v3616
        %v3627 = vunpack.c.l.b16 %v3617
        %v3628 = vunpack.c.l.b16 %v3618
        %v3629 = vunpack.c.l.b16 %v3619
        %v3630 = vunpack.c.l.b16 %v3620
        %v3631 = vpack.c.b16 %v3627, %v3626
        %v3632 = vpack.c.b16 %v3629, %v3628
        %v3633 = vpack.c.b16 %v3630, %v3630
        %vm3636 = vcmask 293888
        %v3638 = vsel %vm3636, %v3390, 0
        %v3641 = vsel %vm3636, %v3405, 0
        %v3644 = vsel %vm3636, %v3420, 0
        %v3647 = vsel %vm3636, %v3435, 0
        %v3650 = vsel %vm3636, %v3450, 0
        %v3653 = vsel %vm3636, %v3465, 0
        %v3656 = vsel %vm3636, %v3480, 0
        %v3659 = vsel %vm3636, %v3495, 0
        %v3662 = vsel %vm3636, %v3510, 0
        %v3665 = vsel %vm3636, %v3525, 0
        %v3668 = vsel %vm3636, %v3540, 0
        %v3671 = vsel %vm3636, %v3555, 0
        %v3674 = vsel %vm3636, %v3570, 0
        %v3677 = vsel %vm3636, %v3585, 0
        %v3680 = vsel %vm3636, %v3600, 0
        %v3683 = vsel %vm3636, %v3615, 0
        %v3686 = vsel %vm723, %v3633, 0
        %3688 = vmatprep.subr.bf16.mxu0 0
        %3689 = vmatpush1.bf16.msra.mxu0 %v3631
        %3690 = vmatprep.subr.bf16.mxu0 0
        %3691 = vmatpush1.bf16.msra.mxu0 %v3632
        %3692 = vmatprep.subr.bf16.mxu0 0
        %3693 = vmatpush1.bf16.msra.mxu0 %v3686
        %3694 = vmatprep.subr.bf16.mxu0 0
        %3695 = vmatpush1.bf16.msra.mxu0 0
        %3696 = vmatprep.subr.bf16.mxu0 0
        %3697 = vmatpush1.bf16.msra.mxu0 0
        %3698 = vmatprep.subr.bf16.mxu0 0
        %3699 = vmatpush1.bf16.msra.mxu0 0
        %3700 = vmatprep.subr.bf16.mxu0 0
        %3701 = vmatpush1.bf16.msra.mxu0 0
        %3702 = vmatprep.subr.bf16.mxu0 0
        %3703 = vmatpush1.bf16.msra.mxu0 0
        %3704 = vmatprep.subr.bf16.mxu0 0
        %3705 = vmatpush1.bf16.msra.mxu0 0
        %3706 = vmatprep.subr.bf16.mxu0 0
        %3707 = vmatpush1.bf16.msra.mxu0 0
        %3708 = vmatprep.subr.bf16.mxu0 0
        %3709 = vmatpush1.bf16.msra.mxu0 0
        %3710 = vmatprep.subr.bf16.mxu0 0
        %3711 = vmatpush1.bf16.msra.mxu0 0
        %3712 = vmatprep.subr.bf16.mxu0 0
        %3713 = vmatpush1.bf16.msra.mxu0 0
        %3714 = vmatprep.subr.bf16.mxu0 0
        %3715 = vmatpush1.bf16.msra.mxu0 0
        %3716 = vmatprep.subr.bf16.mxu0 0
        %3717 = vmatpush1.bf16.msra.mxu0 0
        %3718 = vmatprep.subr.bf16.mxu0 0
        %3719 = vmatpush1.bf16.msra.mxu0 0
        %3720 = vmatprep.mubr.bf16.mxu0 0
        %3721 = vmatmul.mubr.bf16.gmra.mrb[0].mxu0 %v3638
        %v3722 = vpop.f32.mrb[0].mxu0
        %v3723 = vadd.f32 0.0, %v3722
        %v3724 = vpop.f32.mrb[0].mxu0
        %v3725 = vpop.f32.mrb[0].mxu0
        %v3726 = vadd.f32 0.0, %v3725
        %v3727 = vpop.f32.mrb[0].mxu0
        %3728 = vmatprep.mubr.bf16.mxu0 0
        %3729 = vmatmul.mubr.bf16.gmra.mrb[0].mxu0 %v3641
        %v3730 = vpop.f32.mrb[0].mxu0
        %v3731 = vadd.f32 0.0, %v3730
        %v3732 = vpop.f32.mrb[0].mxu0
        %v3733 = vpop.f32.mrb[0].mxu0
        %v3734 = vadd.f32 0.0, %v3733
        %v3735 = vpop.f32.mrb[0].mxu0
        %3736 = vmatprep.mubr.bf16.mxu0 0
        %3737 = vmatmul.mubr.bf16.gmra.mrb[0].mxu0 %v3644
        %v3738 = vpop.f32.mrb[0].mxu0
        %v3739 = vadd.f32 0.0, %v3738
        %v3740 = vpop.f32.mrb[0].mxu0
        %v3741 = vpop.f32.mrb[0].mxu0
        %v3742 = vadd.f32 0.0, %v3741
        %v3743 = vpop.f32.mrb[0].mxu0
        %3744 = vmatprep.mubr.bf16.mxu0 0
        %3745 = vmatmul.mubr.bf16.gmra.mrb[0].mxu0 %v3647
        %v3746 = vpop.f32.mrb[0].mxu0
        %v3747 = vadd.f32 0.0, %v3746
        %v3748 = vpop.f32.mrb[0].mxu0
        %v3749 = vpop.f32.mrb[0].mxu0
        %v3750 = vadd.f32 0.0, %v3749
        %v3751 = vpop.f32.mrb[0].mxu0
        %3752 = vmatprep.mubr.bf16.mxu0 0
        %3753 = vmatmul.mubr.bf16.gmra.mrb[0].mxu0 %v3650
        %v3754 = vpop.f32.mrb[0].mxu0
        %v3755 = vadd.f32 0.0, %v3754
        %v3756 = vpop.f32.mrb[0].mxu0
        %v3757 = vpop.f32.mrb[0].mxu0
        %v3758 = vadd.f32 0.0, %v3757
        %v3759 = vpop.f32.mrb[0].mxu0
        %3760 = vmatprep.mubr.bf16.mxu0 0
        %3761 = vmatmul.mubr.bf16.gmra.mrb[0].mxu0 %v3653
        %v3762 = vpop.f32.mrb[0].mxu0
        %v3763 = vadd.f32 0.0, %v3762
        %v3764 = vpop.f32.mrb[0].mxu0
        %v3765 = vpop.f32.mrb[0].mxu0
        %v3766 = vadd.f32 0.0, %v3765
        %v3767 = vpop.f32.mrb[0].mxu0
        %3768 = vmatprep.mubr.bf16.mxu0 0
        %3769 = vmatmul.mubr.bf16.gmra.mrb[0].mxu0 %v3656
        %v3770 = vpop.f32.mrb[0].mxu0
        %v3771 = vadd.f32 0.0, %v3770
        %v3772 = vpop.f32.mrb[0].mxu0
        %v3773 = vpop.f32.mrb[0].mxu0
        %v3774 = vadd.f32 0.0, %v3773
        %v3775 = vpop.f32.mrb[0].mxu0
        %3776 = vmatprep.mubr.bf16.mxu0 0
        %3777 = vmatmul.mubr.bf16.gmra.mrb[0].mxu0 %v3659
        %v3778 = vpop.f32.mrb[0].mxu0
        %v3779 = vadd.f32 0.0, %v3778
        %v3780 = vpop.f32.mrb[0].mxu0
        %v3781 = vpop.f32.mrb[0].mxu0
        %v3782 = vadd.f32 0.0, %v3781
        %v3783 = vpop.f32.mrb[0].mxu0
        %3784 = vmatprep.mubr.bf16.mxu0 0
        %3785 = vmatmul.mubr.bf16.gmra.mrb[0].mxu0 %v3662
        %v3786 = vpop.f32.mrb[0].mxu0
        %v3787 = vadd.f32 0.0, %v3786
        %v3788 = vpop.f32.mrb[0].mxu0
        %v3789 = vpop.f32.mrb[0].mxu0
        %v3790 = vadd.f32 0.0, %v3789
        %v3791 = vpop.f32.mrb[0].mxu0
        %3792 = vmatprep.mubr.bf16.mxu0 0
        %3793 = vmatmul.mubr.bf16.gmra.mrb[0].mxu0 %v3665
        %v3794 = vpop.f32.mrb[0].mxu0
        %v3795 = vadd.f32 0.0, %v3794
        %v3796 = vpop.f32.mrb[0].mxu0
        %v3797 = vpop.f32.mrb[0].mxu0
        %v3798 = vadd.f32 0.0, %v3797
        %v3799 = vpop.f32.mrb[0].mxu0
        %3800 = vmatprep.mubr.bf16.mxu0 0
        %3801 = vmatmul.mubr.bf16.gmra.mrb[0].mxu0 %v3668
        %v3802 = vpop.f32.mrb[0].mxu0
        %v3803 = vadd.f32 0.0, %v3802
        %v3804 = vpop.f32.mrb[0].mxu0
        %v3805 = vpop.f32.mrb[0].mxu0
        %v3806 = vadd.f32 0.0, %v3805
        %v3807 = vpop.f32.mrb[0].mxu0
        %3808 = vmatprep.mubr.bf16.mxu0 0
        %3809 = vmatmul.mubr.bf16.gmra.mrb[0].mxu0 %v3671
        %v3810 = vpop.f32.mrb[0].mxu0
        %v3811 = vadd.f32 0.0, %v3810
        %v3812 = vpop.f32.mrb[0].mxu0
        %v3813 = vpop.f32.mrb[0].mxu0
        %v3814 = vadd.f32 0.0, %v3813
        %v3815 = vpop.f32.mrb[0].mxu0
        %3816 = vmatprep.mubr.bf16.mxu0 0
        %3817 = vmatmul.mubr.bf16.gmra.mrb[0].mxu0 %v3674
        %v3818 = vpop.f32.mrb[0].mxu0
        %v3819 = vadd.f32 0.0, %v3818
        %v3820 = vpop.f32.mrb[0].mxu0
        %v3821 = vpop.f32.mrb[0].mxu0
        %v3822 = vadd.f32 0.0, %v3821
        %v3823 = vpop.f32.mrb[0].mxu0
        %3824 = vmatprep.mubr.bf16.mxu0 0
        %3825 = vmatmul.mubr.bf16.gmra.mrb[0].mxu0 %v3677
        %v3826 = vpop.f32.mrb[0].mxu0
        %v3827 = vadd.f32 0.0, %v3826
        %v3828 = vpop.f32.mrb[0].mxu0
        %v3829 = vpop.f32.mrb[0].mxu0
        %v3830 = vadd.f32 0.0, %v3829
        %v3831 = vpop.f32.mrb[0].mxu0
        %3832 = vmatprep.mubr.bf16.mxu0 0
        %3833 = vmatmul.mubr.bf16.gmra.mrb[0].mxu0 %v3680
        %v3834 = vpop.f32.mrb[0].mxu0
        %v3835 = vadd.f32 0.0, %v3834
        %v3836 = vpop.f32.mrb[0].mxu0
        %v3837 = vpop.f32.mrb[0].mxu0
        %v3838 = vadd.f32 0.0, %v3837
        %v3839 = vpop.f32.mrb[0].mxu0
        %3840 = vmatprep.mubr.bf16.mxu0 0
        %3841 = vmatmul.mubr.bf16.gmra.mrb[0].mxu0 %v3683
        %v3842 = vpop.f32.mrb[0].mxu0
        %v3843 = vadd.f32 0.0, %v3842
        %v3844 = vpop.f32.mrb[0].mxu0
        %v3845 = vpop.f32.mrb[0].mxu0
        %v3846 = vadd.f32 0.0, %v3845
        %v3847 = vpop.f32.mrb[0].mxu0
        %3848 = vdwg.mxu0
        %v3849 = vld [vmem:[%s5] sm:$0x1]
        %v3851 = vlaneseq
        %v3852 = vshrl.u32 %v3851, 7
        %v3853 = vsub.s32 0, %v3852
        %v3854 = vrot.slane %v3849, %v3853
        %v3856 = vmul.f32 %v3723, %v3854
        %v3857 = vmul.f32 %v3726, %v3854
        %v3858 = vmul.f32 %v3731, %v3854
        %v3859 = vmul.f32 %v3734, %v3854
        %v3860 = vmul.f32 %v3739, %v3854
        %v3861 = vmul.f32 %v3742, %v3854
        %v3862 = vmul.f32 %v3747, %v3854
        %v3863 = vmul.f32 %v3750, %v3854
        %v3864 = vmul.f32 %v3755, %v3854
        %v3865 = vmul.f32 %v3758, %v3854
        %v3866 = vmul.f32 %v3763, %v3854
        %v3867 = vmul.f32 %v3766, %v3854
        %v3868 = vmul.f32 %v3771, %v3854
        %v3869 = vmul.f32 %v3774, %v3854
        %v3870 = vmul.f32 %v3779, %v3854
        %v3871 = vmul.f32 %v3782, %v3854
        %v3872 = vmul.f32 %v3787, %v3854
        %v3873 = vmul.f32 %v3790, %v3854
        %v3874 = vmul.f32 %v3795, %v3854
        %v3875 = vmul.f32 %v3798, %v3854
        %v3876 = vmul.f32 %v3803, %v3854
        %v3877 = vmul.f32 %v3806, %v3854
        %v3878 = vmul.f32 %v3811, %v3854
        %v3879 = vmul.f32 %v3814, %v3854
        %v3880 = vmul.f32 %v3819, %v3854
        %v3881 = vmul.f32 %v3822, %v3854
        %v3882 = vmul.f32 %v3827, %v3854
        %v3883 = vmul.f32 %v3830, %v3854
        %v3884 = vmul.f32 %v3835, %v3854
        %v3885 = vmul.f32 %v3838, %v3854
        %v3886 = vmul.f32 %v3843, %v3854
        %v3887 = vmul.f32 %v3846, %v3854
        %v3888 = vld [vmem:[%s6] sm:$0x1]
        %v3890 = vlaneseq
        %v3891 = vshrl.u32 %v3890, 7
        %v3892 = vsub.s32 0, %v3891
        %v3893 = vrot.slane %v3888, %v3892
        %v3895 = vadd.f32 %v3856, %v3893
        %v3896 = vadd.f32 %v3857, %v3893
        %v3897 = vadd.f32 %v3858, %v3893
        %v3898 = vadd.f32 %v3859, %v3893
        %v3899 = vadd.f32 %v3860, %v3893
        %v3900 = vadd.f32 %v3861, %v3893
        %v3901 = vadd.f32 %v3862, %v3893
        %v3902 = vadd.f32 %v3863, %v3893
        %v3903 = vadd.f32 %v3864, %v3893
        %v3904 = vadd.f32 %v3865, %v3893
        %v3905 = vadd.f32 %v3866, %v3893
        %v3906 = vadd.f32 %v3867, %v3893
        %v3907 = vadd.f32 %v3868, %v3893
        %v3908 = vadd.f32 %v3869, %v3893
        %v3909 = vadd.f32 %v3870, %v3893
        %v3910 = vadd.f32 %v3871, %v3893
        %v3911 = vadd.f32 %v3872, %v3893
        %v3912 = vadd.f32 %v3873, %v3893
        %v3913 = vadd.f32 %v3874, %v3893
        %v3914 = vadd.f32 %v3875, %v3893
        %v3915 = vadd.f32 %v3876, %v3893
        %v3916 = vadd.f32 %v3877, %v3893
        %v3917 = vadd.f32 %v3878, %v3893
        %v3918 = vadd.f32 %v3879, %v3893
        %v3919 = vadd.f32 %v3880, %v3893
        %v3920 = vadd.f32 %v3881, %v3893
        %v3921 = vadd.f32 %v3882, %v3893
        %v3922 = vadd.f32 %v3883, %v3893
        %v3923 = vadd.f32 %v3884, %v3893
        %v3924 = vadd.f32 %v3885, %v3893
        %v3925 = vadd.f32 %v3886, %v3893
        %v3926 = vadd.f32 %v3887, %v3893
        %v3927 = vmax.f32 %v3895, 0.0
        %v3928 = vmax.f32 %v3896, 0.0
        %v3929 = vmax.f32 %v3897, 0.0
        %v3930 = vmax.f32 %v3898, 0.0
        %v3931 = vmax.f32 %v3899, 0.0
        %v3932 = vmax.f32 %v3900, 0.0
        %v3933 = vmax.f32 %v3901, 0.0
        %v3934 = vmax.f32 %v3902, 0.0
        %v3935 = vmax.f32 %v3903, 0.0
        %v3936 = vmax.f32 %v3904, 0.0
        %v3937 = vmax.f32 %v3905, 0.0
        %v3938 = vmax.f32 %v3906, 0.0
        %v3939 = vmax.f32 %v3907, 0.0
        %v3940 = vmax.f32 %v3908, 0.0
        %v3941 = vmax.f32 %v3909, 0.0
        %v3942 = vmax.f32 %v3910, 0.0
        %v3943 = vmax.f32 %v3911, 0.0
        %v3944 = vmax.f32 %v3912, 0.0
        %v3945 = vmax.f32 %v3913, 0.0
        %v3946 = vmax.f32 %v3914, 0.0
        %v3947 = vmax.f32 %v3915, 0.0
        %v3948 = vmax.f32 %v3916, 0.0
        %v3949 = vmax.f32 %v3917, 0.0
        %v3950 = vmax.f32 %v3918, 0.0
        %v3951 = vmax.f32 %v3919, 0.0
        %v3952 = vmax.f32 %v3920, 0.0
        %v3953 = vmax.f32 %v3921, 0.0
        %v3954 = vmax.f32 %v3922, 0.0
        %v3955 = vmax.f32 %v3923, 0.0
        %v3956 = vmax.f32 %v3924, 0.0
        %v3957 = vmax.f32 %v3925, 0.0
        %v3958 = vmax.f32 %v3926, 0.0
        %v3959 = vpack.c.bf16 %v3928, %v3927
        %v3960 = vpack.c.bf16 %v3930, %v3929
        %v3961 = vpack.c.bf16 %v3932, %v3931
        %v3962 = vpack.c.bf16 %v3934, %v3933
        %v3963 = vpack.c.bf16 %v3936, %v3935
        %v3964 = vpack.c.bf16 %v3938, %v3937
        %v3965 = vpack.c.bf16 %v3940, %v3939
        %v3966 = vpack.c.bf16 %v3942, %v3941
        %v3967 = vpack.c.bf16 %v3944, %v3943
        %v3968 = vpack.c.bf16 %v3946, %v3945
        %v3969 = vpack.c.bf16 %v3948, %v3947
        %v3970 = vpack.c.bf16 %v3950, %v3949
        %v3971 = vpack.c.bf16 %v3952, %v3951
        %v3972 = vpack.c.bf16 %v3954, %v3953
        %v3973 = vpack.c.bf16 %v3956, %v3955
        %v3974 = vpack.c.bf16 %v3958, %v3957
        %v3975 = vld [vmem:[%s10] sm:$0x3]
        %v3977 = vsel %vm723, %v3975, 0
        %3979 = vmatprep.subr.bf16.mxu0 0
        %3980 = vmatpush1.bf16.msra.mxu0 %v3977
        %3981 = vmatprep.subr.bf16.mxu0 0
        %3982 = vmatpush1.bf16.msra.mxu0 0
        %3983 = vmatprep.subr.bf16.mxu0 0
        %3984 = vmatpush1.bf16.msra.mxu0 0
        %3985 = vmatprep.subr.bf16.mxu0 0
        %3986 = vmatpush1.bf16.msra.mxu0 0
        %3987 = vmatprep.subr.bf16.mxu0 0
        %3988 = vmatpush1.bf16.msra.mxu0 0
        %3989 = vmatprep.subr.bf16.mxu0 0
        %3990 = vmatpush1.bf16.msra.mxu0 0
        %3991 = vmatprep.subr.bf16.mxu0 0
        %3992 = vmatpush1.bf16.msra.mxu0 0
        %3993 = vmatprep.subr.bf16.mxu0 0
        %3994 = vmatpush1.bf16.msra.mxu0 0
        %3995 = vmatprep.subr.bf16.mxu0 0
        %3996 = vmatpush1.bf16.msra.mxu0 0
        %3997 = vmatprep.subr.bf16.mxu0 0
        %3998 = vmatpush1.bf16.msra.mxu0 0
        %3999 = vmatprep.subr.bf16.mxu0 0
        %4000 = vmatpush1.bf16.msra.mxu0 0
        %4001 = vmatprep.subr.bf16.mxu0 0
        %4002 = vmatpush1.bf16.msra.mxu0 0
        %4003 = vmatprep.subr.bf16.mxu0 0
        %4004 = vmatpush1.bf16.msra.mxu0 0
        %4005 = vmatprep.subr.bf16.mxu0 0
        %4006 = vmatpush1.bf16.msra.mxu0 0
        %4007 = vmatprep.subr.bf16.mxu0 0
        %4008 = vmatpush1.bf16.msra.mxu0 0
        %4009 = vmatprep.subr.bf16.mxu0 0
        %4010 = vmatpush1.bf16.msra.mxu0 0
        %4011 = vmatprep.mubr.bf16.mxu0 0
        %4012 = vmatmul.mubr.bf16.gmra.mrb[0].mxu0 %v676
        %v4013 = vpop.f32.mrb[0].mxu0
        %v4014 = vadd.f32 0.0, %v4013
        %v4015 = vpop.f32.mrb[0].mxu0
        %v4016 = vpop.f32.mrb[0].mxu0
        %v4017 = vadd.f32 0.0, %v4016
        %v4018 = vpop.f32.mrb[0].mxu0
        %4019 = vmatprep.mubr.bf16.mxu0 0
        %4020 = vmatmul.mubr.bf16.gmra.mrb[0].mxu0 %v679
        %v4021 = vpop.f32.mrb[0].mxu0
        %v4022 = vadd.f32 0.0, %v4021
        %v4023 = vpop.f32.mrb[0].mxu0
        %v4024 = vpop.f32.mrb[0].mxu0
        %v4025 = vadd.f32 0.0, %v4024
        %v4026 = vpop.f32.mrb[0].mxu0
        %4027 = vmatprep.mubr.bf16.mxu0 0
        %4028 = vmatmul.mubr.bf16.gmra.mrb[0].mxu0 %v682
        %v4029 = vpop.f32.mrb[0].mxu0
        %v4030 = vadd.f32 0.0, %v4029
        %v4031 = vpop.f32.mrb[0].mxu0
        %v4032 = vpop.f32.mrb[0].mxu0
        %v4033 = vadd.f32 0.0, %v4032
        %v4034 = vpop.f32.mrb[0].mxu0
        %4035 = vmatprep.mubr.bf16.mxu0 0
        %4036 = vmatmul.mubr.bf16.gmra.mrb[0].mxu0 %v685
        %v4037 = vpop.f32.mrb[0].mxu0
        %v4038 = vadd.f32 0.0, %v4037
        %v4039 = vpop.f32.mrb[0].mxu0
        %v4040 = vpop.f32.mrb[0].mxu0
        %v4041 = vadd.f32 0.0, %v4040
        %v4042 = vpop.f32.mrb[0].mxu0
        %4043 = vmatprep.mubr.bf16.mxu0 0
        %4044 = vmatmul.mubr.bf16.gmra.mrb[0].mxu0 %v688
        %v4045 = vpop.f32.mrb[0].mxu0
        %v4046 = vadd.f32 0.0, %v4045
        %v4047 = vpop.f32.mrb[0].mxu0
        %v4048 = vpop.f32.mrb[0].mxu0
        %v4049 = vadd.f32 0.0, %v4048
        %v4050 = vpop.f32.mrb[0].mxu0
        %4051 = vmatprep.mubr.bf16.mxu0 0
        %4052 = vmatmul.mubr.bf16.gmra.mrb[0].mxu0 %v691
        %v4053 = vpop.f32.mrb[0].mxu0
        %v4054 = vadd.f32 0.0, %v4053
        %v4055 = vpop.f32.mrb[0].mxu0
        %v4056 = vpop.f32.mrb[0].mxu0
        %v4057 = vadd.f32 0.0, %v4056
        %v4058 = vpop.f32.mrb[0].mxu0
        %4059 = vmatprep.mubr.bf16.mxu0 0
        %4060 = vmatmul.mubr.bf16.gmra.mrb[0].mxu0 %v694
        %v4061 = vpop.f32.mrb[0].mxu0
        %v4062 = vadd.f32 0.0, %v4061
        %v4063 = vpop.f32.mrb[0].mxu0
        %v4064 = vpop.f32.mrb[0].mxu0
        %v4065 = vadd.f32 0.0, %v4064
        %v4066 = vpop.f32.mrb[0].mxu0
        %4067 = vmatprep.mubr.bf16.mxu0 0
        %4068 = vmatmul.mubr.bf16.gmra.mrb[0].mxu0 %v697
        %v4069 = vpop.f32.mrb[0].mxu0
        %v4070 = vadd.f32 0.0, %v4069
        %v4071 = vpop.f32.mrb[0].mxu0
        %v4072 = vpop.f32.mrb[0].mxu0
        %v4073 = vadd.f32 0.0, %v4072
        %v4074 = vpop.f32.mrb[0].mxu0
        %4075 = vmatprep.mubr.bf16.mxu0 0
        %4076 = vmatmul.mubr.bf16.gmra.mrb[0].mxu0 %v700
        %v4077 = vpop.f32.mrb[0].mxu0
        %v4078 = vadd.f32 0.0, %v4077
        %v4079 = vpop.f32.mrb[0].mxu0
        %v4080 = vpop.f32.mrb[0].mxu0
        %v4081 = vadd.f32 0.0, %v4080
        %v4082 = vpop.f32.mrb[0].mxu0
        %4083 = vmatprep.mubr.bf16.mxu0 0
        %4084 = vmatmul.mubr.bf16.gmra.mrb[0].mxu0 %v703
        %v4085 = vpop.f32.mrb[0].mxu0
        %v4086 = vadd.f32 0.0, %v4085
        %v4087 = vpop.f32.mrb[0].mxu0
        %v4088 = vpop.f32.mrb[0].mxu0
        %v4089 = vadd.f32 0.0, %v4088
        %v4090 = vpop.f32.mrb[0].mxu0
        %4091 = vmatprep.mubr.bf16.mxu0 0
        %4092 = vmatmul.mubr.bf16.gmra.mrb[0].mxu0 %v706
        %v4093 = vpop.f32.mrb[0].mxu0
        %v4094 = vadd.f32 0.0, %v4093
        %v4095 = vpop.f32.mrb[0].mxu0
        %v4096 = vpop.f32.mrb[0].mxu0
        %v4097 = vadd.f32 0.0, %v4096
        %v4098 = vpop.f32.mrb[0].mxu0
        %4099 = vmatprep.mubr.bf16.mxu0 0
        %4100 = vmatmul.mubr.bf16.gmra.mrb[0].mxu0 %v709
        %v4101 = vpop.f32.mrb[0].mxu0
        %v4102 = vadd.f32 0.0, %v4101
        %v4103 = vpop.f32.mrb[0].mxu0
        %v4104 = vpop.f32.mrb[0].mxu0
        %v4105 = vadd.f32 0.0, %v4104
        %v4106 = vpop.f32.mrb[0].mxu0
        %4107 = vmatprep.mubr.bf16.mxu0 0
        %4108 = vmatmul.mubr.bf16.gmra.mrb[0].mxu0 %v712
        %v4109 = vpop.f32.mrb[0].mxu0
        %v4110 = vadd.f32 0.0, %v4109
        %v4111 = vpop.f32.mrb[0].mxu0
        %v4112 = vpop.f32.mrb[0].mxu0
        %v4113 = vadd.f32 0.0, %v4112
        %v4114 = vpop.f32.mrb[0].mxu0
        %4115 = vmatprep.mubr.bf16.mxu0 0
        %4116 = vmatmul.mubr.bf16.gmra.mrb[0].mxu0 %v715
        %v4117 = vpop.f32.mrb[0].mxu0
        %v4118 = vadd.f32 0.0, %v4117
        %v4119 = vpop.f32.mrb[0].mxu0
        %v4120 = vpop.f32.mrb[0].mxu0
        %v4121 = vadd.f32 0.0, %v4120
        %v4122 = vpop.f32.mrb[0].mxu0
        %4123 = vmatprep.mubr.bf16.mxu0 0
        %4124 = vmatmul.mubr.bf16.gmra.mrb[0].mxu0 %v718
        %v4125 = vpop.f32.mrb[0].mxu0
        %v4126 = vadd.f32 0.0, %v4125
        %v4127 = vpop.f32.mrb[0].mxu0
        %v4128 = vpop.f32.mrb[0].mxu0
        %v4129 = vadd.f32 0.0, %v4128
        %v4130 = vpop.f32.mrb[0].mxu0
        %4131 = vmatprep.mubr.bf16.mxu0 0
        %4132 = vmatmul.mubr.bf16.gmra.mrb[0].mxu0 %v721
        %v4133 = vpop.f32.mrb[0].mxu0
        %v4134 = vadd.f32 0.0, %v4133
        %v4135 = vpop.f32.mrb[0].mxu0
        %v4136 = vpop.f32.mrb[0].mxu0
        %v4137 = vadd.f32 0.0, %v4136
        %v4138 = vpop.f32.mrb[0].mxu0
        %4139 = vdwg.mxu0
        %v4140 = vld [vmem:[%s11] sm:$0x1]
        %v4142 = vlaneseq
        %v4143 = vshrl.u32 %v4142, 7
        %v4144 = vsub.s32 0, %v4143
        %v4145 = vrot.slane %v4140, %v4144
        %v4147 = vmul.f32 %v4014, %v4145
        %v4148 = vmul.f32 %v4017, %v4145
        %v4149 = vmul.f32 %v4022, %v4145
        %v4150 = vmul.f32 %v4025, %v4145
        %v4151 = vmul.f32 %v4030, %v4145
        %v4152 = vmul.f32 %v4033, %v4145
        %v4153 = vmul.f32 %v4038, %v4145
        %v4154 = vmul.f32 %v4041, %v4145
        %v4155 = vmul.f32 %v4046, %v4145
        %v4156 = vmul.f32 %v4049, %v4145
        %v4157 = vmul.f32 %v4054, %v4145
        %v4158 = vmul.f32 %v4057, %v4145
        %v4159 = vmul.f32 %v4062, %v4145
        %v4160 = vmul.f32 %v4065, %v4145
        %v4161 = vmul.f32 %v4070, %v4145
        %v4162 = vmul.f32 %v4073, %v4145
        %v4163 = vmul.f32 %v4078, %v4145
        %v4164 = vmul.f32 %v4081, %v4145
        %v4165 = vmul.f32 %v4086, %v4145
        %v4166 = vmul.f32 %v4089, %v4145
        %v4167 = vmul.f32 %v4094, %v4145
        %v4168 = vmul.f32 %v4097, %v4145
        %v4169 = vmul.f32 %v4102, %v4145
        %v4170 = vmul.f32 %v4105, %v4145
        %v4171 = vmul.f32 %v4110, %v4145
        %v4172 = vmul.f32 %v4113, %v4145
        %v4173 = vmul.f32 %v4118, %v4145
        %v4174 = vmul.f32 %v4121, %v4145
        %v4175 = vmul.f32 %v4126, %v4145
        %v4176 = vmul.f32 %v4129, %v4145
        %v4177 = vmul.f32 %v4134, %v4145
        %v4178 = vmul.f32 %v4137, %v4145
        %v4179 = vld [vmem:[%s12] sm:$0x1]
        %v4181 = vlaneseq
        %v4182 = vshrl.u32 %v4181, 7
        %v4183 = vsub.s32 0, %v4182
        %v4184 = vrot.slane %v4179, %v4183
        %v4186 = vadd.f32 %v4147, %v4184
        %v4187 = vadd.f32 %v4148, %v4184
        %v4188 = vadd.f32 %v4149, %v4184
        %v4189 = vadd.f32 %v4150, %v4184
        %v4190 = vadd.f32 %v4151, %v4184
        %v4191 = vadd.f32 %v4152, %v4184
        %v4192 = vadd.f32 %v4153, %v4184
        %v4193 = vadd.f32 %v4154, %v4184
        %v4194 = vadd.f32 %v4155, %v4184
        %v4195 = vadd.f32 %v4156, %v4184
        %v4196 = vadd.f32 %v4157, %v4184
        %v4197 = vadd.f32 %v4158, %v4184
        %v4198 = vadd.f32 %v4159, %v4184
        %v4199 = vadd.f32 %v4160, %v4184
        %v4200 = vadd.f32 %v4161, %v4184
        %v4201 = vadd.f32 %v4162, %v4184
        %v4202 = vadd.f32 %v4163, %v4184
        %v4203 = vadd.f32 %v4164, %v4184
        %v4204 = vadd.f32 %v4165, %v4184
        %v4205 = vadd.f32 %v4166, %v4184
        %v4206 = vadd.f32 %v4167, %v4184
        %v4207 = vadd.f32 %v4168, %v4184
        %v4208 = vadd.f32 %v4169, %v4184
        %v4209 = vadd.f32 %v4170, %v4184
        %v4210 = vadd.f32 %v4171, %v4184
        %v4211 = vadd.f32 %v4172, %v4184
        %v4212 = vadd.f32 %v4173, %v4184
        %v4213 = vadd.f32 %v4174, %v4184
        %v4214 = vadd.f32 %v4175, %v4184
        %v4215 = vadd.f32 %v4176, %v4184
        %v4216 = vadd.f32 %v4177, %v4184
        %v4217 = vadd.f32 %v4178, %v4184
        %v4218 = vld [vmem:[%s7] sm:$0x3]
        %v4220 = vsel %vm674, %v3959, 0
        %v4223 = vsel %vm674, %v3960, 0
        %v4226 = vsel %vm674, %v3961, 0
        %v4229 = vsel %vm674, %v3962, 0
        %v4232 = vsel %vm674, %v3963, 0
        %v4235 = vsel %vm674, %v3964, 0
        %v4238 = vsel %vm674, %v3965, 0
        %v4241 = vsel %vm674, %v3966, 0
        %v4244 = vsel %vm674, %v3967, 0
        %v4247 = vsel %vm674, %v3968, 0
        %v4250 = vsel %vm674, %v3969, 0
        %v4253 = vsel %vm674, %v3970, 0
        %v4256 = vsel %vm674, %v3971, 0
        %v4259 = vsel %vm674, %v3972, 0
        %v4262 = vsel %vm674, %v3973, 0
        %v4265 = vsel %vm674, %v3974, 0
        %v4268 = vsel %vm723, %v4218, 0
        %4270 = vmatprep.subr.bf16.mxu0 0
        %4271 = vmatpush1.bf16.msra.mxu0 %v4268
        %4272 = vmatprep.subr.bf16.mxu0 0
        %4273 = vmatpush1.bf16.msra.mxu0 0
        %4274 = vmatprep.subr.bf16.mxu0 0
        %4275 = vmatpush1.bf16.msra.mxu0 0
        %4276 = vmatprep.subr.bf16.mxu0 0
        %4277 = vmatpush1.bf16.msra.mxu0 0
        %4278 = vmatprep.subr.bf16.mxu0 0
        %4279 = vmatpush1.bf16.msra.mxu0 0
        %4280 = vmatprep.subr.bf16.mxu0 0
        %4281 = vmatpush1.bf16.msra.mxu0 0
        %4282 = vmatprep.subr.bf16.mxu0 0
        %4283 = vmatpush1.bf16.msra.mxu0 0
        %4284 = vmatprep.subr.bf16.mxu0 0
        %4285 = vmatpush1.bf16.msra.mxu0 0
        %4286 = vmatprep.subr.bf16.mxu0 0
        %4287 = vmatpush1.bf16.msra.mxu0 0
        %4288 = vmatprep.subr.bf16.mxu0 0
        %4289 = vmatpush1.bf16.msra.mxu0 0
        %4290 = vmatprep.subr.bf16.mxu0 0
        %4291 = vmatpush1.bf16.msra.mxu0 0
        %4292 = vmatprep.subr.bf16.mxu0 0
        %4293 = vmatpush1.bf16.msra.mxu0 0
        %4294 = vmatprep.subr.bf16.mxu0 0
        %4295 = vmatpush1.bf16.msra.mxu0 0
        %4296 = vmatprep.subr.bf16.mxu0 0
        %4297 = vmatpush1.bf16.msra.mxu0 0
        %4298 = vmatprep.subr.bf16.mxu0 0
        %4299 = vmatpush1.bf16.msra.mxu0 0
        %4300 = vmatprep.subr.bf16.mxu0 0
        %4301 = vmatpush1.bf16.msra.mxu0 0
        %4302 = vmatprep.mubr.bf16.mxu0 0
        %4303 = vmatmul.mubr.bf16.gmra.mrb[0].mxu0 %v4220
        %v4304 = vpop.f32.mrb[0].mxu0
        %v4305 = vadd.f32 0.0, %v4304
        %v4306 = vpop.f32.mrb[0].mxu0
        %v4307 = vpop.f32.mrb[0].mxu0
        %v4308 = vadd.f32 0.0, %v4307
        %v4309 = vpop.f32.mrb[0].mxu0
        %4310 = vmatprep.mubr.bf16.mxu0 0
        %4311 = vmatmul.mubr.bf16.gmra.mrb[0].mxu0 %v4223
        %v4312 = vpop.f32.mrb[0].mxu0
        %v4313 = vadd.f32 0.0, %v4312
        %v4314 = vpop.f32.mrb[0].mxu0
        %v4315 = vpop.f32.mrb[0].mxu0
        %v4316 = vadd.f32 0.0, %v4315
        %v4317 = vpop.f32.mrb[0].mxu0
        %4318 = vmatprep.mubr.bf16.mxu0 0
        %4319 = vmatmul.mubr.bf16.gmra.mrb[0].mxu0 %v4226
        %v4320 = vpop.f32.mrb[0].mxu0
        %v4321 = vadd.f32 0.0, %v4320
        %v4322 = vpop.f32.mrb[0].mxu0
        %v4323 = vpop.f32.mrb[0].mxu0
        %v4324 = vadd.f32 0.0, %v4323
        %v4325 = vpop.f32.mrb[0].mxu0
        %4326 = vmatprep.mubr.bf16.mxu0 0
        %4327 = vmatmul.mubr.bf16.gmra.mrb[0].mxu0 %v4229
        %v4328 = vpop.f32.mrb[0].mxu0
        %v4329 = vadd.f32 0.0, %v4328
        %v4330 = vpop.f32.mrb[0].mxu0
        %v4331 = vpop.f32.mrb[0].mxu0
        %v4332 = vadd.f32 0.0, %v4331
        %v4333 = vpop.f32.mrb[0].mxu0
        %4334 = vmatprep.mubr.bf16.mxu0 0
        %4335 = vmatmul.mubr.bf16.gmra.mrb[0].mxu0 %v4232
        %v4336 = vpop.f32.mrb[0].mxu0
        %v4337 = vadd.f32 0.0, %v4336
        %v4338 = vpop.f32.mrb[0].mxu0
        %v4339 = vpop.f32.mrb[0].mxu0
        %v4340 = vadd.f32 0.0, %v4339
        %v4341 = vpop.f32.mrb[0].mxu0
        %4342 = vmatprep.mubr.bf16.mxu0 0
        %4343 = vmatmul.mubr.bf16.gmra.mrb[0].mxu0 %v4235
        %v4344 = vpop.f32.mrb[0].mxu0
        %v4345 = vadd.f32 0.0, %v4344
        %v4346 = vpop.f32.mrb[0].mxu0
        %v4347 = vpop.f32.mrb[0].mxu0
        %v4348 = vadd.f32 0.0, %v4347
        %v4349 = vpop.f32.mrb[0].mxu0
        %4350 = vmatprep.mubr.bf16.mxu0 0
        %4351 = vmatmul.mubr.bf16.gmra.mrb[0].mxu0 %v4238
        %v4352 = vpop.f32.mrb[0].mxu0
        %v4353 = vadd.f32 0.0, %v4352
        %v4354 = vpop.f32.mrb[0].mxu0
        %v4355 = vpop.f32.mrb[0].mxu0
        %v4356 = vadd.f32 0.0, %v4355
        %v4357 = vpop.f32.mrb[0].mxu0
        %4358 = vmatprep.mubr.bf16.mxu0 0
        %4359 = vmatmul.mubr.bf16.gmra.mrb[0].mxu0 %v4241
        %v4360 = vpop.f32.mrb[0].mxu0
        %v4361 = vadd.f32 0.0, %v4360
        %v4362 = vpop.f32.mrb[0].mxu0
        %v4363 = vpop.f32.mrb[0].mxu0
        %v4364 = vadd.f32 0.0, %v4363
        %v4365 = vpop.f32.mrb[0].mxu0
        %4366 = vmatprep.mubr.bf16.mxu0 0
        %4367 = vmatmul.mubr.bf16.gmra.mrb[0].mxu0 %v4244
        %v4368 = vpop.f32.mrb[0].mxu0
        %v4369 = vadd.f32 0.0, %v4368
        %v4370 = vpop.f32.mrb[0].mxu0
        %v4371 = vpop.f32.mrb[0].mxu0
        %v4372 = vadd.f32 0.0, %v4371
        %v4373 = vpop.f32.mrb[0].mxu0
        %4374 = vmatprep.mubr.bf16.mxu0 0
        %4375 = vmatmul.mubr.bf16.gmra.mrb[0].mxu0 %v4247
        %v4376 = vpop.f32.mrb[0].mxu0
        %v4377 = vadd.f32 0.0, %v4376
        %v4378 = vpop.f32.mrb[0].mxu0
        %v4379 = vpop.f32.mrb[0].mxu0
        %v4380 = vadd.f32 0.0, %v4379
        %v4381 = vpop.f32.mrb[0].mxu0
        %4382 = vmatprep.mubr.bf16.mxu0 0
        %4383 = vmatmul.mubr.bf16.gmra.mrb[0].mxu0 %v4250
        %v4384 = vpop.f32.mrb[0].mxu0
        %v4385 = vadd.f32 0.0, %v4384
        %v4386 = vpop.f32.mrb[0].mxu0
        %v4387 = vpop.f32.mrb[0].mxu0
        %v4388 = vadd.f32 0.0, %v4387
        %v4389 = vpop.f32.mrb[0].mxu0
        %4390 = vmatprep.mubr.bf16.mxu0 0
        %4391 = vmatmul.mubr.bf16.gmra.mrb[0].mxu0 %v4253
        %v4392 = vpop.f32.mrb[0].mxu0
        %v4393 = vadd.f32 0.0, %v4392
        %v4394 = vpop.f32.mrb[0].mxu0
        %v4395 = vpop.f32.mrb[0].mxu0
        %v4396 = vadd.f32 0.0, %v4395
        %v4397 = vpop.f32.mrb[0].mxu0
        %4398 = vmatprep.mubr.bf16.mxu0 0
        %4399 = vmatmul.mubr.bf16.gmra.mrb[0].mxu0 %v4256
        %v4400 = vpop.f32.mrb[0].mxu0
        %v4401 = vadd.f32 0.0, %v4400
        %v4402 = vpop.f32.mrb[0].mxu0
        %v4403 = vpop.f32.mrb[0].mxu0
        %v4404 = vadd.f32 0.0, %v4403
        %v4405 = vpop.f32.mrb[0].mxu0
        %4406 = vmatprep.mubr.bf16.mxu0 0
        %4407 = vmatmul.mubr.bf16.gmra.mrb[0].mxu0 %v4259
        %v4408 = vpop.f32.mrb[0].mxu0
        %v4409 = vadd.f32 0.0, %v4408
        %v4410 = vpop.f32.mrb[0].mxu0
        %v4411 = vpop.f32.mrb[0].mxu0
        %v4412 = vadd.f32 0.0, %v4411
        %v4413 = vpop.f32.mrb[0].mxu0
        %4414 = vmatprep.mubr.bf16.mxu0 0
        %4415 = vmatmul.mubr.bf16.gmra.mrb[0].mxu0 %v4262
        %v4416 = vpop.f32.mrb[0].mxu0
        %v4417 = vadd.f32 0.0, %v4416
        %v4418 = vpop.f32.mrb[0].mxu0
        %v4419 = vpop.f32.mrb[0].mxu0
        %v4420 = vadd.f32 0.0, %v4419
        %v4421 = vpop.f32.mrb[0].mxu0
        %4422 = vmatprep.mubr.bf16.mxu0 0
        %4423 = vmatmul.mubr.bf16.gmra.mrb[0].mxu0 %v4265
        %v4424 = vpop.f32.mrb[0].mxu0
        %v4425 = vadd.f32 0.0, %v4424
        %v4426 = vpop.f32.mrb[0].mxu0
        %v4427 = vpop.f32.mrb[0].mxu0
        %v4428 = vadd.f32 0.0, %v4427
        %v4429 = vpop.f32.mrb[0].mxu0
        %4430 = vdwg.mxu0
        %v4431 = vld [vmem:[%s8] sm:$0x1]
        %v4433 = vlaneseq
        %v4434 = vshrl.u32 %v4433, 7
        %v4435 = vsub.s32 0, %v4434
        %v4436 = vrot.slane %v4431, %v4435
        %v4438 = vmul.f32 %v4305, %v4436
        %v4439 = vmul.f32 %v4308, %v4436
        %v4440 = vmul.f32 %v4313, %v4436
        %v4441 = vmul.f32 %v4316, %v4436
        %v4442 = vmul.f32 %v4321, %v4436
        %v4443 = vmul.f32 %v4324, %v4436
        %v4444 = vmul.f32 %v4329, %v4436
        %v4445 = vmul.f32 %v4332, %v4436
        %v4446 = vmul.f32 %v4337, %v4436
        %v4447 = vmul.f32 %v4340, %v4436
        %v4448 = vmul.f32 %v4345, %v4436
        %v4449 = vmul.f32 %v4348, %v4436
        %v4450 = vmul.f32 %v4353, %v4436
        %v4451 = vmul.f32 %v4356, %v4436
        %v4452 = vmul.f32 %v4361, %v4436
        %v4453 = vmul.f32 %v4364, %v4436
        %v4454 = vmul.f32 %v4369, %v4436
        %v4455 = vmul.f32 %v4372, %v4436
        %v4456 = vmul.f32 %v4377, %v4436
        %v4457 = vmul.f32 %v4380, %v4436
        %v4458 = vmul.f32 %v4385, %v4436
        %v4459 = vmul.f32 %v4388, %v4436
        %v4460 = vmul.f32 %v4393, %v4436
        %v4461 = vmul.f32 %v4396, %v4436
        %v4462 = vmul.f32 %v4401, %v4436
        %v4463 = vmul.f32 %v4404, %v4436
        %v4464 = vmul.f32 %v4409, %v4436
        %v4465 = vmul.f32 %v4412, %v4436
        %v4466 = vmul.f32 %v4417, %v4436
        %v4467 = vmul.f32 %v4420, %v4436
        %v4468 = vmul.f32 %v4425, %v4436
        %v4469 = vmul.f32 %v4428, %v4436
        %v4470 = vld [vmem:[%s9] sm:$0x1]
        %v4472 = vlaneseq
        %v4473 = vshrl.u32 %v4472, 7
        %v4474 = vsub.s32 0, %v4473
        %v4475 = vrot.slane %v4470, %v4474
        %v4477 = vadd.f32 %v4438, %v4475
        %v4478 = vadd.f32 %v4439, %v4475
        %v4479 = vadd.f32 %v4440, %v4475
        %v4480 = vadd.f32 %v4441, %v4475
        %v4481 = vadd.f32 %v4442, %v4475
        %v4482 = vadd.f32 %v4443, %v4475
        %v4483 = vadd.f32 %v4444, %v4475
        %v4484 = vadd.f32 %v4445, %v4475
        %v4485 = vadd.f32 %v4446, %v4475
        %v4486 = vadd.f32 %v4447, %v4475
        %v4487 = vadd.f32 %v4448, %v4475
        %v4488 = vadd.f32 %v4449, %v4475
        %v4489 = vadd.f32 %v4450, %v4475
        %v4490 = vadd.f32 %v4451, %v4475
        %v4491 = vadd.f32 %v4452, %v4475
        %v4492 = vadd.f32 %v4453, %v4475
        %v4493 = vadd.f32 %v4454, %v4475
        %v4494 = vadd.f32 %v4455, %v4475
        %v4495 = vadd.f32 %v4456, %v4475
        %v4496 = vadd.f32 %v4457, %v4475
        %v4497 = vadd.f32 %v4458, %v4475
        %v4498 = vadd.f32 %v4459, %v4475
        %v4499 = vadd.f32 %v4460, %v4475
        %v4500 = vadd.f32 %v4461, %v4475
        %v4501 = vadd.f32 %v4462, %v4475
        %v4502 = vadd.f32 %v4463, %v4475
        %v4503 = vadd.f32 %v4464, %v4475
        %v4504 = vadd.f32 %v4465, %v4475
        %v4505 = vadd.f32 %v4466, %v4475
        %v4506 = vadd.f32 %v4467, %v4475
        %v4507 = vadd.f32 %v4468, %v4475
        %v4508 = vadd.f32 %v4469, %v4475
        %v4509 = vadd.f32 %v4477, %v4186
        %v4510 = vadd.f32 %v4478, %v4187
        %v4511 = vadd.f32 %v4479, %v4188
        %v4512 = vadd.f32 %v4480, %v4189
        %v4513 = vadd.f32 %v4481, %v4190
        %v4514 = vadd.f32 %v4482, %v4191
        %v4515 = vadd.f32 %v4483, %v4192
        %v4516 = vadd.f32 %v4484, %v4193
        %v4517 = vadd.f32 %v4485, %v4194
        %v4518 = vadd.f32 %v4486, %v4195
        %v4519 = vadd.f32 %v4487, %v4196
        %v4520 = vadd.f32 %v4488, %v4197
        %v4521 = vadd.f32 %v4489, %v4198
        %v4522 = vadd.f32 %v4490, %v4199
        %v4523 = vadd.f32 %v4491, %v4200
        %v4524 = vadd.f32 %v4492, %v4201
        %v4525 = vadd.f32 %v4493, %v4202
        %v4526 = vadd.f32 %v4494, %v4203
        %v4527 = vadd.f32 %v4495, %v4204
        %v4528 = vadd.f32 %v4496, %v4205
        %v4529 = vadd.f32 %v4497, %v4206
        %v4530 = vadd.f32 %v4498, %v4207
        %v4531 = vadd.f32 %v4499, %v4208
        %v4532 = vadd.f32 %v4500, %v4209
        %v4533 = vadd.f32 %v4501, %v4210
        %v4534 = vadd.f32 %v4502, %v4211
        %v4535 = vadd.f32 %v4503, %v4212
        %v4536 = vadd.f32 %v4504, %v4213
        %v4537 = vadd.f32 %v4505, %v4214
        %v4538 = vadd.f32 %v4506, %v4215
        %v4539 = vadd.f32 %v4507, %v4216
        %v4540 = vadd.f32 %v4508, %v4217
        %v4541 = vmax.f32 %v4509, 0.0
        %v4542 = vmax.f32 %v4510, 0.0
        %v4543 = vmax.f32 %v4511, 0.0
        %v4544 = vmax.f32 %v4512, 0.0
        %v4545 = vmax.f32 %v4513, 0.0
        %v4546 = vmax.f32 %v4514, 0.0
        %v4547 = vmax.f32 %v4515, 0.0
        %v4548 = vmax.f32 %v4516, 0.0
        %v4549 = vmax.f32 %v4517, 0.0
        %v4550 = vmax.f32 %v4518, 0.0
        %v4551 = vmax.f32 %v4519, 0.0
        %v4552 = vmax.f32 %v4520, 0.0
        %v4553 = vmax.f32 %v4521, 0.0
        %v4554 = vmax.f32 %v4522, 0.0
        %v4555 = vmax.f32 %v4523, 0.0
        %v4556 = vmax.f32 %v4524, 0.0
        %v4557 = vmax.f32 %v4525, 0.0
        %v4558 = vmax.f32 %v4526, 0.0
        %v4559 = vmax.f32 %v4527, 0.0
        %v4560 = vmax.f32 %v4528, 0.0
        %v4561 = vmax.f32 %v4529, 0.0
        %v4562 = vmax.f32 %v4530, 0.0
        %v4563 = vmax.f32 %v4531, 0.0
        %v4564 = vmax.f32 %v4532, 0.0
        %v4565 = vmax.f32 %v4533, 0.0
        %v4566 = vmax.f32 %v4534, 0.0
        %v4567 = vmax.f32 %v4535, 0.0
        %v4568 = vmax.f32 %v4536, 0.0
        %v4569 = vmax.f32 %v4537, 0.0
        %v4570 = vmax.f32 %v4538, 0.0
        %v4571 = vmax.f32 %v4539, 0.0
        %v4572 = vmax.f32 %v4540, 0.0
        %v4573 = vpack.c.bf16 %v4542, %v4541
        %v4574 = vpack.c.bf16 %v4544, %v4543
        %v4575 = vpack.c.bf16 %v4546, %v4545
        %v4576 = vpack.c.bf16 %v4548, %v4547
        %v4577 = vpack.c.bf16 %v4550, %v4549
        %v4578 = vpack.c.bf16 %v4552, %v4551
        %v4579 = vpack.c.bf16 %v4554, %v4553
        %v4580 = vpack.c.bf16 %v4556, %v4555
        %v4581 = vpack.c.bf16 %v4558, %v4557
        %v4582 = vpack.c.bf16 %v4560, %v4559
        %v4583 = vpack.c.bf16 %v4562, %v4561
        %v4584 = vpack.c.bf16 %v4564, %v4563
        %v4585 = vpack.c.bf16 %v4566, %v4565
        %v4586 = vpack.c.bf16 %v4568, %v4567
        %v4587 = vpack.c.bf16 %v4570, %v4569
        %v4588 = vpack.c.bf16 %v4572, %v4571
        %v4605 = vunpack.c.l.b16 %v4573
        %v4606 = vunpack.c.h.b16 %v4573
        %v4607 = vunpack.c.l.b16 %v4574
        %v4608 = vunpack.c.h.b16 %v4574
        %v4609 = vunpack.c.l.b16 %v4575
        %v4610 = vunpack.c.h.b16 %v4575
        %v4611 = vunpack.c.l.b16 %v4576
        %v4612 = vunpack.c.h.b16 %v4576
        %v4613 = vunpack.c.l.b16 %v4577
        %v4614 = vunpack.c.h.b16 %v4577
        %v4615 = vunpack.c.l.b16 %v4578
        %v4616 = vunpack.c.h.b16 %v4578
        %v4617 = vunpack.c.l.b16 %v4579
        %v4618 = vunpack.c.h.b16 %v4579
        %v4619 = vunpack.c.l.b16 %v4580
        %v4620 = vunpack.c.h.b16 %v4580
        %v4621 = vunpack.c.l.b16 %v4581
        %v4622 = vunpack.c.h.b16 %v4581
        %v4623 = vunpack.c.l.b16 %v4582
        %v4624 = vunpack.c.h.b16 %v4582
        %v4625 = vunpack.c.l.b16 %v4583
        %v4626 = vunpack.c.h.b16 %v4583
        %v4627 = vunpack.c.l.b16 %v4584
        %v4628 = vunpack.c.h.b16 %v4584
        %v4629 = vunpack.c.l.b16 %v4585
        %v4630 = vunpack.c.h.b16 %v4585
        %v4631 = vunpack.c.l.b16 %v4586
        %v4632 = vunpack.c.h.b16 %v4586
        %v4633 = vunpack.c.l.b16 %v4587
        %v4634 = vunpack.c.h.b16 %v4587
        %v4635 = vunpack.c.l.b16 %v4588
        %v4636 = vunpack.c.h.b16 %v4588
        %v4637 = vpack.c.b16 %v4605, %v4605
        %v4638 = vpack.c.b16 %v4606, %v4606
        %v4639 = vpack.c.b16 %v4607, %v4607
        %v4640 = vpack.c.b16 %v4608, %v4608
        %v4641 = vpack.c.b16 %v4609, %v4609
        %v4642 = vpack.c.b16 %v4610, %v4610
        %v4643 = vpack.c.b16 %v4611, %v4611
        %v4644 = vpack.c.b16 %v4612, %v4612
        %v4645 = vpack.c.b16 %v4613, %v4613
        %v4646 = vpack.c.b16 %v4614, %v4614
        %v4647 = vpack.c.b16 %v4615, %v4615
        %v4648 = vpack.c.b16 %v4616, %v4616
        %v4649 = vpack.c.b16 %v4617, %v4617
        %v4650 = vpack.c.b16 %v4618, %v4618
        %v4651 = vpack.c.b16 %v4619, %v4619
        %v4652 = vpack.c.b16 %v4620, %v4620
        %v4653 = vpack.c.b16 %v4621, %v4621
        %v4654 = vpack.c.b16 %v4622, %v4622
        %v4655 = vpack.c.b16 %v4623, %v4623
        %v4656 = vpack.c.b16 %v4624, %v4624
        %v4657 = vpack.c.b16 %v4625, %v4625
        %v4658 = vpack.c.b16 %v4626, %v4626
        %v4659 = vpack.c.b16 %v4627, %v4627
        %v4660 = vpack.c.b16 %v4628, %v4628
        %v4661 = vpack.c.b16 %v4629, %v4629
        %v4662 = vpack.c.b16 %v4630, %v4630
        %v4663 = vpack.c.b16 %v4631, %v4631
        %v4664 = vpack.c.b16 %v4632, %v4632
        %v4665 = vpack.c.b16 %v4633, %v4633
        %v4666 = vpack.c.b16 %v4634, %v4634
        %v4667 = vpack.c.b16 %v4635, %v4635
        %v4668 = vpack.c.b16 %v4636, %v4636
        %vm4701 = vcmask 125952
        %4702 = vst.msk [vmem:[%s433] sm:$0xf] %vm4701, %v4637
        %4703 = vst.msk [vmem:[%s433 + $0x4] sm:$0xf] %vm4701, %v4638
        %4704 = vst.msk [vmem:[%s433 + $0x8] sm:$0xf] %vm4701, %v4639
        %4705 = vst.msk [vmem:[%s433 + $0xc] sm:$0xf] %vm4701, %v4640
        %4706 = vst.msk [vmem:[%s433 + $0x10] sm:$0xf] %vm4701, %v4641
        %4707 = vst.msk [vmem:[%s433 + $0x14] sm:$0xf] %vm4701, %v4642
        %4708 = vst.msk [vmem:[%s433 + $0x18] sm:$0xf] %vm4701, %v4643
        %4709 = vst.msk [vmem:[%s433 + $0x1c] sm:$0xf] %vm4701, %v4644
        %4710 = vst.msk [vmem:[%s433 + $0x20] sm:$0xf] %vm4701, %v4645
        %4711 = vst.msk [vmem:[%s433 + $0x24] sm:$0xf] %vm4701, %v4646
        %4712 = vst.msk [vmem:[%s433 + $0x28] sm:$0xf] %vm4701, %v4647
        %4713 = vst.msk [vmem:[%s433 + $0x2c] sm:$0xf] %vm4701, %v4648
        %4714 = vst.msk [vmem:[%s433 + $0x30] sm:$0xf] %vm4701, %v4649
        %4715 = vst.msk [vmem:[%s433 + $0x34] sm:$0xf] %vm4701, %v4650
        %4716 = vst.msk [vmem:[%s433 + $0x38] sm:$0xf] %vm4701, %v4651
        %4717 = vst.msk [vmem:[%s433 + $0x3c] sm:$0xf] %vm4701, %v4652
        %4718 = vst.msk [vmem:[%s433 + $0x40] sm:$0xf] %vm4701, %v4653
        %4719 = vst.msk [vmem:[%s433 + $0x44] sm:$0xf] %vm4701, %v4654
        %4720 = vst.msk [vmem:[%s433 + $0x48] sm:$0xf] %vm4701, %v4655
        %4721 = vst.msk [vmem:[%s433 + $0x4c] sm:$0xf] %vm4701, %v4656
        %4722 = vst.msk [vmem:[%s433 + $0x50] sm:$0xf] %vm4701, %v4657
        %4723 = vst.msk [vmem:[%s433 + $0x54] sm:$0xf] %vm4701, %v4658
        %4724 = vst.msk [vmem:[%s433 + $0x58] sm:$0xf] %vm4701, %v4659
        %4725 = vst.msk [vmem:[%s433 + $0x5c] sm:$0xf] %vm4701, %v4660
        %4726 = vst.msk [vmem:[%s433 + $0x60] sm:$0xf] %vm4701, %v4661
        %4727 = vst.msk [vmem:[%s433 + $0x64] sm:$0xf] %vm4701, %v4662
        %4728 = vst.msk [vmem:[%s433 + $0x68] sm:$0xf] %vm4701, %v4663
        %4729 = vst.msk [vmem:[%s433 + $0x6c] sm:$0xf] %vm4701, %v4664
        %4730 = vst.msk [vmem:[%s433 + $0x70] sm:$0xf] %vm4701, %v4665
        %4731 = vst.msk [vmem:[%s433 + $0x74] sm:$0xf] %vm4701, %v4666
        %4732 = vst.msk [vmem:[%s433 + $0x78] sm:$0xf] %vm4701, %v4667
        %4733 = vst.msk [vmem:[%s433 + $0x7c] sm:$0xf] %vm4701, %v4668
        %s4734 = sand.u32 %s313, 1
        %s4735 = scalar_lea.sflag [#allocation4], %s4734
        %s4736 = sand.u32 %s313, 1
        %s4737 = smul.addr %s4736, 128
        %s4738 = scalar_lea.vmem [#allocation3], %s4737
        // Predicated region
        $region73: #{bottleneck_forward_nhwc.1} parent=71 // pred_check
          %p4739 = pneg %p323
        $region74: #{bottleneck_forward_nhwc.1} parent=71 // pred_check_branch
          %4741 = sbr.rel (%p4739) target = $region76
        $region75: #{bottleneck_forward_nhwc.1} parent=71 // pred_region
          %s4743 = ssub.s32 2048, 2048
          %4744 = vsyncadd %s4735, %s4743
          %s4745 = smul.addr %s27, 32
          %s4746 = smul.addr %s4745, 64
          %s4747 = scalar_lea.hbm %s13, %s4746
          %s4748 = sshll.u32 %s4738, 4
          %s4749 = int_to_ptr.vmem [resolvable:$true] %s4748
          %4754 = dma.vmem_to_hbm [thread:$0]  %s4749, 2048, %s4747, %s4735, 64, 64, 4
        $region76: #{bottleneck_forward_nhwc.1} parent=71 // pred_fallthru
          _
      $region72: #{bottleneck_forward_nhwc.1} parent=5 // pred_fallthru
        _
      %p4755 = scmp.le.s32.totalorder 2, %s22
      // Predicated region
      $region77: #{bottleneck_forward_nhwc.1} parent=5 // pred_check
        %p4756 = pneg %p4755
      $region78: #{bottleneck_forward_nhwc.1} parent=5 // pred_check_branch
        %4758 = sbr.rel (%p4756) target = $region80
      $region79: #{bottleneck_forward_nhwc.1} parent=5 // pred_region
        %s4759 = ssub.s32 %s22, 2
        // Predicated region
        $region81: #{bottleneck_forward_nhwc.1} parent=79 // pred_check
          %p4760 = pneg %p329
        $region82: #{bottleneck_forward_nhwc.1} parent=79 // pred_check_branch
          %4762 = sbr.rel (%p4760) target = $region84
        $region83: #{bottleneck_forward_nhwc.1} parent=79 // pred_region
          %s4763 = sand.u32 %s314, 1
          %s4764 = scalar_lea.sflag [#allocation4], %s4763
          %s4765 = sand.u32 %s314, 1
          %s4766 = smul.addr %s4765, 128
          %s4767 = scalar_lea.vmem [#allocation3], %s4766
          %4768 = dma.done %s4764, 2048
        $region84: #{bottleneck_forward_nhwc.1} parent=79 // pred_fallthru
          _
      $region80: #{bottleneck_forward_nhwc.1} parent=5 // pred_fallthru
        _
    $region6: #{bottleneck_forward_nhwc.1} parent=1 // loop_footer
      %s26 = sadd.s32 1, %s22
    $region7: #{bottleneck_forward_nhwc.1} parent=1 // loop_footer_branch
      %21 = sbr.rel target = $region3
    $region8: #{bottleneck_forward_nhwc.1} parent=1 // loop_exit
      _
    %4769 = vsyncpa [#allocation4], 1
    %s4770 = scalar_lea.sflag [#allocation4], 1
    %4771 = vsyncpa %s4770, 1

</llo_original>
